<compile_context>
chip_gen: v5e
topology: v5e:2x2
jax: 0.10.0
libtpu: 0.0.40
codegen_flags: <defaults>
</compile_context>

<pallas_src>
import functools

import jax
import jax.numpy as jnp
import numpy as np
from jax.experimental import pallas as pl
from jax.experimental.pallas import tpu as pltpu

# ----------------------------- model config ---------------------------------
VOCAB_SIZE = 64
EMBED_SIZE = 32
RNN_SIZE = 128
NUM_LAYERS = 2          # kernel below is specialized for 2 layers (module default)
SEQ_LEN = 8
BATCH = 2


# ------------------------- fused forward Pallas kernel ----------------------
def _fused_forward_kernel(T, B,
                          ids_ref, emb_ref,
                          wih0_ref, whh0_ref, b0_ref,
                          wih1_ref, whh1_ref, b1_ref,
                          wdec_ref, bdec_ref,
                          h0_ref, c0_ref,
                          logits_ref, hT_ref, cT_ref):
    """Whole forward pass in one kernel invocation (no grid).

    ids_ref   : (T*B, 1) int32   token ids (t-major, then batch)
    emb_ref   : (V, E)           embedding table
    wih*_ref  : (E_in, 4H)       pre-transposed torch weight_ih
    whh*_ref  : (H, 4H)          pre-transposed torch weight_hh
    b*_ref    : (1, 4H)          b_ih + b_hh
    wdec_ref  : (H, V), bdec_ref : (1, V)
    h0_ref/c0_ref : (L, B, H)    initial state
    outputs   : logits (T*B, V), hT/cT (L, B, H)
    """
    H = whh0_ref.shape[0]
    V = emb_ref.shape[0]
    TB = T * B

    # ---- Embedding lookup as a one-hot MXU matmul (exact gather, no scatter).
    ids = ids_ref[...]                                               # (TB, 1) int32
    vocab_iota = jax.lax.broadcasted_iota(jnp.int32, (TB, V), 1)     # lanes = vocab
    onehot = (vocab_iota == ids).astype(jnp.float32)                 # (TB, V)
    x = jnp.dot(onehot, emb_ref[...],
                preferred_element_type=jnp.float32)                  # (TB, E)

    def run_layer(layer_in, wih_ref, whh_ref, b_ref, h_init, c_init):
        # Hoist the input projection out of the recurrence:
        # one (TB, E_in) @ (E_in, 4H) matmul instead of T tiny ones.
        gx = (jnp.dot(layer_in, wih_ref[...],
                      preferred_element_type=jnp.float32) + b_ref[...])   # (TB, 4H)
        whh = whh_ref[...]                                                # (H, 4H)
        h, c = h_init, c_init
        ys = []
        # Fully unrolled recurrence (T is small & static) -> LLO can schedule it.
        for t in range(T):
            gates = gx[t * B:(t + 1) * B, :] + jnp.dot(
                h, whh, preferred_element_type=jnp.float32)               # (B, 4H)
            # PyTorch gate order [i, f, g, o]; H=128 keeps slices lane-aligned.
            i = jax.nn.sigmoid(gates[:, 0 * H:1 * H])
            f = jax.nn.sigmoid(gates[:, 1 * H:2 * H])
            g = jnp.tanh(gates[:, 2 * H:3 * H])
            o = jax.nn.sigmoid(gates[:, 3 * H:4 * H])
            c = f * c + i * g
            h = o * jnp.tanh(c)
            ys.append(h)
        return jnp.concatenate(ys, axis=0), h, c        # (TB, H), (B, H), (B, H)

    y0, h0f, c0f = run_layer(x, wih0_ref, whh0_ref, b0_ref,
                             h0_ref[0], c0_ref[0])
    y1, h1f, c1f = run_layer(y0, wih1_ref, whh1_ref, b1_ref,
                             h0_ref[1], c0_ref[1])

    # ---- Fused decoder: (TB, H) @ (H, V) + bias.
    logits_ref[...] = (jnp.dot(y1, wdec_ref[...],
                               preferred_element_type=jnp.float32)
                       + bdec_ref[...])

    hT_ref[...] = jnp.stack([h0f, h1f], axis=0)
    cT_ref[...] = jnp.stack([c0f, c1f], axis=0)


def fused_forward(inputs, h0, c0, params):
    """inputs: (T, B) int32; h0/c0: (L, B, H). Returns (logits, (hT, cT))."""
    T, B = inputs.shape
    L, _, H = h0.shape
    V = params["w_dec"].shape[-1]

    ids = inputs.reshape(T * B, 1).astype(jnp.int32)

    vmem = pl.BlockSpec(memory_space=pltpu.MemorySpace.VMEM)
    kernel = functools.partial(_fused_forward_kernel, T, B)

    logits, hT, cT = pl.pallas_call(
        kernel,
        out_shape=(jax.ShapeDtypeStruct((T * B, V), jnp.float32),
                   jax.ShapeDtypeStruct((L, B, H), jnp.float32),
                   jax.ShapeDtypeStruct((L, B, H), jnp.float32)),
        in_specs=[vmem] * 12,
        out_specs=(vmem, vmem, vmem),
    )(ids, params["embedding"],
      params["w_ih_0"], params["w_hh_0"], params["b_0"],
      params["w_ih_1"], params["w_hh_1"], params["b_1"],
      params["w_dec"], params["b_dec"],
      h0, c0)
    return logits, (hT, cT)


model_forward = jax.jit(fused_forward)


# ----------------------------- pure-JAX reference ----------------------------
def _reference_forward(inputs, h0, c0, params, num_layers=NUM_LAYERS):
    x = params["embedding"][inputs]
    h_finals, c_finals = [], []
    for layer in range(num_layers):
        w_ih_t = params[f"w_ih_{layer}"]
        w_hh_t = params[f"w_hh_{layer}"]
        bias = params[f"b_{layer}"]

        def step(carry, x_t, w_ih_t=w_ih_t, w_hh_t=w_hh_t, bias=bias):
            h, c = carry
            gates = x_t @ w_ih_t + h @ w_hh_t + bias
            H = h.shape[-1]
            i = jax.nn.sigmoid(gates[:, 0 * H:1 * H])
            f = jax.nn.sigmoid(gates[:, 1 * H:2 * H])
            g = jnp.tanh(gates[:, 2 * H:3 * H])
            o = jax.nn.sigmoid(gates[:, 3 * H:4 * H])
            c = f * c + i * g
            h = o * jnp.tanh(c)
            return (h, c), h

        (hT, cT), ys = jax.lax.scan(step, (h0[layer], c0[layer]), x)
        x = ys
        h_finals.append(hT)
        c_finals.append(cT)
    T, B, H = x.shape
    logits = x.reshape(T * B, H) @ params["w_dec"] + params["b_dec"]
    return logits, (jnp.stack(h_finals), jnp.stack(c_finals))


# ---------------------------------- setup -------------------------------------
def _init_params(key):
    """Deterministic init matching PyTorch param shapes (stored pre-transposed)."""
    params = {}
    keys = jax.random.split(key, 2 + 4 * NUM_LAYERS + 2)
    k_iter = iter(keys)
    params["embedding"] = jax.random.normal(
        next(k_iter), (VOCAB_SIZE, EMBED_SIZE), jnp.float32) * 0.1

    bound = 1.0 / np.sqrt(RNN_SIZE)
    for layer in range(NUM_LAYERS):
        in_dim = EMBED_SIZE if layer == 0 else RNN_SIZE
        # torch: weight_ih (4H, in), weight_hh (4H, H), bias_ih/bias_hh (4H,)
        w_ih = jax.random.uniform(next(k_iter), (4 * RNN_SIZE, in_dim),
                                  jnp.float32, -bound, bound)
        w_hh = jax.random.uniform(next(k_iter), (4 * RNN_SIZE, RNN_SIZE),
                                  jnp.float32, -bound, bound)
        b_ih = jax.random.uniform(next(k_iter), (4 * RNN_SIZE,),
                                  jnp.float32, -bound, bound)
        b_hh = jax.random.uniform(next(k_iter), (4 * RNN_SIZE,),
                                  jnp.float32, -bound, bound)
        params[f"w_ih_{layer}"] = w_ih.T                       # (in, 4H)
        params[f"w_hh_{layer}"] = w_hh.T                       # (H, 4H)
        params[f"b_{layer}"] = (b_ih + b_hh)[None, :]          # (1, 4H)

    dec_bound = 1.0 / np.sqrt(RNN_SIZE)
    w_dec = jax.random.uniform(next(k_iter), (VOCAB_SIZE, RNN_SIZE),
                               jnp.float32, -dec_bound, dec_bound)
    b_dec = jax.random.uniform(next(k_iter), (VOCAB_SIZE,),
                               jnp.float32, -dec_bound, dec_bound)
    params["w_dec"] = w_dec.T                                  # (H, V)
    params["b_dec"] = b_dec[None, :]                           # (1, V)
    return params


if __name__ == "__main__":
    key = jax.random.PRNGKey(0)
    k_params, k_inputs = jax.random.split(key)

    params = _init_params(k_params)
    inputs = jax.random.randint(k_inputs, (SEQ_LEN, BATCH), 0, VOCAB_SIZE,
                                dtype=jnp.int32)
    # init_state(): zeros for (h, c), each (num_layers, batch, rnn_size)
    h0 = jnp.zeros((NUM_LAYERS, BATCH, RNN_SIZE), jnp.float32)
    c0 = jnp.zeros((NUM_LAYERS, BATCH, RNN_SIZE), jnp.float32)

    logits, (hT, cT) = model_forward(inputs, h0, c0, params)
    jax.block_until_ready((logits, hT, cT))

    # sanity-check against pure-JAX reference
    ref_logits, (ref_hT, ref_cT) = _reference_forward(inputs, h0, c0, params)
    np.testing.assert_allclose(np.asarray(logits), np.asarray(ref_logits),
                               rtol=1e-4, atol=1e-4)
    np.testing.assert_allclose(np.asarray(hT), np.asarray(ref_hT),
                               rtol=1e-4, atol=1e-4)
    np.testing.assert_allclose(np.asarray(cT), np.asarray(ref_cT),
                               rtol=1e-4, atol=1e-4)

    assert logits.shape == (SEQ_LEN * BATCH, VOCAB_SIZE)
    assert hT.shape == (NUM_LAYERS, BATCH, RNN_SIZE)
    assert cT.shape == (NUM_LAYERS, BATCH, RNN_SIZE)

    print("KERNEL_OK")
</pallas_src>

<mosaic_0001>
module attributes {stable_mosaic.version = 11 : i64} {
  func.func @_fused_forward_kernel(%arg0: memref<16x1xi32, #tpu.memory_space<vmem>>, %arg1: memref<64x32xf32, #tpu.memory_space<vmem>>, %arg2: memref<32x512xf32, #tpu.memory_space<vmem>>, %arg3: memref<128x512xf32, #tpu.memory_space<vmem>>, %arg4: memref<1x512xf32, #tpu.memory_space<vmem>>, %arg5: memref<128x512xf32, #tpu.memory_space<vmem>>, %arg6: memref<128x512xf32, #tpu.memory_space<vmem>>, %arg7: memref<1x512xf32, #tpu.memory_space<vmem>>, %arg8: memref<128x64xf32, #tpu.memory_space<vmem>>, %arg9: memref<1x64xf32, #tpu.memory_space<vmem>>, %arg10: memref<2x2x128xf32, #tpu.memory_space<vmem>>, %arg11: memref<2x2x128xf32, #tpu.memory_space<vmem>>, %arg12: memref<16x64xf32, #tpu.memory_space<vmem>>, %arg13: memref<2x2x128xf32, #tpu.memory_space<vmem>>, %arg14: memref<2x2x128xf32, #tpu.memory_space<vmem>>) attributes {dimension_semantics = [], scalar_prefetch = 0 : i64, scratch_operands = 0 : i64, tpu.core_type = #tpu.core_type<tc>} {
    %c0 = arith.constant 0 : index
    %c0_0 = arith.constant 0 : index
    %0 = vector.load %arg0[%c0, %c0_0] : memref<16x1xi32, #tpu.memory_space<vmem>>, vector<16x1xi32>
    %1 = tpu.iota {dimensions = array<i32: 1>} : vector<16x64xi32>
    %2 = vector.broadcast %0 : vector<16x1xi32> to vector<16x64xi32>
    %3 = arith.cmpi eq, %1, %2 : vector<16x64xi32>
    %4 = arith.extui %3 : vector<16x64xi1> to vector<16x64xi32>
    %5 = arith.sitofp %4 : vector<16x64xi32> to vector<16x64xf32>
    %c0_1 = arith.constant 0 : index
    %c0_2 = arith.constant 0 : index
    %6 = vector.load %arg1[%c0_1, %c0_2] : memref<64x32xf32, #tpu.memory_space<vmem>>, vector<64x32xf32>
    %cst = arith.constant dense<0.000000e+00> : vector<16x32xf32>
    %7 = tpu.matmul %5, %6, %cst {dimension_numbers = #tpu.dot_dimension_numbers<[1], [0], [0], [1], [0, 0, 1, 1], [], []>} : vector<16x64xf32>, vector<64x32xf32>, vector<16x32xf32> -> vector<16x32xf32>
    %c0_3 = arith.constant 0 : index
    %c0_4 = arith.constant 0 : index
    %c0_5 = arith.constant 0 : index
    %8 = vector.load %arg10[%c0_3, %c0_4, %c0_5] : memref<2x2x128xf32, #tpu.memory_space<vmem>>, vector<1x2x128xf32>
    %9 = vector.shape_cast %8 : vector<1x2x128xf32> to vector<2x128xf32>
    %c0_6 = arith.constant 0 : index
    %c0_7 = arith.constant 0 : index
    %c0_8 = arith.constant 0 : index
    %10 = vector.load %arg11[%c0_6, %c0_7, %c0_8] : memref<2x2x128xf32, #tpu.memory_space<vmem>>, vector<1x2x128xf32>
    %11 = vector.shape_cast %10 : vector<1x2x128xf32> to vector<2x128xf32>
    %c0_9 = arith.constant 0 : index
    %c0_10 = arith.constant 0 : index
    %12 = vector.load %arg2[%c0_9, %c0_10] : memref<32x512xf32, #tpu.memory_space<vmem>>, vector<32x512xf32>
    %cst_11 = arith.constant dense<0.000000e+00> : vector<16x512xf32>
    %13 = tpu.matmul %7, %12, %cst_11 {dimension_numbers = #tpu.dot_dimension_numbers<[1], [0], [0], [1], [0, 0, 1, 1], [], []>} : vector<16x32xf32>, vector<32x512xf32>, vector<16x512xf32> -> vector<16x512xf32>
    %c0_12 = arith.constant 0 : index
    %c0_13 = arith.constant 0 : index
    %14 = vector.load %arg4[%c0_12, %c0_13] : memref<1x512xf32, #tpu.memory_space<vmem>>, vector<1x512xf32>
    %15 = vector.broadcast %14 : vector<1x512xf32> to vector<16x512xf32>
    %16 = arith.addf %13, %15 : vector<16x512xf32>
    %c0_14 = arith.constant 0 : index
    %c0_15 = arith.constant 0 : index
    %17 = vector.load %arg3[%c0_14, %c0_15] : memref<128x512xf32, #tpu.memory_space<vmem>>, vector<128x512xf32>
    %18 = vector.extract_strided_slice %16 {offsets = [0, 0], sizes = [2, 512], strides = [1, 1]} : vector<16x512xf32> to vector<2x512xf32>
    %cst_16 = arith.constant dense<0.000000e+00> : vector<2x512xf32>
    %19 = tpu.matmul %9, %17, %cst_16 {dimension_numbers = #tpu.dot_dimension_numbers<[1], [0], [0], [1], [0, 0, 1, 1], [], []>} : vector<2x128xf32>, vector<128x512xf32>, vector<2x512xf32> -> vector<2x512xf32>
    %20 = arith.addf %18, %19 : vector<2x512xf32>
    %21 = vector.extract_strided_slice %20 {offsets = [0, 0], sizes = [2, 128], strides = [1, 1]} : vector<2x512xf32> to vector<2x128xf32>
    %22 = arith.negf %21 : vector<2x128xf32>
    %23 = math.exp %22 : vector<2x128xf32>
    %cst_17 = arith.constant 1.000000e+00 : f32
    %24 = vector.broadcast %cst_17 : f32 to vector<2x128xf32>
    %25 = arith.addf %24, %23 : vector<2x128xf32>
    %26 = arith.divf %24, %25 : vector<2x128xf32>
    %27 = vector.extract_strided_slice %20 {offsets = [0, 128], sizes = [2, 128], strides = [1, 1]} : vector<2x512xf32> to vector<2x128xf32>
    %28 = arith.negf %27 : vector<2x128xf32>
    %29 = math.exp %28 : vector<2x128xf32>
    %cst_18 = arith.constant 1.000000e+00 : f32
    %30 = vector.broadcast %cst_18 : f32 to vector<2x128xf32>
    %31 = arith.addf %30, %29 : vector<2x128xf32>
    %32 = arith.divf %30, %31 : vector<2x128xf32>
    %33 = vector.extract_strided_slice %20 {offsets = [0, 256], sizes = [2, 128], strides = [1, 1]} : vector<2x512xf32> to vector<2x128xf32>
    %34 = math.tanh %33 : vector<2x128xf32>
    %35 = vector.extract_strided_slice %20 {offsets = [0, 384], sizes = [2, 128], strides = [1, 1]} : vector<2x512xf32> to vector<2x128xf32>
    %36 = arith.negf %35 : vector<2x128xf32>
    %37 = math.exp %36 : vector<2x128xf32>
    %cst_19 = arith.constant 1.000000e+00 : f32
    %38 = vector.broadcast %cst_19 : f32 to vector<2x128xf32>
    %39 = arith.addf %38, %37 : vector<2x128xf32>
    %40 = arith.divf %38, %39 : vector<2x128xf32>
    %41 = arith.mulf %32, %11 : vector<2x128xf32>
    %42 = arith.mulf %26, %34 : vector<2x128xf32>
    %43 = arith.addf %41, %42 : vector<2x128xf32>
    %44 = math.tanh %43 : vector<2x128xf32>
    %45 = arith.mulf %40, %44 : vector<2x128xf32>
    %46 = vector.extract_strided_slice %16 {offsets = [2, 0], sizes = [2, 512], strides = [1, 1]} : vector<16x512xf32> to vector<2x512xf32>
    %cst_20 = arith.constant dense<0.000000e+00> : vector<2x512xf32>
    %47 = tpu.matmul %45, %17, %cst_20 {dimension_numbers = #tpu.dot_dimension_numbers<[1], [0], [0], [1], [0, 0, 1, 1], [], []>} : vector<2x128xf32>, vector<128x512xf32>, vector<2x512xf32> -> vector<2x512xf32>
    %48 = arith.addf %46, %47 : vector<2x512xf32>
    %49 = vector.extract_strided_slice %48 {offsets = [0, 0], sizes = [2, 128], strides = [1, 1]} : vector<2x512xf32> to vector<2x128xf32>
    %50 = arith.negf %49 : vector<2x128xf32>
    %51 = math.exp %50 : vector<2x128xf32>
    %cst_21 = arith.constant 1.000000e+00 : f32
    %52 = vector.broadcast %cst_21 : f32 to vector<2x128xf32>
    %53 = arith.addf %52, %51 : vector<2x128xf32>
    %54 = arith.divf %52, %53 : vector<2x128xf32>
    %55 = vector.extract_strided_slice %48 {offsets = [0, 128], sizes = [2, 128], strides = [1, 1]} : vector<2x512xf32> to vector<2x128xf32>
    %56 = arith.negf %55 : vector<2x128xf32>
    %57 = math.exp %56 : vector<2x128xf32>
    %cst_22 = arith.constant 1.000000e+00 : f32
    %58 = vector.broadcast %cst_22 : f32 to vector<2x128xf32>
    %59 = arith.addf %58, %57 : vector<2x128xf32>
    %60 = arith.divf %58, %59 : vector<2x128xf32>
    %61 = vector.extract_strided_slice %48 {offsets = [0, 256], sizes = [2, 128], strides = [1, 1]} : vector<2x512xf32> to vector<2x128xf32>
    %62 = math.tanh %61 : vector<2x128xf32>
    %63 = vector.extract_strided_slice %48 {offsets = [0, 384], sizes = [2, 128], strides = [1, 1]} : vector<2x512xf32> to vector<2x128xf32>
    %64 = arith.negf %63 : vector<2x128xf32>
    %65 = math.exp %64 : vector<2x128xf32>
    %cst_23 = arith.constant 1.000000e+00 : f32
    %66 = vector.broadcast %cst_23 : f32 to vector<2x128xf32>
    %67 = arith.addf %66, %65 : vector<2x128xf32>
    %68 = arith.divf %66, %67 : vector<2x128xf32>
    %69 = arith.mulf %60, %43 : vector<2x128xf32>
    %70 = arith.mulf %54, %62 : vector<2x128xf32>
    %71 = arith.addf %69, %70 : vector<2x128xf32>
    %72 = math.tanh %71 : vector<2x128xf32>
    %73 = arith.mulf %68, %72 : vector<2x128xf32>
    %74 = vector.extract_strided_slice %16 {offsets = [4, 0], sizes = [2, 512], strides = [1, 1]} : vector<16x512xf32> to vector<2x512xf32>
    %cst_24 = arith.constant dense<0.000000e+00> : vector<2x512xf32>
    %75 = tpu.matmul %73, %17, %cst_24 {dimension_numbers = #tpu.dot_dimension_numbers<[1], [0], [0], [1], [0, 0, 1, 1], [], []>} : vector<2x128xf32>, vector<128x512xf32>, vector<2x512xf32> -> vector<2x512xf32>
    %76 = arith.addf %74, %75 : vector<2x512xf32>
    %77 = vector.extract_strided_slice %76 {offsets = [0, 0], sizes = [2, 128], strides = [1, 1]} : vector<2x512xf32> to vector<2x128xf32>
    %78 = arith.negf %77 : vector<2x128xf32>
    %79 = math.exp %78 : vector<2x128xf32>
    %cst_25 = arith.constant 1.000000e+00 : f32
    %80 = vector.broadcast %cst_25 : f32 to vector<2x128xf32>
    %81 = arith.addf %80, %79 : vector<2x128xf32>
    %82 = arith.divf %80, %81 : vector<2x128xf32>
    %83 = vector.extract_strided_slice %76 {offsets = [0, 128], sizes = [2, 128], strides = [1, 1]} : vector<2x512xf32> to vector<2x128xf32>
    %84 = arith.negf %83 : vector<2x128xf32>
    %85 = math.exp %84 : vector<2x128xf32>
    %cst_26 = arith.constant 1.000000e+00 : f32
    %86 = vector.broadcast %cst_26 : f32 to vector<2x128xf32>
    %87 = arith.addf %86, %85 : vector<2x128xf32>
    %88 = arith.divf %86, %87 : vector<2x128xf32>
    %89 = vector.extract_strided_slice %76 {offsets = [0, 256], sizes = [2, 128], strides = [1, 1]} : vector<2x512xf32> to vector<2x128xf32>
    %90 = math.tanh %89 : vector<2x128xf32>
    %91 = vector.extract_strided_slice %76 {offsets = [0, 384], sizes = [2, 128], strides = [1, 1]} : vector<2x512xf32> to vector<2x128xf32>
    %92 = arith.negf %91 : vector<2x128xf32>
    %93 = math.exp %92 : vector<2x128xf32>
    %cst_27 = arith.constant 1.000000e+00 : f32
    %94 = vector.broadcast %cst_27 : f32 to vector<2x128xf32>
    %95 = arith.addf %94, %93 : vector<2x128xf32>
    %96 = arith.divf %94, %95 : vector<2x128xf32>
    %97 = arith.mulf %88, %71 : vector<2x128xf32>
    %98 = arith.mulf %82, %90 : vector<2x128xf32>
    %99 = arith.addf %97, %98 : vector<2x128xf32>
    %100 = math.tanh %99 : vector<2x128xf32>
    %101 = arith.mulf %96, %100 : vector<2x128xf32>
    %102 = vector.extract_strided_slice %16 {offsets = [6, 0], sizes = [2, 512], strides = [1, 1]} : vector<16x512xf32> to vector<2x512xf32>
    %cst_28 = arith.constant dense<0.000000e+00> : vector<2x512xf32>
    %103 = tpu.matmul %101, %17, %cst_28 {dimension_numbers = #tpu.dot_dimension_numbers<[1], [0], [0], [1], [0, 0, 1, 1], [], []>} : vector<2x128xf32>, vector<128x512xf32>, vector<2x512xf32> -> vector<2x512xf32>
    %104 = arith.addf %102, %103 : vector<2x512xf32>
    %105 = vector.extract_strided_slice %104 {offsets = [0, 0], sizes = [2, 128], strides = [1, 1]} : vector<2x512xf32> to vector<2x128xf32>
    %106 = arith.negf %105 : vector<2x128xf32>
    %107 = math.exp %106 : vector<2x128xf32>
    %cst_29 = arith.constant 1.000000e+00 : f32
    %108 = vector.broadcast %cst_29 : f32 to vector<2x128xf32>
    %109 = arith.addf %108, %107 : vector<2x128xf32>
    %110 = arith.divf %108, %109 : vector<2x128xf32>
    %111 = vector.extract_strided_slice %104 {offsets = [0, 128], sizes = [2, 128], strides = [1, 1]} : vector<2x512xf32> to vector<2x128xf32>
    %112 = arith.negf %111 : vector<2x128xf32>
    %113 = math.exp %112 : vector<2x128xf32>
    %cst_30 = arith.constant 1.000000e+00 : f32
    %114 = vector.broadcast %cst_30 : f32 to vector<2x128xf32>
    %115 = arith.addf %114, %113 : vector<2x128xf32>
    %116 = arith.divf %114, %115 : vector<2x128xf32>
    %117 = vector.extract_strided_slice %104 {offsets = [0, 256], sizes = [2, 128], strides = [1, 1]} : vector<2x512xf32> to vector<2x128xf32>
    %118 = math.tanh %117 : vector<2x128xf32>
    %119 = vector.extract_strided_slice %104 {offsets = [0, 384], sizes = [2, 128], strides = [1, 1]} : vector<2x512xf32> to vector<2x128xf32>
    %120 = arith.negf %119 : vector<2x128xf32>
    %121 = math.exp %120 : vector<2x128xf32>
    %cst_31 = arith.constant 1.000000e+00 : f32
    %122 = vector.broadcast %cst_31 : f32 to vector<2x128xf32>
    %123 = arith.addf %122, %121 : vector<2x128xf32>
    %124 = arith.divf %122, %123 : vector<2x128xf32>
    %125 = arith.mulf %116, %99 : vector<2x128xf32>
    %126 = arith.mulf %110, %118 : vector<2x128xf32>
    %127 = arith.addf %125, %126 : vector<2x128xf32>
    %128 = math.tanh %127 : vector<2x128xf32>
    %129 = arith.mulf %124, %128 : vector<2x128xf32>
    %130 = vector.extract_strided_slice %16 {offsets = [8, 0], sizes = [2, 512], strides = [1, 1]} : vector<16x512xf32> to vector<2x512xf32>
    %cst_32 = arith.constant dense<0.000000e+00> : vector<2x512xf32>
    %131 = tpu.matmul %129, %17, %cst_32 {dimension_numbers = #tpu.dot_dimension_numbers<[1], [0], [0], [1], [0, 0, 1, 1], [], []>} : vector<2x128xf32>, vector<128x512xf32>, vector<2x512xf32> -> vector<2x512xf32>
    %132 = arith.addf %130, %131 : vector<2x512xf32>
    %133 = vector.extract_strided_slice %132 {offsets = [0, 0], sizes = [2, 128], strides = [1, 1]} : vector<2x512xf32> to vector<2x128xf32>
    %134 = arith.negf %133 : vector<2x128xf32>
    %135 = math.exp %134 : vector<2x128xf32>
    %cst_33 = arith.constant 1.000000e+00 : f32
    %136 = vector.broadcast %cst_33 : f32 to vector<2x128xf32>
    %137 = arith.addf %136, %135 : vector<2x128xf32>
    %138 = arith.divf %136, %137 : vector<2x128xf32>
    %139 = vector.extract_strided_slice %132 {offsets = [0, 128], sizes = [2, 128], strides = [1, 1]} : vector<2x512xf32> to vector<2x128xf32>
    %140 = arith.negf %139 : vector<2x128xf32>
    %141 = math.exp %140 : vector<2x128xf32>
    %cst_34 = arith.constant 1.000000e+00 : f32
    %142 = vector.broadcast %cst_34 : f32 to vector<2x128xf32>
    %143 = arith.addf %142, %141 : vector<2x128xf32>
    %144 = arith.divf %142, %143 : vector<2x128xf32>
    %145 = vector.extract_strided_slice %132 {offsets = [0, 256], sizes = [2, 128], strides = [1, 1]} : vector<2x512xf32> to vector<2x128xf32>
    %146 = math.tanh %145 : vector<2x128xf32>
    %147 = vector.extract_strided_slice %132 {offsets = [0, 384], sizes = [2, 128], strides = [1, 1]} : vector<2x512xf32> to vector<2x128xf32>
    %148 = arith.negf %147 : vector<2x128xf32>
    %149 = math.exp %148 : vector<2x128xf32>
    %cst_35 = arith.constant 1.000000e+00 : f32
    %150 = vector.broadcast %cst_35 : f32 to vector<2x128xf32>
    %151 = arith.addf %150, %149 : vector<2x128xf32>
    %152 = arith.divf %150, %151 : vector<2x128xf32>
    %153 = arith.mulf %144, %127 : vector<2x128xf32>
    %154 = arith.mulf %138, %146 : vector<2x128xf32>
    %155 = arith.addf %153, %154 : vector<2x128xf32>
    %156 = math.tanh %155 : vector<2x128xf32>
    %157 = arith.mulf %152, %156 : vector<2x128xf32>
    %158 = vector.extract_strided_slice %16 {offsets = [10, 0], sizes = [2, 512], strides = [1, 1]} : vector<16x512xf32> to vector<2x512xf32>
    %cst_36 = arith.constant dense<0.000000e+00> : vector<2x512xf32>
    %159 = tpu.matmul %157, %17, %cst_36 {dimension_numbers = #tpu.dot_dimension_numbers<[1], [0], [0], [1], [0, 0, 1, 1], [], []>} : vector<2x128xf32>, vector<128x512xf32>, vector<2x512xf32> -> vector<2x512xf32>
    %160 = arith.addf %158, %159 : vector<2x512xf32>
    %161 = vector.extract_strided_slice %160 {offsets = [0, 0], sizes = [2, 128], strides = [1, 1]} : vector<2x512xf32> to vector<2x128xf32>
    %162 = arith.negf %161 : vector<2x128xf32>
    %163 = math.exp %162 : vector<2x128xf32>
    %cst_37 = arith.constant 1.000000e+00 : f32
    %164 = vector.broadcast %cst_37 : f32 to vector<2x128xf32>
    %165 = arith.addf %164, %163 : vector<2x128xf32>
    %166 = arith.divf %164, %165 : vector<2x128xf32>
    %167 = vector.extract_strided_slice %160 {offsets = [0, 128], sizes = [2, 128], strides = [1, 1]} : vector<2x512xf32> to vector<2x128xf32>
    %168 = arith.negf %167 : vector<2x128xf32>
    %169 = math.exp %168 : vector<2x128xf32>
    %cst_38 = arith.constant 1.000000e+00 : f32
    %170 = vector.broadcast %cst_38 : f32 to vector<2x128xf32>
    %171 = arith.addf %170, %169 : vector<2x128xf32>
    %172 = arith.divf %170, %171 : vector<2x128xf32>
    %173 = vector.extract_strided_slice %160 {offsets = [0, 256], sizes = [2, 128], strides = [1, 1]} : vector<2x512xf32> to vector<2x128xf32>
    %174 = math.tanh %173 : vector<2x128xf32>
    %175 = vector.extract_strided_slice %160 {offsets = [0, 384], sizes = [2, 128], strides = [1, 1]} : vector<2x512xf32> to vector<2x128xf32>
    %176 = arith.negf %175 : vector<2x128xf32>
    %177 = math.exp %176 : vector<2x128xf32>
    %cst_39 = arith.constant 1.000000e+00 : f32
    %178 = vector.broadcast %cst_39 : f32 to vector<2x128xf32>
    %179 = arith.addf %178, %177 : vector<2x128xf32>
    %180 = arith.divf %178, %179 : vector<2x128xf32>
    %181 = arith.mulf %172, %155 : vector<2x128xf32>
    %182 = arith.mulf %166, %174 : vector<2x128xf32>
    %183 = arith.addf %181, %182 : vector<2x128xf32>
    %184 = math.tanh %183 : vector<2x128xf32>
    %185 = arith.mulf %180, %184 : vector<2x128xf32>
    %186 = vector.extract_strided_slice %16 {offsets = [12, 0], sizes = [2, 512], strides = [1, 1]} : vector<16x512xf32> to vector<2x512xf32>
    %cst_40 = arith.constant dense<0.000000e+00> : vector<2x512xf32>
    %187 = tpu.matmul %185, %17, %cst_40 {dimension_numbers = #tpu.dot_dimension_numbers<[1], [0], [0], [1], [0, 0, 1, 1], [], []>} : vector<2x128xf32>, vector<128x512xf32>, vector<2x512xf32> -> vector<2x512xf32>
    %188 = arith.addf %186, %187 : vector<2x512xf32>
    %189 = vector.extract_strided_slice %188 {offsets = [0, 0], sizes = [2, 128], strides = [1, 1]} : vector<2x512xf32> to vector<2x128xf32>
    %190 = arith.negf %189 : vector<2x128xf32>
    %191 = math.exp %190 : vector<2x128xf32>
    %cst_41 = arith.constant 1.000000e+00 : f32
    %192 = vector.broadcast %cst_41 : f32 to vector<2x128xf32>
    %193 = arith.addf %192, %191 : vector<2x128xf32>
    %194 = arith.divf %192, %193 : vector<2x128xf32>
    %195 = vector.extract_strided_slice %188 {offsets = [0, 128], sizes = [2, 128], strides = [1, 1]} : vector<2x512xf32> to vector<2x128xf32>
    %196 = arith.negf %195 : vector<2x128xf32>
    %197 = math.exp %196 : vector<2x128xf32>
    %cst_42 = arith.constant 1.000000e+00 : f32
    %198 = vector.broadcast %cst_42 : f32 to vector<2x128xf32>
    %199 = arith.addf %198, %197 : vector<2x128xf32>
    %200 = arith.divf %198, %199 : vector<2x128xf32>
    %201 = vector.extract_strided_slice %188 {offsets = [0, 256], sizes = [2, 128], strides = [1, 1]} : vector<2x512xf32> to vector<2x128xf32>
    %202 = math.tanh %201 : vector<2x128xf32>
    %203 = vector.extract_strided_slice %188 {offsets = [0, 384], sizes = [2, 128], strides = [1, 1]} : vector<2x512xf32> to vector<2x128xf32>
    %204 = arith.negf %203 : vector<2x128xf32>
    %205 = math.exp %204 : vector<2x128xf32>
    %cst_43 = arith.constant 1.000000e+00 : f32
    %206 = vector.broadcast %cst_43 : f32 to vector<2x128xf32>
    %207 = arith.addf %206, %205 : vector<2x128xf32>
    %208 = arith.divf %206, %207 : vector<2x128xf32>
    %209 = arith.mulf %200, %183 : vector<2x128xf32>
    %210 = arith.mulf %194, %202 : vector<2x128xf32>
    %211 = arith.addf %209, %210 : vector<2x128xf32>
    %212 = math.tanh %211 : vector<2x128xf32>
    %213 = arith.mulf %208, %212 : vector<2x128xf32>
    %214 = vector.extract_strided_slice %16 {offsets = [14, 0], sizes = [2, 512], strides = [1, 1]} : vector<16x512xf32> to vector<2x512xf32>
    %cst_44 = arith.constant dense<0.000000e+00> : vector<2x512xf32>
    %215 = tpu.matmul %213, %17, %cst_44 {dimension_numbers = #tpu.dot_dimension_numbers<[1], [0], [0], [1], [0, 0, 1, 1], [], []>} : vector<2x128xf32>, vector<128x512xf32>, vector<2x512xf32> -> vector<2x512xf32>
    %216 = arith.addf %214, %215 : vector<2x512xf32>
    %217 = vector.extract_strided_slice %216 {offsets = [0, 0], sizes = [2, 128], strides = [1, 1]} : vector<2x512xf32> to vector<2x128xf32>
    %218 = arith.negf %217 : vector<2x128xf32>
    %219 = math.exp %218 : vector<2x128xf32>
    %cst_45 = arith.constant 1.000000e+00 : f32
    %220 = vector.broadcast %cst_45 : f32 to vector<2x128xf32>
    %221 = arith.addf %220, %219 : vector<2x128xf32>
    %222 = arith.divf %220, %221 : vector<2x128xf32>
    %223 = vector.extract_strided_slice %216 {offsets = [0, 128], sizes = [2, 128], strides = [1, 1]} : vector<2x512xf32> to vector<2x128xf32>
    %224 = arith.negf %223 : vector<2x128xf32>
    %225 = math.exp %224 : vector<2x128xf32>
    %cst_46 = arith.constant 1.000000e+00 : f32
    %226 = vector.broadcast %cst_46 : f32 to vector<2x128xf32>
    %227 = arith.addf %226, %225 : vector<2x128xf32>
    %228 = arith.divf %226, %227 : vector<2x128xf32>
    %229 = vector.extract_strided_slice %216 {offsets = [0, 256], sizes = [2, 128], strides = [1, 1]} : vector<2x512xf32> to vector<2x128xf32>
    %230 = math.tanh %229 : vector<2x128xf32>
    %231 = vector.extract_strided_slice %216 {offsets = [0, 384], sizes = [2, 128], strides = [1, 1]} : vector<2x512xf32> to vector<2x128xf32>
    %232 = arith.negf %231 : vector<2x128xf32>
    %233 = math.exp %232 : vector<2x128xf32>
    %cst_47 = arith.constant 1.000000e+00 : f32
    %234 = vector.broadcast %cst_47 : f32 to vector<2x128xf32>
    %235 = arith.addf %234, %233 : vector<2x128xf32>
    %236 = arith.divf %234, %235 : vector<2x128xf32>
    %237 = arith.mulf %228, %211 : vector<2x128xf32>
    %238 = arith.mulf %222, %230 : vector<2x128xf32>
    %239 = arith.addf %237, %238 : vector<2x128xf32>
    %240 = math.tanh %239 : vector<2x128xf32>
    %241 = arith.mulf %236, %240 : vector<2x128xf32>
    %242 = tpu.concatenate %45, %73, %101, %129, %157, %185, %213, %241 in 0 : vector<2x128xf32>, vector<2x128xf32>, vector<2x128xf32>, vector<2x128xf32>, vector<2x128xf32>, vector<2x128xf32>, vector<2x128xf32>, vector<2x128xf32> -> vector<16x128xf32>
    %c1 = arith.constant 1 : index
    %c0_48 = arith.constant 0 : index
    %c0_49 = arith.constant 0 : index
    %243 = vector.load %arg10[%c1, %c0_48, %c0_49] : memref<2x2x128xf32, #tpu.memory_space<vmem>>, vector<1x2x128xf32>
    %244 = vector.shape_cast %243 : vector<1x2x128xf32> to vector<2x128xf32>
    %c1_50 = arith.constant 1 : index
    %c0_51 = arith.constant 0 : index
    %c0_52 = arith.constant 0 : index
    %245 = vector.load %arg11[%c1_50, %c0_51, %c0_52] : memref<2x2x128xf32, #tpu.memory_space<vmem>>, vector<1x2x128xf32>
    %246 = vector.shape_cast %245 : vector<1x2x128xf32> to vector<2x128xf32>
    %c0_53 = arith.constant 0 : index
    %c0_54 = arith.constant 0 : index
    %247 = vector.load %arg5[%c0_53, %c0_54] : memref<128x512xf32, #tpu.memory_space<vmem>>, vector<128x512xf32>
    %cst_55 = arith.constant dense<0.000000e+00> : vector<16x512xf32>
    %248 = tpu.matmul %242, %247, %cst_55 {dimension_numbers = #tpu.dot_dimension_numbers<[1], [0], [0], [1], [0, 0, 1, 1], [], []>} : vector<16x128xf32>, vector<128x512xf32>, vector<16x512xf32> -> vector<16x512xf32>
    %c0_56 = arith.constant 0 : index
    %c0_57 = arith.constant 0 : index
    %249 = vector.load %arg7[%c0_56, %c0_57] : memref<1x512xf32, #tpu.memory_space<vmem>>, vector<1x512xf32>
    %250 = vector.broadcast %249 : vector<1x512xf32> to vector<16x512xf32>
    %251 = arith.addf %248, %250 : vector<16x512xf32>
    %c0_58 = arith.constant 0 : index
    %c0_59 = arith.constant 0 : index
    %252 = vector.load %arg6[%c0_58, %c0_59] : memref<128x512xf32, #tpu.memory_space<vmem>>, vector<128x512xf32>
    %253 = vector.extract_strided_slice %251 {offsets = [0, 0], sizes = [2, 512], strides = [1, 1]} : vector<16x512xf32> to vector<2x512xf32>
    %cst_60 = arith.constant dense<0.000000e+00> : vector<2x512xf32>
    %254 = tpu.matmul %244, %252, %cst_60 {dimension_numbers = #tpu.dot_dimension_numbers<[1], [0], [0], [1], [0, 0, 1, 1], [], []>} : vector<2x128xf32>, vector<128x512xf32>, vector<2x512xf32> -> vector<2x512xf32>
    %255 = arith.addf %253, %254 : vector<2x512xf32>
    %256 = vector.extract_strided_slice %255 {offsets = [0, 0], sizes = [2, 128], strides = [1, 1]} : vector<2x512xf32> to vector<2x128xf32>
    %257 = arith.negf %256 : vector<2x128xf32>
    %258 = math.exp %257 : vector<2x128xf32>
    %cst_61 = arith.constant 1.000000e+00 : f32
    %259 = vector.broadcast %cst_61 : f32 to vector<2x128xf32>
    %260 = arith.addf %259, %258 : vector<2x128xf32>
    %261 = arith.divf %259, %260 : vector<2x128xf32>
    %262 = vector.extract_strided_slice %255 {offsets = [0, 128], sizes = [2, 128], strides = [1, 1]} : vector<2x512xf32> to vector<2x128xf32>
    %263 = arith.negf %262 : vector<2x128xf32>
    %264 = math.exp %263 : vector<2x128xf32>
    %cst_62 = arith.constant 1.000000e+00 : f32
    %265 = vector.broadcast %cst_62 : f32 to vector<2x128xf32>
    %266 = arith.addf %265, %264 : vector<2x128xf32>
    %267 = arith.divf %265, %266 : vector<2x128xf32>
    %268 = vector.extract_strided_slice %255 {offsets = [0, 256], sizes = [2, 128], strides = [1, 1]} : vector<2x512xf32> to vector<2x128xf32>
    %269 = math.tanh %268 : vector<2x128xf32>
    %270 = vector.extract_strided_slice %255 {offsets = [0, 384], sizes = [2, 128], strides = [1, 1]} : vector<2x512xf32> to vector<2x128xf32>
    %271 = arith.negf %270 : vector<2x128xf32>
    %272 = math.exp %271 : vector<2x128xf32>
    %cst_63 = arith.constant 1.000000e+00 : f32
    %273 = vector.broadcast %cst_63 : f32 to vector<2x128xf32>
    %274 = arith.addf %273, %272 : vector<2x128xf32>
    %275 = arith.divf %273, %274 : vector<2x128xf32>
    %276 = arith.mulf %267, %246 : vector<2x128xf32>
    %277 = arith.mulf %261, %269 : vector<2x128xf32>
    %278 = arith.addf %276, %277 : vector<2x128xf32>
    %279 = math.tanh %278 : vector<2x128xf32>
    %280 = arith.mulf %275, %279 : vector<2x128xf32>
    %281 = vector.extract_strided_slice %251 {offsets = [2, 0], sizes = [2, 512], strides = [1, 1]} : vector<16x512xf32> to vector<2x512xf32>
    %cst_64 = arith.constant dense<0.000000e+00> : vector<2x512xf32>
    %282 = tpu.matmul %280, %252, %cst_64 {dimension_numbers = #tpu.dot_dimension_numbers<[1], [0], [0], [1], [0, 0, 1, 1], [], []>} : vector<2x128xf32>, vector<128x512xf32>, vector<2x512xf32> -> vector<2x512xf32>
    %283 = arith.addf %281, %282 : vector<2x512xf32>
    %284 = vector.extract_strided_slice %283 {offsets = [0, 0], sizes = [2, 128], strides = [1, 1]} : vector<2x512xf32> to vector<2x128xf32>
    %285 = arith.negf %284 : vector<2x128xf32>
    %286 = math.exp %285 : vector<2x128xf32>
    %cst_65 = arith.constant 1.000000e+00 : f32
    %287 = vector.broadcast %cst_65 : f32 to vector<2x128xf32>
    %288 = arith.addf %287, %286 : vector<2x128xf32>
    %289 = arith.divf %287, %288 : vector<2x128xf32>
    %290 = vector.extract_strided_slice %283 {offsets = [0, 128], sizes = [2, 128], strides = [1, 1]} : vector<2x512xf32> to vector<2x128xf32>
    %291 = arith.negf %290 : vector<2x128xf32>
    %292 = math.exp %291 : vector<2x128xf32>
    %cst_66 = arith.constant 1.000000e+00 : f32
    %293 = vector.broadcast %cst_66 : f32 to vector<2x128xf32>
    %294 = arith.addf %293, %292 : vector<2x128xf32>
    %295 = arith.divf %293, %294 : vector<2x128xf32>
    %296 = vector.extract_strided_slice %283 {offsets = [0, 256], sizes = [2, 128], strides = [1, 1]} : vector<2x512xf32> to vector<2x128xf32>
    %297 = math.tanh %296 : vector<2x128xf32>
    %298 = vector.extract_strided_slice %283 {offsets = [0, 384], sizes = [2, 128], strides = [1, 1]} : vector<2x512xf32> to vector<2x128xf32>
    %299 = arith.negf %298 : vector<2x128xf32>
    %300 = math.exp %299 : vector<2x128xf32>
    %cst_67 = arith.constant 1.000000e+00 : f32
    %301 = vector.broadcast %cst_67 : f32 to vector<2x128xf32>
    %302 = arith.addf %301, %300 : vector<2x128xf32>
    %303 = arith.divf %301, %302 : vector<2x128xf32>
    %304 = arith.mulf %295, %278 : vector<2x128xf32>
    %305 = arith.mulf %289, %297 : vector<2x128xf32>
    %306 = arith.addf %304, %305 : vector<2x128xf32>
    %307 = math.tanh %306 : vector<2x128xf32>
    %308 = arith.mulf %303, %307 : vector<2x128xf32>
    %309 = vector.extract_strided_slice %251 {offsets = [4, 0], sizes = [2, 512], strides = [1, 1]} : vector<16x512xf32> to vector<2x512xf32>
    %cst_68 = arith.constant dense<0.000000e+00> : vector<2x512xf32>
    %310 = tpu.matmul %308, %252, %cst_68 {dimension_numbers = #tpu.dot_dimension_numbers<[1], [0], [0], [1], [0, 0, 1, 1], [], []>} : vector<2x128xf32>, vector<128x512xf32>, vector<2x512xf32> -> vector<2x512xf32>
    %311 = arith.addf %309, %310 : vector<2x512xf32>
    %312 = vector.extract_strided_slice %311 {offsets = [0, 0], sizes = [2, 128], strides = [1, 1]} : vector<2x512xf32> to vector<2x128xf32>
    %313 = arith.negf %312 : vector<2x128xf32>
    %314 = math.exp %313 : vector<2x128xf32>
    %cst_69 = arith.constant 1.000000e+00 : f32
    %315 = vector.broadcast %cst_69 : f32 to vector<2x128xf32>
    %316 = arith.addf %315, %314 : vector<2x128xf32>
    %317 = arith.divf %315, %316 : vector<2x128xf32>
    %318 = vector.extract_strided_slice %311 {offsets = [0, 128], sizes = [2, 128], strides = [1, 1]} : vector<2x512xf32> to vector<2x128xf32>
    %319 = arith.negf %318 : vector<2x128xf32>
    %320 = math.exp %319 : vector<2x128xf32>
    %cst_70 = arith.constant 1.000000e+00 : f32
    %321 = vector.broadcast %cst_70 : f32 to vector<2x128xf32>
    %322 = arith.addf %321, %320 : vector<2x128xf32>
    %323 = arith.divf %321, %322 : vector<2x128xf32>
    %324 = vector.extract_strided_slice %311 {offsets = [0, 256], sizes = [2, 128], strides = [1, 1]} : vector<2x512xf32> to vector<2x128xf32>
    %325 = math.tanh %324 : vector<2x128xf32>
    %326 = vector.extract_strided_slice %311 {offsets = [0, 384], sizes = [2, 128], strides = [1, 1]} : vector<2x512xf32> to vector<2x128xf32>
    %327 = arith.negf %326 : vector<2x128xf32>
    %328 = math.exp %327 : vector<2x128xf32>
    %cst_71 = arith.constant 1.000000e+00 : f32
    %329 = vector.broadcast %cst_71 : f32 to vector<2x128xf32>
    %330 = arith.addf %329, %328 : vector<2x128xf32>
    %331 = arith.divf %329, %330 : vector<2x128xf32>
    %332 = arith.mulf %323, %306 : vector<2x128xf32>
    %333 = arith.mulf %317, %325 : vector<2x128xf32>
    %334 = arith.addf %332, %333 : vector<2x128xf32>
    %335 = math.tanh %334 : vector<2x128xf32>
    %336 = arith.mulf %331, %335 : vector<2x128xf32>
    %337 = vector.extract_strided_slice %251 {offsets = [6, 0], sizes = [2, 512], strides = [1, 1]} : vector<16x512xf32> to vector<2x512xf32>
    %cst_72 = arith.constant dense<0.000000e+00> : vector<2x512xf32>
    %338 = tpu.matmul %336, %252, %cst_72 {dimension_numbers = #tpu.dot_dimension_numbers<[1], [0], [0], [1], [0, 0, 1, 1], [], []>} : vector<2x128xf32>, vector<128x512xf32>, vector<2x512xf32> -> vector<2x512xf32>
    %339 = arith.addf %337, %338 : vector<2x512xf32>
    %340 = vector.extract_strided_slice %339 {offsets = [0, 0], sizes = [2, 128], strides = [1, 1]} : vector<2x512xf32> to vector<2x128xf32>
    %341 = arith.negf %340 : vector<2x128xf32>
    %342 = math.exp %341 : vector<2x128xf32>
    %cst_73 = arith.constant 1.000000e+00 : f32
    %343 = vector.broadcast %cst_73 : f32 to vector<2x128xf32>
    %344 = arith.addf %343, %342 : vector<2x128xf32>
    %345 = arith.divf %343, %344 : vector<2x128xf32>
    %346 = vector.extract_strided_slice %339 {offsets = [0, 128], sizes = [2, 128], strides = [1, 1]} : vector<2x512xf32> to vector<2x128xf32>
    %347 = arith.negf %346 : vector<2x128xf32>
    %348 = math.exp %347 : vector<2x128xf32>
    %cst_74 = arith.constant 1.000000e+00 : f32
    %349 = vector.broadcast %cst_74 : f32 to vector<2x128xf32>
    %350 = arith.addf %349, %348 : vector<2x128xf32>
    %351 = arith.divf %349, %350 : vector<2x128xf32>
    %352 = vector.extract_strided_slice %339 {offsets = [0, 256], sizes = [2, 128], strides = [1, 1]} : vector<2x512xf32> to vector<2x128xf32>
    %353 = math.tanh %352 : vector<2x128xf32>
    %354 = vector.extract_strided_slice %339 {offsets = [0, 384], sizes = [2, 128], strides = [1, 1]} : vector<2x512xf32> to vector<2x128xf32>
    %355 = arith.negf %354 : vector<2x128xf32>
    %356 = math.exp %355 : vector<2x128xf32>
    %cst_75 = arith.constant 1.000000e+00 : f32
    %357 = vector.broadcast %cst_75 : f32 to vector<2x128xf32>
    %358 = arith.addf %357, %356 : vector<2x128xf32>
    %359 = arith.divf %357, %358 : vector<2x128xf32>
    %360 = arith.mulf %351, %334 : vector<2x128xf32>
    %361 = arith.mulf %345, %353 : vector<2x128xf32>
    %362 = arith.addf %360, %361 : vector<2x128xf32>
    %363 = math.tanh %362 : vector<2x128xf32>
    %364 = arith.mulf %359, %363 : vector<2x128xf32>
    %365 = vector.extract_strided_slice %251 {offsets = [8, 0], sizes = [2, 512], strides = [1, 1]} : vector<16x512xf32> to vector<2x512xf32>
    %cst_76 = arith.constant dense<0.000000e+00> : vector<2x512xf32>
    %366 = tpu.matmul %364, %252, %cst_76 {dimension_numbers = #tpu.dot_dimension_numbers<[1], [0], [0], [1], [0, 0, 1, 1], [], []>} : vector<2x128xf32>, vector<128x512xf32>, vector<2x512xf32> -> vector<2x512xf32>
    %367 = arith.addf %365, %366 : vector<2x512xf32>
    %368 = vector.extract_strided_slice %367 {offsets = [0, 0], sizes = [2, 128], strides = [1, 1]} : vector<2x512xf32> to vector<2x128xf32>
    %369 = arith.negf %368 : vector<2x128xf32>
    %370 = math.exp %369 : vector<2x128xf32>
    %cst_77 = arith.constant 1.000000e+00 : f32
    %371 = vector.broadcast %cst_77 : f32 to vector<2x128xf32>
    %372 = arith.addf %371, %370 : vector<2x128xf32>
    %373 = arith.divf %371, %372 : vector<2x128xf32>
    %374 = vector.extract_strided_slice %367 {offsets = [0, 128], sizes = [2, 128], strides = [1, 1]} : vector<2x512xf32> to vector<2x128xf32>
    %375 = arith.negf %374 : vector<2x128xf32>
    %376 = math.exp %375 : vector<2x128xf32>
    %cst_78 = arith.constant 1.000000e+00 : f32
    %377 = vector.broadcast %cst_78 : f32 to vector<2x128xf32>
    %378 = arith.addf %377, %376 : vector<2x128xf32>
    %379 = arith.divf %377, %378 : vector<2x128xf32>
    %380 = vector.extract_strided_slice %367 {offsets = [0, 256], sizes = [2, 128], strides = [1, 1]} : vector<2x512xf32> to vector<2x128xf32>
    %381 = math.tanh %380 : vector<2x128xf32>
    %382 = vector.extract_strided_slice %367 {offsets = [0, 384], sizes = [2, 128], strides = [1, 1]} : vector<2x512xf32> to vector<2x128xf32>
    %383 = arith.negf %382 : vector<2x128xf32>
    %384 = math.exp %383 : vector<2x128xf32>
    %cst_79 = arith.constant 1.000000e+00 : f32
    %385 = vector.broadcast %cst_79 : f32 to vector<2x128xf32>
    %386 = arith.addf %385, %384 : vector<2x128xf32>
    %387 = arith.divf %385, %386 : vector<2x128xf32>
    %388 = arith.mulf %379, %362 : vector<2x128xf32>
    %389 = arith.mulf %373, %381 : vector<2x128xf32>
    %390 = arith.addf %388, %389 : vector<2x128xf32>
    %391 = math.tanh %390 : vector<2x128xf32>
    %392 = arith.mulf %387, %391 : vector<2x128xf32>
    %393 = vector.extract_strided_slice %251 {offsets = [10, 0], sizes = [2, 512], strides = [1, 1]} : vector<16x512xf32> to vector<2x512xf32>
    %cst_80 = arith.constant dense<0.000000e+00> : vector<2x512xf32>
    %394 = tpu.matmul %392, %252, %cst_80 {dimension_numbers = #tpu.dot_dimension_numbers<[1], [0], [0], [1], [0, 0, 1, 1], [], []>} : vector<2x128xf32>, vector<128x512xf32>, vector<2x512xf32> -> vector<2x512xf32>
    %395 = arith.addf %393, %394 : vector<2x512xf32>
    %396 = vector.extract_strided_slice %395 {offsets = [0, 0], sizes = [2, 128], strides = [1, 1]} : vector<2x512xf32> to vector<2x128xf32>
    %397 = arith.negf %396 : vector<2x128xf32>
    %398 = math.exp %397 : vector<2x128xf32>
    %cst_81 = arith.constant 1.000000e+00 : f32
    %399 = vector.broadcast %cst_81 : f32 to vector<2x128xf32>
    %400 = arith.addf %399, %398 : vector<2x128xf32>
    %401 = arith.divf %399, %400 : vector<2x128xf32>
    %402 = vector.extract_strided_slice %395 {offsets = [0, 128], sizes = [2, 128], strides = [1, 1]} : vector<2x512xf32> to vector<2x128xf32>
    %403 = arith.negf %402 : vector<2x128xf32>
    %404 = math.exp %403 : vector<2x128xf32>
    %cst_82 = arith.constant 1.000000e+00 : f32
    %405 = vector.broadcast %cst_82 : f32 to vector<2x128xf32>
    %406 = arith.addf %405, %404 : vector<2x128xf32>
    %407 = arith.divf %405, %406 : vector<2x128xf32>
    %408 = vector.extract_strided_slice %395 {offsets = [0, 256], sizes = [2, 128], strides = [1, 1]} : vector<2x512xf32> to vector<2x128xf32>
    %409 = math.tanh %408 : vector<2x128xf32>
    %410 = vector.extract_strided_slice %395 {offsets = [0, 384], sizes = [2, 128], strides = [1, 1]} : vector<2x512xf32> to vector<2x128xf32>
    %411 = arith.negf %410 : vector<2x128xf32>
    %412 = math.exp %411 : vector<2x128xf32>
    %cst_83 = arith.constant 1.000000e+00 : f32
    %413 = vector.broadcast %cst_83 : f32 to vector<2x128xf32>
    %414 = arith.addf %413, %412 : vector<2x128xf32>
    %415 = arith.divf %413, %414 : vector<2x128xf32>
    %416 = arith.mulf %407, %390 : vector<2x128xf32>
    %417 = arith.mulf %401, %409 : vector<2x128xf32>
    %418 = arith.addf %416, %417 : vector<2x128xf32>
    %419 = math.tanh %418 : vector<2x128xf32>
    %420 = arith.mulf %415, %419 : vector<2x128xf32>
    %421 = vector.extract_strided_slice %251 {offsets = [12, 0], sizes = [2, 512], strides = [1, 1]} : vector<16x512xf32> to vector<2x512xf32>
    %cst_84 = arith.constant dense<0.000000e+00> : vector<2x512xf32>
    %422 = tpu.matmul %420, %252, %cst_84 {dimension_numbers = #tpu.dot_dimension_numbers<[1], [0], [0], [1], [0, 0, 1, 1], [], []>} : vector<2x128xf32>, vector<128x512xf32>, vector<2x512xf32> -> vector<2x512xf32>
    %423 = arith.addf %421, %422 : vector<2x512xf32>
    %424 = vector.extract_strided_slice %423 {offsets = [0, 0], sizes = [2, 128], strides = [1, 1]} : vector<2x512xf32> to vector<2x128xf32>
    %425 = arith.negf %424 : vector<2x128xf32>
    %426 = math.exp %425 : vector<2x128xf32>
    %cst_85 = arith.constant 1.000000e+00 : f32
    %427 = vector.broadcast %cst_85 : f32 to vector<2x128xf32>
    %428 = arith.addf %427, %426 : vector<2x128xf32>
    %429 = arith.divf %427, %428 : vector<2x128xf32>
    %430 = vector.extract_strided_slice %423 {offsets = [0, 128], sizes = [2, 128], strides = [1, 1]} : vector<2x512xf32> to vector<2x128xf32>
    %431 = arith.negf %430 : vector<2x128xf32>
    %432 = math.exp %431 : vector<2x128xf32>
    %cst_86 = arith.constant 1.000000e+00 : f32
    %433 = vector.broadcast %cst_86 : f32 to vector<2x128xf32>
    %434 = arith.addf %433, %432 : vector<2x128xf32>
    %435 = arith.divf %433, %434 : vector<2x128xf32>
    %436 = vector.extract_strided_slice %423 {offsets = [0, 256], sizes = [2, 128], strides = [1, 1]} : vector<2x512xf32> to vector<2x128xf32>
    %437 = math.tanh %436 : vector<2x128xf32>
    %438 = vector.extract_strided_slice %423 {offsets = [0, 384], sizes = [2, 128], strides = [1, 1]} : vector<2x512xf32> to vector<2x128xf32>
    %439 = arith.negf %438 : vector<2x128xf32>
    %440 = math.exp %439 : vector<2x128xf32>
    %cst_87 = arith.constant 1.000000e+00 : f32
    %441 = vector.broadcast %cst_87 : f32 to vector<2x128xf32>
    %442 = arith.addf %441, %440 : vector<2x128xf32>
    %443 = arith.divf %441, %442 : vector<2x128xf32>
    %444 = arith.mulf %435, %418 : vector<2x128xf32>
    %445 = arith.mulf %429, %437 : vector<2x128xf32>
    %446 = arith.addf %444, %445 : vector<2x128xf32>
    %447 = math.tanh %446 : vector<2x128xf32>
    %448 = arith.mulf %443, %447 : vector<2x128xf32>
    %449 = vector.extract_strided_slice %251 {offsets = [14, 0], sizes = [2, 512], strides = [1, 1]} : vector<16x512xf32> to vector<2x512xf32>
    %cst_88 = arith.constant dense<0.000000e+00> : vector<2x512xf32>
    %450 = tpu.matmul %448, %252, %cst_88 {dimension_numbers = #tpu.dot_dimension_numbers<[1], [0], [0], [1], [0, 0, 1, 1], [], []>} : vector<2x128xf32>, vector<128x512xf32>, vector<2x512xf32> -> vector<2x512xf32>
    %451 = arith.addf %449, %450 : vector<2x512xf32>
    %452 = vector.extract_strided_slice %451 {offsets = [0, 0], sizes = [2, 128], strides = [1, 1]} : vector<2x512xf32> to vector<2x128xf32>
    %453 = arith.negf %452 : vector<2x128xf32>
    %454 = math.exp %453 : vector<2x128xf32>
    %cst_89 = arith.constant 1.000000e+00 : f32
    %455 = vector.broadcast %cst_89 : f32 to vector<2x128xf32>
    %456 = arith.addf %455, %454 : vector<2x128xf32>
    %457 = arith.divf %455, %456 : vector<2x128xf32>
    %458 = vector.extract_strided_slice %451 {offsets = [0, 128], sizes = [2, 128], strides = [1, 1]} : vector<2x512xf32> to vector<2x128xf32>
    %459 = arith.negf %458 : vector<2x128xf32>
    %460 = math.exp %459 : vector<2x128xf32>
    %cst_90 = arith.constant 1.000000e+00 : f32
    %461 = vector.broadcast %cst_90 : f32 to vector<2x128xf32>
    %462 = arith.addf %461, %460 : vector<2x128xf32>
    %463 = arith.divf %461, %462 : vector<2x128xf32>
    %464 = vector.extract_strided_slice %451 {offsets = [0, 256], sizes = [2, 128], strides = [1, 1]} : vector<2x512xf32> to vector<2x128xf32>
    %465 = math.tanh %464 : vector<2x128xf32>
    %466 = vector.extract_strided_slice %451 {offsets = [0, 384], sizes = [2, 128], strides = [1, 1]} : vector<2x512xf32> to vector<2x128xf32>
    %467 = arith.negf %466 : vector<2x128xf32>
    %468 = math.exp %467 : vector<2x128xf32>
    %cst_91 = arith.constant 1.000000e+00 : f32
    %469 = vector.broadcast %cst_91 : f32 to vector<2x128xf32>
    %470 = arith.addf %469, %468 : vector<2x128xf32>
    %471 = arith.divf %469, %470 : vector<2x128xf32>
    %472 = arith.mulf %463, %446 : vector<2x128xf32>
    %473 = arith.mulf %457, %465 : vector<2x128xf32>
    %474 = arith.addf %472, %473 : vector<2x128xf32>
    %475 = math.tanh %474 : vector<2x128xf32>
    %476 = arith.mulf %471, %475 : vector<2x128xf32>
    %477 = tpu.concatenate %280, %308, %336, %364, %392, %420, %448, %476 in 0 : vector<2x128xf32>, vector<2x128xf32>, vector<2x128xf32>, vector<2x128xf32>, vector<2x128xf32>, vector<2x128xf32>, vector<2x128xf32>, vector<2x128xf32> -> vector<16x128xf32>
    %c0_92 = arith.constant 0 : index
    %c0_93 = arith.constant 0 : index
    %478 = vector.load %arg8[%c0_92, %c0_93] : memref<128x64xf32, #tpu.memory_space<vmem>>, vector<128x64xf32>
    %cst_94 = arith.constant dense<0.000000e+00> : vector<16x64xf32>
    %479 = tpu.matmul %477, %478, %cst_94 {dimension_numbers = #tpu.dot_dimension_numbers<[1], [0], [0], [1], [0, 0, 1, 1], [], []>} : vector<16x128xf32>, vector<128x64xf32>, vector<16x64xf32> -> vector<16x64xf32>
    %c0_95 = arith.constant 0 : index
    %c0_96 = arith.constant 0 : index
    %480 = vector.load %arg9[%c0_95, %c0_96] : memref<1x64xf32, #tpu.memory_space<vmem>>, vector<1x64xf32>
    %481 = vector.broadcast %480 : vector<1x64xf32> to vector<16x64xf32>
    %482 = arith.addf %479, %481 : vector<16x64xf32>
    %c0_97 = arith.constant 0 : index
    %c0_98 = arith.constant 0 : index
    %483 = vector.load %arg12[%c0_97, %c0_98] : memref<16x64xf32, #tpu.memory_space<vmem>>, vector<16x64xf32>
    tpu.vector_store %arg12[%c0_97, %c0_98], %482 {strides = array<i32>} : memref<16x64xf32, #tpu.memory_space<vmem>>, vector<16x64xf32>,
    %484 = vector.shape_cast %241 : vector<2x128xf32> to vector<1x2x128xf32>
    %485 = vector.shape_cast %476 : vector<2x128xf32> to vector<1x2x128xf32>
    %486 = tpu.concatenate %484, %485 in 0 : vector<1x2x128xf32>, vector<1x2x128xf32> -> vector<2x2x128xf32>
    %c0_99 = arith.constant 0 : index
    %c0_100 = arith.constant 0 : index
    %c0_101 = arith.constant 0 : index
    %487 = vector.load %arg13[%c0_99, %c0_100, %c0_101] : memref<2x2x128xf32, #tpu.memory_space<vmem>>, vector<2x2x128xf32>
    tpu.vector_store %arg13[%c0_99, %c0_100, %c0_101], %486 {strides = array<i32>} : memref<2x2x128xf32, #tpu.memory_space<vmem>>, vector<2x2x128xf32>,
    %488 = vector.shape_cast %239 : vector<2x128xf32> to vector<1x2x128xf32>
    %489 = vector.shape_cast %474 : vector<2x128xf32> to vector<1x2x128xf32>
    %490 = tpu.concatenate %488, %489 in 0 : vector<1x2x128xf32>, vector<1x2x128xf32> -> vector<2x2x128xf32>
    %c0_102 = arith.constant 0 : index
    %c0_103 = arith.constant 0 : index
    %c0_104 = arith.constant 0 : index
    %491 = vector.load %arg14[%c0_102, %c0_103, %c0_104] : memref<2x2x128xf32, #tpu.memory_space<vmem>>, vector<2x2x128xf32>
    tpu.vector_store %arg14[%c0_102, %c0_103, %c0_104], %490 {strides = array<i32>} : memref<2x2x128xf32, #tpu.memory_space<vmem>>, vector<2x2x128xf32>,
    return
  }
}

</mosaic_0001>

<llo_original>
// kernel: fused_forward.1
$region0: #{fused_forward.1}
  #allocation0 [shape = 'u32[]', space=smem, size = 0x4, offset = 0x4, fixed_abs, tag = 'smem constant byte address 0x4 - core index']
  #allocation1 [shape = 'u32[72,128]{1,0:T(1,128)}', space=vmem, size = 0x9000, scoped, tag = 'internal scratch']
  %s0 = inlined_call_operand.vmem [shape: s32[16,1], index: 0, kind: input, shape index: {}]
  %s1 = inlined_call_operand.vmem [shape: f32[64,32], index: 1, kind: input, shape index: {}]
  %s2 = inlined_call_operand.vmem [shape: f32[32,512], index: 2, kind: input, shape index: {}]
  %s3 = inlined_call_operand.hbm [shape: f32[128,512], index: 3, kind: input, shape index: {}]
  %s4 = inlined_call_operand.vmem [shape: f32[1,512], index: 4, kind: input, shape index: {}]
  %s5 = inlined_call_operand.hbm [shape: f32[128,512], index: 5, kind: input, shape index: {}]
  %s6 = inlined_call_operand.hbm [shape: f32[128,512], index: 6, kind: input, shape index: {}]
  %s7 = inlined_call_operand.vmem [shape: f32[1,512], index: 7, kind: input, shape index: {}]
  %s8 = inlined_call_operand.vmem [shape: f32[128,64], index: 8, kind: input, shape index: {}]
  %s9 = inlined_call_operand.vmem [shape: f32[1,64], index: 9, kind: input, shape index: {}]
  %s10 = inlined_call_operand.vmem [shape: f32[2,2,128], index: 10, kind: input, shape index: {}]
  %s11 = inlined_call_operand.vmem [shape: f32[2,2,128], index: 11, kind: input, shape index: {}]
  %s12 = inlined_call_operand.hbm [shape: f32[16,64], index: 12, kind: output, shape index: {0}]
  %s13 = inlined_call_operand.hbm [shape: f32[2,2,128], index: 13, kind: output, shape index: {1}]
  %s14 = inlined_call_operand.hbm [shape: f32[2,2,128], index: 14, kind: output, shape index: {2}]
  %15 = xla_tuple %s12, %s13, %s14
  %s16 = sld [smem:[#allocation0]]
  $region86: #{fused_forward.1} parent=0
    _
  %s18 = ssub.s32 1, %s16
  %s19 = scalar_select 0, %s18, %s16
  $region1: #{fused_forward.1} parent=0
    #allocation2 [shape = 'u8[262144]{0}', space=vmem, size = 0x40000, scoped, tag = 'input window, operand 3, single buffered']
    #allocation3 [shape = 's32[1]{0}', space=sflag, size = 0x4, scoped, tag = 'scoped memory for fused_forward.1']
    #allocation4 [shape = 's32[1]{0}', space=sflag, size = 0x4, scoped, tag = 'scoped memory for fused_forward.1']
    #allocation5 [shape = 'u8[262144]{0}', space=vmem, size = 0x40000, scoped, tag = 'input window, operand 5, single buffered']
    #allocation6 [shape = 's32[1]{0}', space=sflag, size = 0x4, scoped, tag = 'scoped memory for fused_forward.1']
    #allocation7 [shape = 'u8[262144]{0}', space=vmem, size = 0x40000, scoped, tag = 'input window, operand 6, single buffered']
    #allocation8 [shape = 'u8[8192]{0}', space=vmem, size = 0x2000, scoped, tag = 'output window, operand 0, single buffered']
    #allocation9 [shape = 'u8[2048]{0}', space=vmem, size = 0x800, scoped, tag = 'output window, operand 1, single buffered']
    #allocation10 [shape = 's32[1]{0}', space=sflag, size = 0x4, scoped, tag = 'scoped memory for fused_forward.1']
    #allocation11 [shape = 'u8[2048]{0}', space=vmem, size = 0x800, scoped, tag = 'output window, operand 2, single buffered']
    %20 = vsyncpa [#allocation3], 0
    %21 = vsyncpa [#allocation6], 0
    %22 = vsyncpa [#allocation4], 0
    %23 = vsyncpa [#allocation10], 0
    // Predicated region
    $region2: #{fused_forward.1} parent=1 // pred_check
      _
    $region3: #{fused_forward.1} parent=1 // pred_check_branch
      %25 = sbr.rel (0) target = $region5
    $region4: #{fused_forward.1} parent=1 // pred_region
      _
    $region5: #{fused_forward.1} parent=1 // pred_fallthru
      _
    // Predicated region
    $region6: #{fused_forward.1} parent=1 // pred_check
      _
    $region7: #{fused_forward.1} parent=1 // pred_check_branch
      %27 = sbr.rel (0) target = $region9
    $region8: #{fused_forward.1} parent=1 // pred_region
      _
    $region9: #{fused_forward.1} parent=1 // pred_fallthru
      _
    // Predicated region
    $region10: #{fused_forward.1} parent=1 // pred_check
      _
    $region11: #{fused_forward.1} parent=1 // pred_check_branch
      %29 = sbr.rel (0) target = $region13
    $region12: #{fused_forward.1} parent=1 // pred_region
      _
    $region13: #{fused_forward.1} parent=1 // pred_fallthru
      _
    // Predicated region
    $region14: #{fused_forward.1} parent=1 // pred_check
      _
    $region15: #{fused_forward.1} parent=1 // pred_check_branch
      %31 = sbr.rel (0) target = $region17
    $region16: #{fused_forward.1} parent=1 // pred_region
      %33 = vsyncadd [#allocation3], 0
      %s34 = sshll.u32 %s3, 4
      %s35 = int_to_ptr.hbm [resolvable:$true] %s34
      %s36 = sshll.u32 [#allocation2], 4
      %s37 = int_to_ptr.vmem [resolvable:$true] %s36
      %42 = dma.hbm_to_vmem [thread:$0]  %s35, 8192, %s37, [#allocation3], 512, 512, 32
    $region17: #{fused_forward.1} parent=1 // pred_fallthru
      _
    // Predicated region
    $region18: #{fused_forward.1} parent=1 // pred_check
      _
    $region19: #{fused_forward.1} parent=1 // pred_check_branch
      %44 = sbr.rel (0) target = $region21
    $region20: #{fused_forward.1} parent=1 // pred_region
      _
    $region21: #{fused_forward.1} parent=1 // pred_fallthru
      _
    // Predicated region
    $region22: #{fused_forward.1} parent=1 // pred_check
      _
    $region23: #{fused_forward.1} parent=1 // pred_check_branch
      %46 = sbr.rel (0) target = $region25
    $region24: #{fused_forward.1} parent=1 // pred_region
      %48 = vsyncadd [#allocation6], 0
      %s49 = sshll.u32 %s5, 4
      %s50 = int_to_ptr.hbm [resolvable:$true] %s49
      %s51 = sshll.u32 [#allocation5], 4
      %s52 = int_to_ptr.vmem [resolvable:$true] %s51
      %57 = dma.hbm_to_vmem [thread:$0]  %s50, 8192, %s52, [#allocation6], 512, 512, 32
    $region25: #{fused_forward.1} parent=1 // pred_fallthru
      _
    // Predicated region
    $region26: #{fused_forward.1} parent=1 // pred_check
      _
    $region27: #{fused_forward.1} parent=1 // pred_check_branch
      %59 = sbr.rel (0) target = $region29
    $region28: #{fused_forward.1} parent=1 // pred_region
      %61 = vsyncadd [#allocation6], 0
      %s62 = sshll.u32 %s6, 4
      %s63 = int_to_ptr.hbm [resolvable:$true] %s62
      %s64 = sshll.u32 [#allocation7], 4
      %s65 = int_to_ptr.vmem [resolvable:$true] %s64
      %70 = dma.hbm_to_vmem [thread:$0]  %s63, 8192, %s65, [#allocation6], 512, 512, 32
    $region29: #{fused_forward.1} parent=1 // pred_fallthru
      _
    // Predicated region
    $region30: #{fused_forward.1} parent=1 // pred_check
      _
    $region31: #{fused_forward.1} parent=1 // pred_check_branch
      %72 = sbr.rel (0) target = $region33
    $region32: #{fused_forward.1} parent=1 // pred_region
      _
    $region33: #{fused_forward.1} parent=1 // pred_fallthru
      _
    // Predicated region
    $region34: #{fused_forward.1} parent=1 // pred_check
      _
    $region35: #{fused_forward.1} parent=1 // pred_check_branch
      %74 = sbr.rel (0) target = $region37
    $region36: #{fused_forward.1} parent=1 // pred_region
      _
    $region37: #{fused_forward.1} parent=1 // pred_fallthru
      _
    // Predicated region
    $region38: #{fused_forward.1} parent=1 // pred_check
      _
    $region39: #{fused_forward.1} parent=1 // pred_check_branch
      %76 = sbr.rel (0) target = $region41
    $region40: #{fused_forward.1} parent=1 // pred_region
      _
    $region41: #{fused_forward.1} parent=1 // pred_fallthru
      _
    // Predicated region
    $region42: #{fused_forward.1} parent=1 // pred_check
      _
    $region43: #{fused_forward.1} parent=1 // pred_check_branch
      %78 = sbr.rel (0) target = $region45
    $region44: #{fused_forward.1} parent=1 // pred_region
      _
    $region45: #{fused_forward.1} parent=1 // pred_fallthru
      _
    // Predicated region
    $region46: #{fused_forward.1} parent=1 // pred_check
      _
    $region47: #{fused_forward.1} parent=1 // pred_check_branch
      %80 = sbr.rel (0) target = $region49
    $region48: #{fused_forward.1} parent=1 // pred_region
      _
    $region49: #{fused_forward.1} parent=1 // pred_fallthru
      _
    // Predicated region
    $region50: #{fused_forward.1} parent=1 // pred_check
      _
    $region51: #{fused_forward.1} parent=1 // pred_check_branch
      %82 = sbr.rel (0) target = $region53
    $region52: #{fused_forward.1} parent=1 // pred_region
      %84 = dma.done [#allocation3], 8192
    $region53: #{fused_forward.1} parent=1 // pred_fallthru
      _
    // Predicated region
    $region54: #{fused_forward.1} parent=1 // pred_check
      _
    $region55: #{fused_forward.1} parent=1 // pred_check_branch
      %86 = sbr.rel (0) target = $region57
    $region56: #{fused_forward.1} parent=1 // pred_region
      %88 = dma.done [#allocation6], 8192
    $region57: #{fused_forward.1} parent=1 // pred_fallthru
      _
    // Predicated region
    $region58: #{fused_forward.1} parent=1 // pred_check
      _
    $region59: #{fused_forward.1} parent=1 // pred_check_branch
      %90 = sbr.rel (0) target = $region61
    $region60: #{fused_forward.1} parent=1 // pred_region
      %92 = dma.done [#allocation6], 8192
    $region61: #{fused_forward.1} parent=1 // pred_fallthru
      _
    %v93 = vld [vmem:[%s0] sm:$0xff]
    %v94 = vld [vmem:[%s0 + $0x8] sm:$0xff]
    %v95 = vlaneseq
    %v96 = vand.u32 %v95, 127
    %97 = vset.pattern.permute.xlu0 0
    %98 = vperm.xlu0 %97, %v93
    %v99 = vpop.permute.xlu0 %98
    %100 = vset.pattern.permute.xlu0 0
    %101 = vperm.xlu0 %100, %v94
    %v102 = vpop.permute.xlu0 %101
    %vm103 = vcmp.eq.s32.totalorder %v96, %v99
    %vm104 = vcmp.eq.s32.totalorder %v96, %v102
    %v105 = vsel %vm103, 1, 0
    %v106 = vsel %vm104, 1, 0
    %v107 = vcvt.s32.f32 %v105
    %v108 = vcvt.s32.f32 %v106
    %v109 = vld [vmem:[%s1] sm:$0xff]
    %v110 = vld [vmem:[%s1 + $0x8] sm:$0xff]
    %v111 = vld [vmem:[%s1 + $0x10] sm:$0xff]
    %v112 = vld [vmem:[%s1 + $0x18] sm:$0xff]
    %v113 = vld [vmem:[%s1 + $0x20] sm:$0xff]
    %v114 = vld [vmem:[%s1 + $0x28] sm:$0xff]
    %v115 = vld [vmem:[%s1 + $0x30] sm:$0xff]
    %v116 = vld [vmem:[%s1 + $0x38] sm:$0xff]
    %vm117 = vcmask 523264
    %v119 = vsel %vm117, %v107, 0
    %v122 = vsel %vm117, %v108, 0
    %124 = vmatpush.msra.mxu0 0.0
    %125 = vmatpush.msra.mxu0 0.0
    %126 = vmatpush.msra.mxu0 0.0
    %127 = vmatpush.msra.mxu0 0.0
    %128 = vmatpush.msra.mxu0 0.0
    %129 = vmatpush.msra.mxu0 0.0
    %130 = vmatpush.msra.mxu0 0.0
    %131 = vmatpush.msra.mxu0 0.0
    %132 = vmatpush.msra.mxu0 %v116
    %133 = vmatpush.msra.mxu0 %v115
    %134 = vmatpush.msra.mxu0 %v114
    %135 = vmatpush.msra.mxu0 %v113
    %136 = vmatpush.msra.mxu0 %v112
    %137 = vmatpush.msra.mxu0 %v111
    %138 = vmatpush.msra.mxu0 %v110
    %139 = vmatpush.msra.mxu0 %v109
    %140 = vmatmul.f32.gmra.mxu0 %v119
    %v141 = vpop.f32.mrf.mxu0
    %v142 = vadd.f32 0.0, %v141
    %143 = vmatmul.f32.gmra.mxu0 %v122
    %v144 = vpop.f32.mrf.mxu0
    %v145 = vadd.f32 0.0, %v144
    %146 = vdwg.mxu0
    %v147 = vld [vmem:[%s10] sm:$0x3]
    %v148 = vld [vmem:[%s11] sm:$0x3]
    %v149 = vld [vmem:[%s2] sm:$0xff]
    %v150 = vld [vmem:[%s2 + $0x8] sm:$0xff]
    %v151 = vld [vmem:[%s2 + $0x10] sm:$0xff]
    %v152 = vld [vmem:[%s2 + $0x18] sm:$0xff]
    %v153 = vld [vmem:[%s2 + $0x20] sm:$0xff]
    %v154 = vld [vmem:[%s2 + $0x28] sm:$0xff]
    %v155 = vld [vmem:[%s2 + $0x30] sm:$0xff]
    %v156 = vld [vmem:[%s2 + $0x38] sm:$0xff]
    %v157 = vld [vmem:[%s2 + $0x40] sm:$0xff]
    %v158 = vld [vmem:[%s2 + $0x48] sm:$0xff]
    %v159 = vld [vmem:[%s2 + $0x50] sm:$0xff]
    %v160 = vld [vmem:[%s2 + $0x58] sm:$0xff]
    %v161 = vld [vmem:[%s2 + $0x60] sm:$0xff]
    %v162 = vld [vmem:[%s2 + $0x68] sm:$0xff]
    %v163 = vld [vmem:[%s2 + $0x70] sm:$0xff]
    %v164 = vld [vmem:[%s2 + $0x78] sm:$0xff]
    %v165 = vld [vmem:[%s4] sm:$0xf]
    %v167 = vperm.slane %v165, 0
    %v168 = vperm.slane %v165, 1
    %v169 = vperm.slane %v165, 2
    %v170 = vperm.slane %v165, 3
    %vm175 = vcmask 261120
    %v177 = vsel %vm175, %v142, 0
    %v180 = vsel %vm175, %v145, 0
    %182 = vmatpush.msra.mxu0 0.0
    %183 = vmatpush.msra.mxu0 0.0
    %184 = vmatpush.msra.mxu0 0.0
    %185 = vmatpush.msra.mxu0 0.0
    %186 = vmatpush.msra.mxu0 0.0
    %187 = vmatpush.msra.mxu0 0.0
    %188 = vmatpush.msra.mxu0 0.0
    %189 = vmatpush.msra.mxu0 0.0
    %190 = vmatpush.msra.mxu0 0.0
    %191 = vmatpush.msra.mxu0 0.0
    %192 = vmatpush.msra.mxu0 0.0
    %193 = vmatpush.msra.mxu0 0.0
    %194 = vmatpush.msra.mxu0 %v161
    %195 = vmatpush.msra.mxu0 %v157
    %196 = vmatpush.msra.mxu0 %v153
    %197 = vmatpush.msra.mxu0 %v149
    %198 = vmatmul.f32.gmra.mxu0 %v177
    %v199 = vpop.f32.mrf.mxu0
    %v200 = vadd.f32 %v167, %v199
    %201 = vmatmul.f32.gmra.mxu0 %v180
    %v202 = vpop.f32.mrf.mxu0
    %v203 = vadd.f32 %v167, %v202
    %204 = vdwg.mxu0
    %205 = vmatpush.msra.mxu0 0.0
    %206 = vmatpush.msra.mxu0 0.0
    %207 = vmatpush.msra.mxu0 0.0
    %208 = vmatpush.msra.mxu0 0.0
    %209 = vmatpush.msra.mxu0 0.0
    %210 = vmatpush.msra.mxu0 0.0
    %211 = vmatpush.msra.mxu0 0.0
    %212 = vmatpush.msra.mxu0 0.0
    %213 = vmatpush.msra.mxu0 0.0
    %214 = vmatpush.msra.mxu0 0.0
    %215 = vmatpush.msra.mxu0 0.0
    %216 = vmatpush.msra.mxu0 0.0
    %217 = vmatpush.msra.mxu0 %v162
    %218 = vmatpush.msra.mxu0 %v158
    %219 = vmatpush.msra.mxu0 %v154
    %220 = vmatpush.msra.mxu0 %v150
    %221 = vmatmul.f32.gmra.mxu0 %v177
    %v222 = vpop.f32.mrf.mxu0
    %v223 = vadd.f32 %v168, %v222
    %224 = vmatmul.f32.gmra.mxu0 %v180
    %v225 = vpop.f32.mrf.mxu0
    %v226 = vadd.f32 %v168, %v225
    %227 = vdwg.mxu0
    %228 = vmatpush.msra.mxu0 0.0
    %229 = vmatpush.msra.mxu0 0.0
    %230 = vmatpush.msra.mxu0 0.0
    %231 = vmatpush.msra.mxu0 0.0
    %232 = vmatpush.msra.mxu0 0.0
    %233 = vmatpush.msra.mxu0 0.0
    %234 = vmatpush.msra.mxu0 0.0
    %235 = vmatpush.msra.mxu0 0.0
    %236 = vmatpush.msra.mxu0 0.0
    %237 = vmatpush.msra.mxu0 0.0
    %238 = vmatpush.msra.mxu0 0.0
    %239 = vmatpush.msra.mxu0 0.0
    %240 = vmatpush.msra.mxu0 %v163
    %241 = vmatpush.msra.mxu0 %v159
    %242 = vmatpush.msra.mxu0 %v155
    %243 = vmatpush.msra.mxu0 %v151
    %244 = vmatmul.f32.gmra.mxu0 %v177
    %v245 = vpop.f32.mrf.mxu0
    %v246 = vadd.f32 %v169, %v245
    %247 = vmatmul.f32.gmra.mxu0 %v180
    %v248 = vpop.f32.mrf.mxu0
    %v249 = vadd.f32 %v169, %v248
    %250 = vdwg.mxu0
    %251 = vmatpush.msra.mxu0 0.0
    %252 = vmatpush.msra.mxu0 0.0
    %253 = vmatpush.msra.mxu0 0.0
    %254 = vmatpush.msra.mxu0 0.0
    %255 = vmatpush.msra.mxu0 0.0
    %256 = vmatpush.msra.mxu0 0.0
    %257 = vmatpush.msra.mxu0 0.0
    %258 = vmatpush.msra.mxu0 0.0
    %259 = vmatpush.msra.mxu0 0.0
    %260 = vmatpush.msra.mxu0 0.0
    %261 = vmatpush.msra.mxu0 0.0
    %262 = vmatpush.msra.mxu0 0.0
    %263 = vmatpush.msra.mxu0 %v164
    %264 = vmatpush.msra.mxu0 %v160
    %265 = vmatpush.msra.mxu0 %v156
    %266 = vmatpush.msra.mxu0 %v152
    %267 = vmatmul.f32.gmra.mxu0 %v177
    %v268 = vpop.f32.mrf.mxu0
    %v269 = vadd.f32 %v170, %v268
    %270 = vmatmul.f32.gmra.mxu0 %v180
    %v271 = vpop.f32.mrf.mxu0
    %v272 = vadd.f32 %v170, %v271
    %273 = vdwg.mxu0
    %v274 = vld [vmem:[#allocation2] sm:$0xff]
    %v275 = vld [vmem:[#allocation2 + $0x8] sm:$0xff]
    %v276 = vld [vmem:[#allocation2 + $0x10] sm:$0xff]
    %v277 = vld [vmem:[#allocation2 + $0x18] sm:$0xff]
    %v278 = vld [vmem:[#allocation2 + $0x20] sm:$0xff]
    %v279 = vld [vmem:[#allocation2 + $0x28] sm:$0xff]
    %v280 = vld [vmem:[#allocation2 + $0x30] sm:$0xff]
    %v281 = vld [vmem:[#allocation2 + $0x38] sm:$0xff]
    %v282 = vld [vmem:[#allocation2 + $0x40] sm:$0xff]
    %v283 = vld [vmem:[#allocation2 + $0x48] sm:$0xff]
    %v284 = vld [vmem:[#allocation2 + $0x50] sm:$0xff]
    %v285 = vld [vmem:[#allocation2 + $0x58] sm:$0xff]
    %v286 = vld [vmem:[#allocation2 + $0x60] sm:$0xff]
    %v287 = vld [vmem:[#allocation2 + $0x68] sm:$0xff]
    %v288 = vld [vmem:[#allocation2 + $0x70] sm:$0xff]
    %v289 = vld [vmem:[#allocation2 + $0x78] sm:$0xff]
    %v290 = vld [vmem:[#allocation2 + $0x80] sm:$0xff]
    %v291 = vld [vmem:[#allocation2 + $0x88] sm:$0xff]
    %v292 = vld [vmem:[#allocation2 + $0x90] sm:$0xff]
    %v293 = vld [vmem:[#allocation2 + $0x98] sm:$0xff]
    %v294 = vld [vmem:[#allocation2 + $0xa0] sm:$0xff]
    %v295 = vld [vmem:[#allocation2 + $0xa8] sm:$0xff]
    %v296 = vld [vmem:[#allocation2 + $0xb0] sm:$0xff]
    %v297 = vld [vmem:[#allocation2 + $0xb8] sm:$0xff]
    %v298 = vld [vmem:[#allocation2 + $0xc0] sm:$0xff]
    %v299 = vld [vmem:[#allocation2 + $0xc8] sm:$0xff]
    %v300 = vld [vmem:[#allocation2 + $0xd0] sm:$0xff]
    %v301 = vld [vmem:[#allocation2 + $0xd8] sm:$0xff]
    %v302 = vld [vmem:[#allocation2 + $0xe0] sm:$0xff]
    %v303 = vld [vmem:[#allocation2 + $0xe8] sm:$0xff]
    %v304 = vld [vmem:[#allocation2 + $0xf0] sm:$0xff]
    %v305 = vld [vmem:[#allocation2 + $0xf8] sm:$0xff]
    %v306 = vld [vmem:[#allocation2 + $0x100] sm:$0xff]
    %v307 = vld [vmem:[#allocation2 + $0x108] sm:$0xff]
    %v308 = vld [vmem:[#allocation2 + $0x110] sm:$0xff]
    %v309 = vld [vmem:[#allocation2 + $0x118] sm:$0xff]
    %v310 = vld [vmem:[#allocation2 + $0x120] sm:$0xff]
    %v311 = vld [vmem:[#allocation2 + $0x128] sm:$0xff]
    %v312 = vld [vmem:[#allocation2 + $0x130] sm:$0xff]
    %v313 = vld [vmem:[#allocation2 + $0x138] sm:$0xff]
    %v314 = vld [vmem:[#allocation2 + $0x140] sm:$0xff]
    %v315 = vld [vmem:[#allocation2 + $0x148] sm:$0xff]
    %v316 = vld [vmem:[#allocation2 + $0x150] sm:$0xff]
    %v317 = vld [vmem:[#allocation2 + $0x158] sm:$0xff]
    %v318 = vld [vmem:[#allocation2 + $0x160] sm:$0xff]
    %v319 = vld [vmem:[#allocation2 + $0x168] sm:$0xff]
    %v320 = vld [vmem:[#allocation2 + $0x170] sm:$0xff]
    %v321 = vld [vmem:[#allocation2 + $0x178] sm:$0xff]
    %v322 = vld [vmem:[#allocation2 + $0x180] sm:$0xff]
    %v323 = vld [vmem:[#allocation2 + $0x188] sm:$0xff]
    %v324 = vld [vmem:[#allocation2 + $0x190] sm:$0xff]
    %v325 = vld [vmem:[#allocation2 + $0x198] sm:$0xff]
    %v326 = vld [vmem:[#allocation2 + $0x1a0] sm:$0xff]
    %v327 = vld [vmem:[#allocation2 + $0x1a8] sm:$0xff]
    %v328 = vld [vmem:[#allocation2 + $0x1b0] sm:$0xff]
    %v329 = vld [vmem:[#allocation2 + $0x1b8] sm:$0xff]
    %v330 = vld [vmem:[#allocation2 + $0x1c0] sm:$0xff]
    %v331 = vld [vmem:[#allocation2 + $0x1c8] sm:$0xff]
    %v332 = vld [vmem:[#allocation2 + $0x1d0] sm:$0xff]
    %v333 = vld [vmem:[#allocation2 + $0x1d8] sm:$0xff]
    %v334 = vld [vmem:[#allocation2 + $0x1e0] sm:$0xff]
    %v335 = vld [vmem:[#allocation2 + $0x1e8] sm:$0xff]
    %v336 = vld [vmem:[#allocation2 + $0x1f0] sm:$0xff]
    %v337 = vld [vmem:[#allocation2 + $0x1f8] sm:$0xff]
    %338 = vmatpush.msra.mxu0 %v334
    %339 = vmatpush.msra.mxu0 %v330
    %340 = vmatpush.msra.mxu0 %v326
    %341 = vmatpush.msra.mxu0 %v322
    %342 = vmatpush.msra.mxu0 %v318
    %343 = vmatpush.msra.mxu0 %v314
    %344 = vmatpush.msra.mxu0 %v310
    %345 = vmatpush.msra.mxu0 %v306
    %346 = vmatpush.msra.mxu0 %v302
    %347 = vmatpush.msra.mxu0 %v298
    %348 = vmatpush.msra.mxu0 %v294
    %349 = vmatpush.msra.mxu0 %v290
    %350 = vmatpush.msra.mxu0 %v286
    %351 = vmatpush.msra.mxu0 %v282
    %352 = vmatpush.msra.mxu0 %v278
    %353 = vmatpush.msra.mxu0 %v274
    %354 = vmatmul.f32.gmra.mxu0 %v147
    %v355 = vpop.f32.mrf.mxu0
    %v356 = vadd.f32 0.0, %v355
    %357 = vdwg.mxu0
    %358 = vmatpush.msra.mxu0 %v335
    %359 = vmatpush.msra.mxu0 %v331
    %360 = vmatpush.msra.mxu0 %v327
    %361 = vmatpush.msra.mxu0 %v323
    %362 = vmatpush.msra.mxu0 %v319
    %363 = vmatpush.msra.mxu0 %v315
    %364 = vmatpush.msra.mxu0 %v311
    %365 = vmatpush.msra.mxu0 %v307
    %366 = vmatpush.msra.mxu0 %v303
    %367 = vmatpush.msra.mxu0 %v299
    %368 = vmatpush.msra.mxu0 %v295
    %369 = vmatpush.msra.mxu0 %v291
    %370 = vmatpush.msra.mxu0 %v287
    %371 = vmatpush.msra.mxu0 %v283
    %372 = vmatpush.msra.mxu0 %v279
    %373 = vmatpush.msra.mxu0 %v275
    %374 = vmatmul.f32.gmra.mxu0 %v147
    %v375 = vpop.f32.mrf.mxu0
    %v376 = vadd.f32 0.0, %v375
    %377 = vdwg.mxu0
    %378 = vmatpush.msra.mxu0 %v336
    %379 = vmatpush.msra.mxu0 %v332
    %380 = vmatpush.msra.mxu0 %v328
    %381 = vmatpush.msra.mxu0 %v324
    %382 = vmatpush.msra.mxu0 %v320
    %383 = vmatpush.msra.mxu0 %v316
    %384 = vmatpush.msra.mxu0 %v312
    %385 = vmatpush.msra.mxu0 %v308
    %386 = vmatpush.msra.mxu0 %v304
    %387 = vmatpush.msra.mxu0 %v300
    %388 = vmatpush.msra.mxu0 %v296
    %389 = vmatpush.msra.mxu0 %v292
    %390 = vmatpush.msra.mxu0 %v288
    %391 = vmatpush.msra.mxu0 %v284
    %392 = vmatpush.msra.mxu0 %v280
    %393 = vmatpush.msra.mxu0 %v276
    %394 = vmatmul.f32.gmra.mxu0 %v147
    %v395 = vpop.f32.mrf.mxu0
    %v396 = vadd.f32 0.0, %v395
    %397 = vdwg.mxu0
    %398 = vmatpush.msra.mxu0 %v337
    %399 = vmatpush.msra.mxu0 %v333
    %400 = vmatpush.msra.mxu0 %v329
    %401 = vmatpush.msra.mxu0 %v325
    %402 = vmatpush.msra.mxu0 %v321
    %403 = vmatpush.msra.mxu0 %v317
    %404 = vmatpush.msra.mxu0 %v313
    %405 = vmatpush.msra.mxu0 %v309
    %406 = vmatpush.msra.mxu0 %v305
    %407 = vmatpush.msra.mxu0 %v301
    %408 = vmatpush.msra.mxu0 %v297
    %409 = vmatpush.msra.mxu0 %v293
    %410 = vmatpush.msra.mxu0 %v289
    %411 = vmatpush.msra.mxu0 %v285
    %412 = vmatpush.msra.mxu0 %v281
    %413 = vmatpush.msra.mxu0 %v277
    %414 = vmatmul.f32.gmra.mxu0 %v147
    %v415 = vpop.f32.mrf.mxu0
    %v416 = vadd.f32 0.0, %v415
    %417 = vdwg.mxu0
    %v418 = vadd.f32 %v200, %v356
    %v419 = vadd.f32 %v223, %v376
    %v420 = vadd.f32 %v246, %v396
    %v421 = vadd.f32 %v269, %v416
    %v422 = vxor.u32 %v418, 2147483648
    %v423 = vmul.f32 %v422, 1.442695
    %v424 = vpow.pop %v423
    %v425 = vadd.f32 %v424, 1.0
    %v426 = vrcp.pop %v425
    %v427 = vmul.f32 %v425, %v426
    %v428 = vsub.f32 1.0, %v427
    %v429 = vmul.f32 %v426, %v428
    %v430 = vadd.f32 %v426, %v429
    %vm431 = vweird.f32 %v425
    %vm432 = vweird.f32 %v426
    %vm433 = vmor %vm431, %vm432
    %v434 = vsel %vm433, %v426, %v430
    %v435 = vand.u32 2147483647, %v425
    %vm436 = vcmp.eq.f32.partialorder %v435, 8.507059e+37
    %v437 = vand.u32 %v425, 2147483648
    %v438 = vor.u32 1.1754944e-38, %v437
    %v439 = vsel %vm436, %v438, %v434
    %v440 = vmul.f32 1.0, %v439
    %v441 = vxor.u32 %v419, 2147483648
    %v442 = vmul.f32 %v441, 1.442695
    %v443 = vpow.pop %v442
    %v444 = vadd.f32 %v443, 1.0
    %v445 = vrcp.pop %v444
    %v446 = vmul.f32 %v444, %v445
    %v447 = vsub.f32 1.0, %v446
    %v448 = vmul.f32 %v445, %v447
    %v449 = vadd.f32 %v445, %v448
    %vm450 = vweird.f32 %v444
    %vm451 = vweird.f32 %v445
    %vm452 = vmor %vm450, %vm451
    %v453 = vsel %vm452, %v445, %v449
    %v454 = vand.u32 2147483647, %v444
    %vm455 = vcmp.eq.f32.partialorder %v454, 8.507059e+37
    %v456 = vand.u32 %v444, 2147483648
    %v457 = vor.u32 1.1754944e-38, %v456
    %v458 = vsel %vm455, %v457, %v453
    %v459 = vmul.f32 1.0, %v458
    %v460 = vtanh.pop %v420
    %v461 = vxor.u32 %v421, 2147483648
    %v462 = vmul.f32 %v461, 1.442695
    %v463 = vpow.pop %v462
    %v464 = vadd.f32 %v463, 1.0
    %v465 = vrcp.pop %v464
    %v466 = vmul.f32 %v464, %v465
    %v467 = vsub.f32 1.0, %v466
    %v468 = vmul.f32 %v465, %v467
    %v469 = vadd.f32 %v465, %v468
    %vm470 = vweird.f32 %v464
    %vm471 = vweird.f32 %v465
    %vm472 = vmor %vm470, %vm471
    %v473 = vsel %vm472, %v465, %v469
    %v474 = vand.u32 2147483647, %v464
    %vm475 = vcmp.eq.f32.partialorder %v474, 8.507059e+37
    %v476 = vand.u32 %v464, 2147483648
    %v477 = vor.u32 1.1754944e-38, %v476
    %v478 = vsel %vm475, %v477, %v473
    %v479 = vmul.f32 1.0, %v478
    %v480 = vmul.f32 %v459, %v148
    %v481 = vmul.f32 %v440, %v460
    %v482 = vadd.f32 %v480, %v481
    %v483 = vtanh.pop %v482
    %v484 = vmul.f32 %v479, %v483
    %485 = vmatpush.msra.mxu0 %v334
    %486 = vmatpush.msra.mxu0 %v330
    %487 = vmatpush.msra.mxu0 %v326
    %488 = vmatpush.msra.mxu0 %v322
    %489 = vmatpush.msra.mxu0 %v318
    %490 = vmatpush.msra.mxu0 %v314
    %491 = vmatpush.msra.mxu0 %v310
    %492 = vmatpush.msra.mxu0 %v306
    %493 = vmatpush.msra.mxu0 %v302
    %494 = vmatpush.msra.mxu0 %v298
    %495 = vmatpush.msra.mxu0 %v294
    %496 = vmatpush.msra.mxu0 %v290
    %497 = vmatpush.msra.mxu0 %v286
    %498 = vmatpush.msra.mxu0 %v282
    %499 = vmatpush.msra.mxu0 %v278
    %500 = vmatpush.msra.mxu0 %v274
    %501 = vmatmul.f32.gmra.mxu0 %v484
    %v502 = vpop.f32.mrf.mxu0
    %v503 = vadd.f32 0.0, %v502
    %504 = vdwg.mxu0
    %505 = vmatpush.msra.mxu0 %v335
    %506 = vmatpush.msra.mxu0 %v331
    %507 = vmatpush.msra.mxu0 %v327
    %508 = vmatpush.msra.mxu0 %v323
    %509 = vmatpush.msra.mxu0 %v319
    %510 = vmatpush.msra.mxu0 %v315
    %511 = vmatpush.msra.mxu0 %v311
    %512 = vmatpush.msra.mxu0 %v307
    %513 = vmatpush.msra.mxu0 %v303
    %514 = vmatpush.msra.mxu0 %v299
    %515 = vmatpush.msra.mxu0 %v295
    %516 = vmatpush.msra.mxu0 %v291
    %517 = vmatpush.msra.mxu0 %v287
    %518 = vmatpush.msra.mxu0 %v283
    %519 = vmatpush.msra.mxu0 %v279
    %520 = vmatpush.msra.mxu0 %v275
    %521 = vmatmul.f32.gmra.mxu0 %v484
    %v522 = vpop.f32.mrf.mxu0
    %v523 = vadd.f32 0.0, %v522
    %524 = vdwg.mxu0
    %525 = vmatpush.msra.mxu0 %v336
    %526 = vmatpush.msra.mxu0 %v332
    %527 = vmatpush.msra.mxu0 %v328
    %528 = vmatpush.msra.mxu0 %v324
    %529 = vmatpush.msra.mxu0 %v320
    %530 = vmatpush.msra.mxu0 %v316
    %531 = vmatpush.msra.mxu0 %v312
    %532 = vmatpush.msra.mxu0 %v308
    %533 = vmatpush.msra.mxu0 %v304
    %534 = vmatpush.msra.mxu0 %v300
    %535 = vmatpush.msra.mxu0 %v296
    %536 = vmatpush.msra.mxu0 %v292
    %537 = vmatpush.msra.mxu0 %v288
    %538 = vmatpush.msra.mxu0 %v284
    %539 = vmatpush.msra.mxu0 %v280
    %540 = vmatpush.msra.mxu0 %v276
    %541 = vmatmul.f32.gmra.mxu0 %v484
    %v542 = vpop.f32.mrf.mxu0
    %v543 = vadd.f32 0.0, %v542
    %544 = vdwg.mxu0
    %545 = vmatpush.msra.mxu0 %v337
    %546 = vmatpush.msra.mxu0 %v333
    %547 = vmatpush.msra.mxu0 %v329
    %548 = vmatpush.msra.mxu0 %v325
    %549 = vmatpush.msra.mxu0 %v321
    %550 = vmatpush.msra.mxu0 %v317
    %551 = vmatpush.msra.mxu0 %v313
    %552 = vmatpush.msra.mxu0 %v309
    %553 = vmatpush.msra.mxu0 %v305
    %554 = vmatpush.msra.mxu0 %v301
    %555 = vmatpush.msra.mxu0 %v297
    %556 = vmatpush.msra.mxu0 %v293
    %557 = vmatpush.msra.mxu0 %v289
    %558 = vmatpush.msra.mxu0 %v285
    %559 = vmatpush.msra.mxu0 %v281
    %560 = vmatpush.msra.mxu0 %v277
    %561 = vmatmul.f32.gmra.mxu0 %v484
    %v562 = vpop.f32.mrf.mxu0
    %v563 = vadd.f32 0.0, %v562
    %564 = vdwg.mxu0
    %v569 = vrot.slane %v503, 6
    %v570 = vrot.slane %v523, 6
    %v571 = vrot.slane %v543, 6
    %v572 = vrot.slane %v563, 6
    %v577 = vadd.f32 %v200, %v569
    %v578 = vadd.f32 %v223, %v570
    %v579 = vadd.f32 %v246, %v571
    %v580 = vadd.f32 %v269, %v572
    %v581 = vxor.u32 %v577, 2147483648
    %v582 = vmul.f32 %v581, 1.442695
    %v583 = vpow.pop %v582
    %v584 = vadd.f32 %v583, 1.0
    %v585 = vrcp.pop %v584
    %v586 = vmul.f32 %v584, %v585
    %v587 = vsub.f32 1.0, %v586
    %v588 = vmul.f32 %v585, %v587
    %v589 = vadd.f32 %v585, %v588
    %vm590 = vweird.f32 %v584
    %vm591 = vweird.f32 %v585
    %vm592 = vmor %vm590, %vm591
    %v593 = vsel %vm592, %v585, %v589
    %v594 = vand.u32 2147483647, %v584
    %vm595 = vcmp.eq.f32.partialorder %v594, 8.507059e+37
    %v596 = vand.u32 %v584, 2147483648
    %v597 = vor.u32 1.1754944e-38, %v596
    %v598 = vsel %vm595, %v597, %v593
    %v599 = vmul.f32 1.0, %v598
    %v600 = vxor.u32 %v578, 2147483648
    %v601 = vmul.f32 %v600, 1.442695
    %v602 = vpow.pop %v601
    %v603 = vadd.f32 %v602, 1.0
    %v604 = vrcp.pop %v603
    %v605 = vmul.f32 %v603, %v604
    %v606 = vsub.f32 1.0, %v605
    %v607 = vmul.f32 %v604, %v606
    %v608 = vadd.f32 %v604, %v607
    %vm609 = vweird.f32 %v603
    %vm610 = vweird.f32 %v604
    %vm611 = vmor %vm609, %vm610
    %v612 = vsel %vm611, %v604, %v608
    %v613 = vand.u32 2147483647, %v603
    %vm614 = vcmp.eq.f32.partialorder %v613, 8.507059e+37
    %v615 = vand.u32 %v603, 2147483648
    %v616 = vor.u32 1.1754944e-38, %v615
    %v617 = vsel %vm614, %v616, %v612
    %v618 = vmul.f32 1.0, %v617
    %v619 = vtanh.pop %v579
    %v620 = vxor.u32 %v580, 2147483648
    %v621 = vmul.f32 %v620, 1.442695
    %v622 = vpow.pop %v621
    %v623 = vadd.f32 %v622, 1.0
    %v624 = vrcp.pop %v623
    %v625 = vmul.f32 %v623, %v624
    %v626 = vsub.f32 1.0, %v625
    %v627 = vmul.f32 %v624, %v626
    %v628 = vadd.f32 %v624, %v627
    %vm629 = vweird.f32 %v623
    %vm630 = vweird.f32 %v624
    %vm631 = vmor %vm629, %vm630
    %v632 = vsel %vm631, %v624, %v628
    %v633 = vand.u32 2147483647, %v623
    %vm634 = vcmp.eq.f32.partialorder %v633, 8.507059e+37
    %v635 = vand.u32 %v623, 2147483648
    %v636 = vor.u32 1.1754944e-38, %v635
    %v637 = vsel %vm634, %v636, %v632
    %v638 = vmul.f32 1.0, %v637
    %v640 = vrot.slane %v482, 6
    %v642 = vmul.f32 %v618, %v640
    %v643 = vmul.f32 %v599, %v619
    %v644 = vadd.f32 %v642, %v643
    %v645 = vtanh.pop %v644
    %v646 = vmul.f32 %v638, %v645
    %v648 = vrot.slane %v646, 2
    %650 = vmatpush.msra.mxu0 %v334
    %651 = vmatpush.msra.mxu0 %v330
    %652 = vmatpush.msra.mxu0 %v326
    %653 = vmatpush.msra.mxu0 %v322
    %654 = vmatpush.msra.mxu0 %v318
    %655 = vmatpush.msra.mxu0 %v314
    %656 = vmatpush.msra.mxu0 %v310
    %657 = vmatpush.msra.mxu0 %v306
    %658 = vmatpush.msra.mxu0 %v302
    %659 = vmatpush.msra.mxu0 %v298
    %660 = vmatpush.msra.mxu0 %v294
    %661 = vmatpush.msra.mxu0 %v290
    %662 = vmatpush.msra.mxu0 %v286
    %663 = vmatpush.msra.mxu0 %v282
    %664 = vmatpush.msra.mxu0 %v278
    %665 = vmatpush.msra.mxu0 %v274
    %666 = vmatmul.f32.gmra.mxu0 %v648
    %v667 = vpop.f32.mrf.mxu0
    %v668 = vadd.f32 0.0, %v667
    %669 = vdwg.mxu0
    %670 = vmatpush.msra.mxu0 %v335
    %671 = vmatpush.msra.mxu0 %v331
    %672 = vmatpush.msra.mxu0 %v327
    %673 = vmatpush.msra.mxu0 %v323
    %674 = vmatpush.msra.mxu0 %v319
    %675 = vmatpush.msra.mxu0 %v315
    %676 = vmatpush.msra.mxu0 %v311
    %677 = vmatpush.msra.mxu0 %v307
    %678 = vmatpush.msra.mxu0 %v303
    %679 = vmatpush.msra.mxu0 %v299
    %680 = vmatpush.msra.mxu0 %v295
    %681 = vmatpush.msra.mxu0 %v291
    %682 = vmatpush.msra.mxu0 %v287
    %683 = vmatpush.msra.mxu0 %v283
    %684 = vmatpush.msra.mxu0 %v279
    %685 = vmatpush.msra.mxu0 %v275
    %686 = vmatmul.f32.gmra.mxu0 %v648
    %v687 = vpop.f32.mrf.mxu0
    %v688 = vadd.f32 0.0, %v687
    %689 = vdwg.mxu0
    %690 = vmatpush.msra.mxu0 %v336
    %691 = vmatpush.msra.mxu0 %v332
    %692 = vmatpush.msra.mxu0 %v328
    %693 = vmatpush.msra.mxu0 %v324
    %694 = vmatpush.msra.mxu0 %v320
    %695 = vmatpush.msra.mxu0 %v316
    %696 = vmatpush.msra.mxu0 %v312
    %697 = vmatpush.msra.mxu0 %v308
    %698 = vmatpush.msra.mxu0 %v304
    %699 = vmatpush.msra.mxu0 %v300
    %700 = vmatpush.msra.mxu0 %v296
    %701 = vmatpush.msra.mxu0 %v292
    %702 = vmatpush.msra.mxu0 %v288
    %703 = vmatpush.msra.mxu0 %v284
    %704 = vmatpush.msra.mxu0 %v280
    %705 = vmatpush.msra.mxu0 %v276
    %706 = vmatmul.f32.gmra.mxu0 %v648
    %v707 = vpop.f32.mrf.mxu0
    %v708 = vadd.f32 0.0, %v707
    %709 = vdwg.mxu0
    %710 = vmatpush.msra.mxu0 %v337
    %711 = vmatpush.msra.mxu0 %v333
    %712 = vmatpush.msra.mxu0 %v329
    %713 = vmatpush.msra.mxu0 %v325
    %714 = vmatpush.msra.mxu0 %v321
    %715 = vmatpush.msra.mxu0 %v317
    %716 = vmatpush.msra.mxu0 %v313
    %717 = vmatpush.msra.mxu0 %v309
    %718 = vmatpush.msra.mxu0 %v305
    %719 = vmatpush.msra.mxu0 %v301
    %720 = vmatpush.msra.mxu0 %v297
    %721 = vmatpush.msra.mxu0 %v293
    %722 = vmatpush.msra.mxu0 %v289
    %723 = vmatpush.msra.mxu0 %v285
    %724 = vmatpush.msra.mxu0 %v281
    %725 = vmatpush.msra.mxu0 %v277
    %726 = vmatmul.f32.gmra.mxu0 %v648
    %v727 = vpop.f32.mrf.mxu0
    %v728 = vadd.f32 0.0, %v727
    %729 = vdwg.mxu0
    %v734 = vrot.slane %v668, 4
    %v735 = vrot.slane %v688, 4
    %v736 = vrot.slane %v708, 4
    %v737 = vrot.slane %v728, 4
    %v742 = vadd.f32 %v200, %v734
    %v743 = vadd.f32 %v223, %v735
    %v744 = vadd.f32 %v246, %v736
    %v745 = vadd.f32 %v269, %v737
    %v746 = vxor.u32 %v742, 2147483648
    %v747 = vmul.f32 %v746, 1.442695
    %v748 = vpow.pop %v747
    %v749 = vadd.f32 %v748, 1.0
    %v750 = vrcp.pop %v749
    %v751 = vmul.f32 %v749, %v750
    %v752 = vsub.f32 1.0, %v751
    %v753 = vmul.f32 %v750, %v752
    %v754 = vadd.f32 %v750, %v753
    %vm755 = vweird.f32 %v749
    %vm756 = vweird.f32 %v750
    %vm757 = vmor %vm755, %vm756
    %v758 = vsel %vm757, %v750, %v754
    %v759 = vand.u32 2147483647, %v749
    %vm760 = vcmp.eq.f32.partialorder %v759, 8.507059e+37
    %v761 = vand.u32 %v749, 2147483648
    %v762 = vor.u32 1.1754944e-38, %v761
    %v763 = vsel %vm760, %v762, %v758
    %v764 = vmul.f32 1.0, %v763
    %v765 = vxor.u32 %v743, 2147483648
    %v766 = vmul.f32 %v765, 1.442695
    %v767 = vpow.pop %v766
    %v768 = vadd.f32 %v767, 1.0
    %v769 = vrcp.pop %v768
    %v770 = vmul.f32 %v768, %v769
    %v771 = vsub.f32 1.0, %v770
    %v772 = vmul.f32 %v769, %v771
    %v773 = vadd.f32 %v769, %v772
    %vm774 = vweird.f32 %v768
    %vm775 = vweird.f32 %v769
    %vm776 = vmor %vm774, %vm775
    %v777 = vsel %vm776, %v769, %v773
    %v778 = vand.u32 2147483647, %v768
    %vm779 = vcmp.eq.f32.partialorder %v778, 8.507059e+37
    %v780 = vand.u32 %v768, 2147483648
    %v781 = vor.u32 1.1754944e-38, %v780
    %v782 = vsel %vm779, %v781, %v777
    %v783 = vmul.f32 1.0, %v782
    %v784 = vtanh.pop %v744
    %v785 = vxor.u32 %v745, 2147483648
    %v786 = vmul.f32 %v785, 1.442695
    %v787 = vpow.pop %v786
    %v788 = vadd.f32 %v787, 1.0
    %v789 = vrcp.pop %v788
    %v790 = vmul.f32 %v788, %v789
    %v791 = vsub.f32 1.0, %v790
    %v792 = vmul.f32 %v789, %v791
    %v793 = vadd.f32 %v789, %v792
    %vm794 = vweird.f32 %v788
    %vm795 = vweird.f32 %v789
    %vm796 = vmor %vm794, %vm795
    %v797 = vsel %vm796, %v789, %v793
    %v798 = vand.u32 2147483647, %v788
    %vm799 = vcmp.eq.f32.partialorder %v798, 8.507059e+37
    %v800 = vand.u32 %v788, 2147483648
    %v801 = vor.u32 1.1754944e-38, %v800
    %v802 = vsel %vm799, %v801, %v797
    %v803 = vmul.f32 1.0, %v802
    %v805 = vrot.slane %v644, 6
    %v807 = vmul.f32 %v783, %v805
    %v808 = vmul.f32 %v764, %v784
    %v809 = vadd.f32 %v807, %v808
    %v810 = vtanh.pop %v809
    %v811 = vmul.f32 %v803, %v810
    %v813 = vrot.slane %v811, 4
    %815 = vmatpush.msra.mxu0 %v334
    %816 = vmatpush.msra.mxu0 %v330
    %817 = vmatpush.msra.mxu0 %v326
    %818 = vmatpush.msra.mxu0 %v322
    %819 = vmatpush.msra.mxu0 %v318
    %820 = vmatpush.msra.mxu0 %v314
    %821 = vmatpush.msra.mxu0 %v310
    %822 = vmatpush.msra.mxu0 %v306
    %823 = vmatpush.msra.mxu0 %v302
    %824 = vmatpush.msra.mxu0 %v298
    %825 = vmatpush.msra.mxu0 %v294
    %826 = vmatpush.msra.mxu0 %v290
    %827 = vmatpush.msra.mxu0 %v286
    %828 = vmatpush.msra.mxu0 %v282
    %829 = vmatpush.msra.mxu0 %v278
    %830 = vmatpush.msra.mxu0 %v274
    %831 = vmatmul.f32.gmra.mxu0 %v813
    %v832 = vpop.f32.mrf.mxu0
    %v833 = vadd.f32 0.0, %v832
    %834 = vdwg.mxu0
    %835 = vmatpush.msra.mxu0 %v335
    %836 = vmatpush.msra.mxu0 %v331
    %837 = vmatpush.msra.mxu0 %v327
    %838 = vmatpush.msra.mxu0 %v323
    %839 = vmatpush.msra.mxu0 %v319
    %840 = vmatpush.msra.mxu0 %v315
    %841 = vmatpush.msra.mxu0 %v311
    %842 = vmatpush.msra.mxu0 %v307
    %843 = vmatpush.msra.mxu0 %v303
    %844 = vmatpush.msra.mxu0 %v299
    %845 = vmatpush.msra.mxu0 %v295
    %846 = vmatpush.msra.mxu0 %v291
    %847 = vmatpush.msra.mxu0 %v287
    %848 = vmatpush.msra.mxu0 %v283
    %849 = vmatpush.msra.mxu0 %v279
    %850 = vmatpush.msra.mxu0 %v275
    %851 = vmatmul.f32.gmra.mxu0 %v813
    %v852 = vpop.f32.mrf.mxu0
    %v853 = vadd.f32 0.0, %v852
    %854 = vdwg.mxu0
    %855 = vmatpush.msra.mxu0 %v336
    %856 = vmatpush.msra.mxu0 %v332
    %857 = vmatpush.msra.mxu0 %v328
    %858 = vmatpush.msra.mxu0 %v324
    %859 = vmatpush.msra.mxu0 %v320
    %860 = vmatpush.msra.mxu0 %v316
    %861 = vmatpush.msra.mxu0 %v312
    %862 = vmatpush.msra.mxu0 %v308
    %863 = vmatpush.msra.mxu0 %v304
    %864 = vmatpush.msra.mxu0 %v300
    %865 = vmatpush.msra.mxu0 %v296
    %866 = vmatpush.msra.mxu0 %v292
    %867 = vmatpush.msra.mxu0 %v288
    %868 = vmatpush.msra.mxu0 %v284
    %869 = vmatpush.msra.mxu0 %v280
    %870 = vmatpush.msra.mxu0 %v276
    %871 = vmatmul.f32.gmra.mxu0 %v813
    %v872 = vpop.f32.mrf.mxu0
    %v873 = vadd.f32 0.0, %v872
    %874 = vdwg.mxu0
    %875 = vmatpush.msra.mxu0 %v337
    %876 = vmatpush.msra.mxu0 %v333
    %877 = vmatpush.msra.mxu0 %v329
    %878 = vmatpush.msra.mxu0 %v325
    %879 = vmatpush.msra.mxu0 %v321
    %880 = vmatpush.msra.mxu0 %v317
    %881 = vmatpush.msra.mxu0 %v313
    %882 = vmatpush.msra.mxu0 %v309
    %883 = vmatpush.msra.mxu0 %v305
    %884 = vmatpush.msra.mxu0 %v301
    %885 = vmatpush.msra.mxu0 %v297
    %886 = vmatpush.msra.mxu0 %v293
    %887 = vmatpush.msra.mxu0 %v289
    %888 = vmatpush.msra.mxu0 %v285
    %889 = vmatpush.msra.mxu0 %v281
    %890 = vmatpush.msra.mxu0 %v277
    %891 = vmatmul.f32.gmra.mxu0 %v813
    %v892 = vpop.f32.mrf.mxu0
    %v893 = vadd.f32 0.0, %v892
    %894 = vdwg.mxu0
    %v899 = vrot.slane %v833, 2
    %v900 = vrot.slane %v853, 2
    %v901 = vrot.slane %v873, 2
    %v902 = vrot.slane %v893, 2
    %v907 = vadd.f32 %v200, %v899
    %v908 = vadd.f32 %v223, %v900
    %v909 = vadd.f32 %v246, %v901
    %v910 = vadd.f32 %v269, %v902
    %v911 = vxor.u32 %v907, 2147483648
    %v912 = vmul.f32 %v911, 1.442695
    %v913 = vpow.pop %v912
    %v914 = vadd.f32 %v913, 1.0
    %v915 = vrcp.pop %v914
    %v916 = vmul.f32 %v914, %v915
    %v917 = vsub.f32 1.0, %v916
    %v918 = vmul.f32 %v915, %v917
    %v919 = vadd.f32 %v915, %v918
    %vm920 = vweird.f32 %v914
    %vm921 = vweird.f32 %v915
    %vm922 = vmor %vm920, %vm921
    %v923 = vsel %vm922, %v915, %v919
    %v924 = vand.u32 2147483647, %v914
    %vm925 = vcmp.eq.f32.partialorder %v924, 8.507059e+37
    %v926 = vand.u32 %v914, 2147483648
    %v927 = vor.u32 1.1754944e-38, %v926
    %v928 = vsel %vm925, %v927, %v923
    %v929 = vmul.f32 1.0, %v928
    %v930 = vxor.u32 %v908, 2147483648
    %v931 = vmul.f32 %v930, 1.442695
    %v932 = vpow.pop %v931
    %v933 = vadd.f32 %v932, 1.0
    %v934 = vrcp.pop %v933
    %v935 = vmul.f32 %v933, %v934
    %v936 = vsub.f32 1.0, %v935
    %v937 = vmul.f32 %v934, %v936
    %v938 = vadd.f32 %v934, %v937
    %vm939 = vweird.f32 %v933
    %vm940 = vweird.f32 %v934
    %vm941 = vmor %vm939, %vm940
    %v942 = vsel %vm941, %v934, %v938
    %v943 = vand.u32 2147483647, %v933
    %vm944 = vcmp.eq.f32.partialorder %v943, 8.507059e+37
    %v945 = vand.u32 %v933, 2147483648
    %v946 = vor.u32 1.1754944e-38, %v945
    %v947 = vsel %vm944, %v946, %v942
    %v948 = vmul.f32 1.0, %v947
    %v949 = vtanh.pop %v909
    %v950 = vxor.u32 %v910, 2147483648
    %v951 = vmul.f32 %v950, 1.442695
    %v952 = vpow.pop %v951
    %v953 = vadd.f32 %v952, 1.0
    %v954 = vrcp.pop %v953
    %v955 = vmul.f32 %v953, %v954
    %v956 = vsub.f32 1.0, %v955
    %v957 = vmul.f32 %v954, %v956
    %v958 = vadd.f32 %v954, %v957
    %vm959 = vweird.f32 %v953
    %vm960 = vweird.f32 %v954
    %vm961 = vmor %vm959, %vm960
    %v962 = vsel %vm961, %v954, %v958
    %v963 = vand.u32 2147483647, %v953
    %vm964 = vcmp.eq.f32.partialorder %v963, 8.507059e+37
    %v965 = vand.u32 %v953, 2147483648
    %v966 = vor.u32 1.1754944e-38, %v965
    %v967 = vsel %vm964, %v966, %v962
    %v968 = vmul.f32 1.0, %v967
    %v970 = vrot.slane %v809, 6
    %v972 = vmul.f32 %v948, %v970
    %v973 = vmul.f32 %v929, %v949
    %v974 = vadd.f32 %v972, %v973
    %v975 = vtanh.pop %v974
    %v976 = vmul.f32 %v968, %v975
    %v978 = vrot.slane %v976, 6
    %980 = vmatpush.msra.mxu0 %v334
    %981 = vmatpush.msra.mxu0 %v330
    %982 = vmatpush.msra.mxu0 %v326
    %983 = vmatpush.msra.mxu0 %v322
    %984 = vmatpush.msra.mxu0 %v318
    %985 = vmatpush.msra.mxu0 %v314
    %986 = vmatpush.msra.mxu0 %v310
    %987 = vmatpush.msra.mxu0 %v306
    %988 = vmatpush.msra.mxu0 %v302
    %989 = vmatpush.msra.mxu0 %v298
    %990 = vmatpush.msra.mxu0 %v294
    %991 = vmatpush.msra.mxu0 %v290
    %992 = vmatpush.msra.mxu0 %v286
    %993 = vmatpush.msra.mxu0 %v282
    %994 = vmatpush.msra.mxu0 %v278
    %995 = vmatpush.msra.mxu0 %v274
    %996 = vmatmul.f32.gmra.mxu0 %v978
    %v997 = vpop.f32.mrf.mxu0
    %v998 = vadd.f32 0.0, %v997
    %999 = vdwg.mxu0
    %1000 = vmatpush.msra.mxu0 %v335
    %1001 = vmatpush.msra.mxu0 %v331
    %1002 = vmatpush.msra.mxu0 %v327
    %1003 = vmatpush.msra.mxu0 %v323
    %1004 = vmatpush.msra.mxu0 %v319
    %1005 = vmatpush.msra.mxu0 %v315
    %1006 = vmatpush.msra.mxu0 %v311
    %1007 = vmatpush.msra.mxu0 %v307
    %1008 = vmatpush.msra.mxu0 %v303
    %1009 = vmatpush.msra.mxu0 %v299
    %1010 = vmatpush.msra.mxu0 %v295
    %1011 = vmatpush.msra.mxu0 %v291
    %1012 = vmatpush.msra.mxu0 %v287
    %1013 = vmatpush.msra.mxu0 %v283
    %1014 = vmatpush.msra.mxu0 %v279
    %1015 = vmatpush.msra.mxu0 %v275
    %1016 = vmatmul.f32.gmra.mxu0 %v978
    %v1017 = vpop.f32.mrf.mxu0
    %v1018 = vadd.f32 0.0, %v1017
    %1019 = vdwg.mxu0
    %1020 = vmatpush.msra.mxu0 %v336
    %1021 = vmatpush.msra.mxu0 %v332
    %1022 = vmatpush.msra.mxu0 %v328
    %1023 = vmatpush.msra.mxu0 %v324
    %1024 = vmatpush.msra.mxu0 %v320
    %1025 = vmatpush.msra.mxu0 %v316
    %1026 = vmatpush.msra.mxu0 %v312
    %1027 = vmatpush.msra.mxu0 %v308
    %1028 = vmatpush.msra.mxu0 %v304
    %1029 = vmatpush.msra.mxu0 %v300
    %1030 = vmatpush.msra.mxu0 %v296
    %1031 = vmatpush.msra.mxu0 %v292
    %1032 = vmatpush.msra.mxu0 %v288
    %1033 = vmatpush.msra.mxu0 %v284
    %1034 = vmatpush.msra.mxu0 %v280
    %1035 = vmatpush.msra.mxu0 %v276
    %1036 = vmatmul.f32.gmra.mxu0 %v978
    %v1037 = vpop.f32.mrf.mxu0
    %v1038 = vadd.f32 0.0, %v1037
    %1039 = vdwg.mxu0
    %1040 = vmatpush.msra.mxu0 %v337
    %1041 = vmatpush.msra.mxu0 %v333
    %1042 = vmatpush.msra.mxu0 %v329
    %1043 = vmatpush.msra.mxu0 %v325
    %1044 = vmatpush.msra.mxu0 %v321
    %1045 = vmatpush.msra.mxu0 %v317
    %1046 = vmatpush.msra.mxu0 %v313
    %1047 = vmatpush.msra.mxu0 %v309
    %1048 = vmatpush.msra.mxu0 %v305
    %1049 = vmatpush.msra.mxu0 %v301
    %1050 = vmatpush.msra.mxu0 %v297
    %1051 = vmatpush.msra.mxu0 %v293
    %1052 = vmatpush.msra.mxu0 %v289
    %1053 = vmatpush.msra.mxu0 %v285
    %1054 = vmatpush.msra.mxu0 %v281
    %1055 = vmatpush.msra.mxu0 %v277
    %1056 = vmatmul.f32.gmra.mxu0 %v978
    %v1057 = vpop.f32.mrf.mxu0
    %v1058 = vadd.f32 0.0, %v1057
    %1059 = vdwg.mxu0
    %v1060 = vadd.f32 %v203, %v998
    %v1061 = vadd.f32 %v226, %v1018
    %v1062 = vadd.f32 %v249, %v1038
    %v1063 = vadd.f32 %v272, %v1058
    %v1064 = vxor.u32 %v1060, 2147483648
    %v1065 = vmul.f32 %v1064, 1.442695
    %v1066 = vpow.pop %v1065
    %v1067 = vadd.f32 %v1066, 1.0
    %v1068 = vrcp.pop %v1067
    %v1069 = vmul.f32 %v1067, %v1068
    %v1070 = vsub.f32 1.0, %v1069
    %v1071 = vmul.f32 %v1068, %v1070
    %v1072 = vadd.f32 %v1068, %v1071
    %vm1073 = vweird.f32 %v1067
    %vm1074 = vweird.f32 %v1068
    %vm1075 = vmor %vm1073, %vm1074
    %v1076 = vsel %vm1075, %v1068, %v1072
    %v1077 = vand.u32 2147483647, %v1067
    %vm1078 = vcmp.eq.f32.partialorder %v1077, 8.507059e+37
    %v1079 = vand.u32 %v1067, 2147483648
    %v1080 = vor.u32 1.1754944e-38, %v1079
    %v1081 = vsel %vm1078, %v1080, %v1076
    %v1082 = vmul.f32 1.0, %v1081
    %v1083 = vxor.u32 %v1061, 2147483648
    %v1084 = vmul.f32 %v1083, 1.442695
    %v1085 = vpow.pop %v1084
    %v1086 = vadd.f32 %v1085, 1.0
    %v1087 = vrcp.pop %v1086
    %v1088 = vmul.f32 %v1086, %v1087
    %v1089 = vsub.f32 1.0, %v1088
    %v1090 = vmul.f32 %v1087, %v1089
    %v1091 = vadd.f32 %v1087, %v1090
    %vm1092 = vweird.f32 %v1086
    %vm1093 = vweird.f32 %v1087
    %vm1094 = vmor %vm1092, %vm1093
    %v1095 = vsel %vm1094, %v1087, %v1091
    %v1096 = vand.u32 2147483647, %v1086
    %vm1097 = vcmp.eq.f32.partialorder %v1096, 8.507059e+37
    %v1098 = vand.u32 %v1086, 2147483648
    %v1099 = vor.u32 1.1754944e-38, %v1098
    %v1100 = vsel %vm1097, %v1099, %v1095
    %v1101 = vmul.f32 1.0, %v1100
    %v1102 = vtanh.pop %v1062
    %v1103 = vxor.u32 %v1063, 2147483648
    %v1104 = vmul.f32 %v1103, 1.442695
    %v1105 = vpow.pop %v1104
    %v1106 = vadd.f32 %v1105, 1.0
    %v1107 = vrcp.pop %v1106
    %v1108 = vmul.f32 %v1106, %v1107
    %v1109 = vsub.f32 1.0, %v1108
    %v1110 = vmul.f32 %v1107, %v1109
    %v1111 = vadd.f32 %v1107, %v1110
    %vm1112 = vweird.f32 %v1106
    %vm1113 = vweird.f32 %v1107
    %vm1114 = vmor %vm1112, %vm1113
    %v1115 = vsel %vm1114, %v1107, %v1111
    %v1116 = vand.u32 2147483647, %v1106
    %vm1117 = vcmp.eq.f32.partialorder %v1116, 8.507059e+37
    %v1118 = vand.u32 %v1106, 2147483648
    %v1119 = vor.u32 1.1754944e-38, %v1118
    %v1120 = vsel %vm1117, %v1119, %v1115
    %v1121 = vmul.f32 1.0, %v1120
    %v1123 = vrot.slane %v974, 6
    %v1125 = vmul.f32 %v1101, %v1123
    %v1126 = vmul.f32 %v1082, %v1102
    %v1127 = vadd.f32 %v1125, %v1126
    %v1128 = vtanh.pop %v1127
    %v1129 = vmul.f32 %v1121, %v1128
    %1130 = vmatpush.msra.mxu0 %v334
    %1131 = vmatpush.msra.mxu0 %v330
    %1132 = vmatpush.msra.mxu0 %v326
    %1133 = vmatpush.msra.mxu0 %v322
    %1134 = vmatpush.msra.mxu0 %v318
    %1135 = vmatpush.msra.mxu0 %v314
    %1136 = vmatpush.msra.mxu0 %v310
    %1137 = vmatpush.msra.mxu0 %v306
    %1138 = vmatpush.msra.mxu0 %v302
    %1139 = vmatpush.msra.mxu0 %v298
    %1140 = vmatpush.msra.mxu0 %v294
    %1141 = vmatpush.msra.mxu0 %v290
    %1142 = vmatpush.msra.mxu0 %v286
    %1143 = vmatpush.msra.mxu0 %v282
    %1144 = vmatpush.msra.mxu0 %v278
    %1145 = vmatpush.msra.mxu0 %v274
    %1146 = vmatmul.f32.gmra.mxu0 %v1129
    %v1147 = vpop.f32.mrf.mxu0
    %v1148 = vadd.f32 0.0, %v1147
    %1149 = vdwg.mxu0
    %1150 = vmatpush.msra.mxu0 %v335
    %1151 = vmatpush.msra.mxu0 %v331
    %1152 = vmatpush.msra.mxu0 %v327
    %1153 = vmatpush.msra.mxu0 %v323
    %1154 = vmatpush.msra.mxu0 %v319
    %1155 = vmatpush.msra.mxu0 %v315
    %1156 = vmatpush.msra.mxu0 %v311
    %1157 = vmatpush.msra.mxu0 %v307
    %1158 = vmatpush.msra.mxu0 %v303
    %1159 = vmatpush.msra.mxu0 %v299
    %1160 = vmatpush.msra.mxu0 %v295
    %1161 = vmatpush.msra.mxu0 %v291
    %1162 = vmatpush.msra.mxu0 %v287
    %1163 = vmatpush.msra.mxu0 %v283
    %1164 = vmatpush.msra.mxu0 %v279
    %1165 = vmatpush.msra.mxu0 %v275
    %1166 = vmatmul.f32.gmra.mxu0 %v1129
    %v1167 = vpop.f32.mrf.mxu0
    %v1168 = vadd.f32 0.0, %v1167
    %1169 = vdwg.mxu0
    %1170 = vmatpush.msra.mxu0 %v336
    %1171 = vmatpush.msra.mxu0 %v332
    %1172 = vmatpush.msra.mxu0 %v328
    %1173 = vmatpush.msra.mxu0 %v324
    %1174 = vmatpush.msra.mxu0 %v320
    %1175 = vmatpush.msra.mxu0 %v316
    %1176 = vmatpush.msra.mxu0 %v312
    %1177 = vmatpush.msra.mxu0 %v308
    %1178 = vmatpush.msra.mxu0 %v304
    %1179 = vmatpush.msra.mxu0 %v300
    %1180 = vmatpush.msra.mxu0 %v296
    %1181 = vmatpush.msra.mxu0 %v292
    %1182 = vmatpush.msra.mxu0 %v288
    %1183 = vmatpush.msra.mxu0 %v284
    %1184 = vmatpush.msra.mxu0 %v280
    %1185 = vmatpush.msra.mxu0 %v276
    %1186 = vmatmul.f32.gmra.mxu0 %v1129
    %v1187 = vpop.f32.mrf.mxu0
    %v1188 = vadd.f32 0.0, %v1187
    %1189 = vdwg.mxu0
    %1190 = vmatpush.msra.mxu0 %v337
    %1191 = vmatpush.msra.mxu0 %v333
    %1192 = vmatpush.msra.mxu0 %v329
    %1193 = vmatpush.msra.mxu0 %v325
    %1194 = vmatpush.msra.mxu0 %v321
    %1195 = vmatpush.msra.mxu0 %v317
    %1196 = vmatpush.msra.mxu0 %v313
    %1197 = vmatpush.msra.mxu0 %v309
    %1198 = vmatpush.msra.mxu0 %v305
    %1199 = vmatpush.msra.mxu0 %v301
    %1200 = vmatpush.msra.mxu0 %v297
    %1201 = vmatpush.msra.mxu0 %v293
    %1202 = vmatpush.msra.mxu0 %v289
    %1203 = vmatpush.msra.mxu0 %v285
    %1204 = vmatpush.msra.mxu0 %v281
    %1205 = vmatpush.msra.mxu0 %v277
    %1206 = vmatmul.f32.gmra.mxu0 %v1129
    %v1207 = vpop.f32.mrf.mxu0
    %v1208 = vadd.f32 0.0, %v1207
    %1209 = vdwg.mxu0
    %v1214 = vrot.slane %v1148, 6
    %v1215 = vrot.slane %v1168, 6
    %v1216 = vrot.slane %v1188, 6
    %v1217 = vrot.slane %v1208, 6
    %v1222 = vadd.f32 %v203, %v1214
    %v1223 = vadd.f32 %v226, %v1215
    %v1224 = vadd.f32 %v249, %v1216
    %v1225 = vadd.f32 %v272, %v1217
    %v1226 = vxor.u32 %v1222, 2147483648
    %v1227 = vmul.f32 %v1226, 1.442695
    %v1228 = vpow.pop %v1227
    %v1229 = vadd.f32 %v1228, 1.0
    %v1230 = vrcp.pop %v1229
    %v1231 = vmul.f32 %v1229, %v1230
    %v1232 = vsub.f32 1.0, %v1231
    %v1233 = vmul.f32 %v1230, %v1232
    %v1234 = vadd.f32 %v1230, %v1233
    %vm1235 = vweird.f32 %v1229
    %vm1236 = vweird.f32 %v1230
    %vm1237 = vmor %vm1235, %vm1236
    %v1238 = vsel %vm1237, %v1230, %v1234
    %v1239 = vand.u32 2147483647, %v1229
    %vm1240 = vcmp.eq.f32.partialorder %v1239, 8.507059e+37
    %v1241 = vand.u32 %v1229, 2147483648
    %v1242 = vor.u32 1.1754944e-38, %v1241
    %v1243 = vsel %vm1240, %v1242, %v1238
    %v1244 = vmul.f32 1.0, %v1243
    %v1245 = vxor.u32 %v1223, 2147483648
    %v1246 = vmul.f32 %v1245, 1.442695
    %v1247 = vpow.pop %v1246
    %v1248 = vadd.f32 %v1247, 1.0
    %v1249 = vrcp.pop %v1248
    %v1250 = vmul.f32 %v1248, %v1249
    %v1251 = vsub.f32 1.0, %v1250
    %v1252 = vmul.f32 %v1249, %v1251
    %v1253 = vadd.f32 %v1249, %v1252
    %vm1254 = vweird.f32 %v1248
    %vm1255 = vweird.f32 %v1249
    %vm1256 = vmor %vm1254, %vm1255
    %v1257 = vsel %vm1256, %v1249, %v1253
    %v1258 = vand.u32 2147483647, %v1248
    %vm1259 = vcmp.eq.f32.partialorder %v1258, 8.507059e+37
    %v1260 = vand.u32 %v1248, 2147483648
    %v1261 = vor.u32 1.1754944e-38, %v1260
    %v1262 = vsel %vm1259, %v1261, %v1257
    %v1263 = vmul.f32 1.0, %v1262
    %v1264 = vtanh.pop %v1224
    %v1265 = vxor.u32 %v1225, 2147483648
    %v1266 = vmul.f32 %v1265, 1.442695
    %v1267 = vpow.pop %v1266
    %v1268 = vadd.f32 %v1267, 1.0
    %v1269 = vrcp.pop %v1268
    %v1270 = vmul.f32 %v1268, %v1269
    %v1271 = vsub.f32 1.0, %v1270
    %v1272 = vmul.f32 %v1269, %v1271
    %v1273 = vadd.f32 %v1269, %v1272
    %vm1274 = vweird.f32 %v1268
    %vm1275 = vweird.f32 %v1269
    %vm1276 = vmor %vm1274, %vm1275
    %v1277 = vsel %vm1276, %v1269, %v1273
    %v1278 = vand.u32 2147483647, %v1268
    %vm1279 = vcmp.eq.f32.partialorder %v1278, 8.507059e+37
    %v1280 = vand.u32 %v1268, 2147483648
    %v1281 = vor.u32 1.1754944e-38, %v1280
    %v1282 = vsel %vm1279, %v1281, %v1277
    %v1283 = vmul.f32 1.0, %v1282
    %v1285 = vrot.slane %v1127, 6
    %v1287 = vmul.f32 %v1263, %v1285
    %v1288 = vmul.f32 %v1244, %v1264
    %v1289 = vadd.f32 %v1287, %v1288
    %v1290 = vtanh.pop %v1289
    %v1291 = vmul.f32 %v1283, %v1290
    %v1293 = vrot.slane %v1291, 2
    %1295 = vmatpush.msra.mxu0 %v334
    %1296 = vmatpush.msra.mxu0 %v330
    %1297 = vmatpush.msra.mxu0 %v326
    %1298 = vmatpush.msra.mxu0 %v322
    %1299 = vmatpush.msra.mxu0 %v318
    %1300 = vmatpush.msra.mxu0 %v314
    %1301 = vmatpush.msra.mxu0 %v310
    %1302 = vmatpush.msra.mxu0 %v306
    %1303 = vmatpush.msra.mxu0 %v302
    %1304 = vmatpush.msra.mxu0 %v298
    %1305 = vmatpush.msra.mxu0 %v294
    %1306 = vmatpush.msra.mxu0 %v290
    %1307 = vmatpush.msra.mxu0 %v286
    %1308 = vmatpush.msra.mxu0 %v282
    %1309 = vmatpush.msra.mxu0 %v278
    %1310 = vmatpush.msra.mxu0 %v274
    %1311 = vmatmul.f32.gmra.mxu0 %v1293
    %v1312 = vpop.f32.mrf.mxu0
    %v1313 = vadd.f32 0.0, %v1312
    %1314 = vdwg.mxu0
    %1315 = vmatpush.msra.mxu0 %v335
    %1316 = vmatpush.msra.mxu0 %v331
    %1317 = vmatpush.msra.mxu0 %v327
    %1318 = vmatpush.msra.mxu0 %v323
    %1319 = vmatpush.msra.mxu0 %v319
    %1320 = vmatpush.msra.mxu0 %v315
    %1321 = vmatpush.msra.mxu0 %v311
    %1322 = vmatpush.msra.mxu0 %v307
    %1323 = vmatpush.msra.mxu0 %v303
    %1324 = vmatpush.msra.mxu0 %v299
    %1325 = vmatpush.msra.mxu0 %v295
    %1326 = vmatpush.msra.mxu0 %v291
    %1327 = vmatpush.msra.mxu0 %v287
    %1328 = vmatpush.msra.mxu0 %v283
    %1329 = vmatpush.msra.mxu0 %v279
    %1330 = vmatpush.msra.mxu0 %v275
    %1331 = vmatmul.f32.gmra.mxu0 %v1293
    %v1332 = vpop.f32.mrf.mxu0
    %v1333 = vadd.f32 0.0, %v1332
    %1334 = vdwg.mxu0
    %1335 = vmatpush.msra.mxu0 %v336
    %1336 = vmatpush.msra.mxu0 %v332
    %1337 = vmatpush.msra.mxu0 %v328
    %1338 = vmatpush.msra.mxu0 %v324
    %1339 = vmatpush.msra.mxu0 %v320
    %1340 = vmatpush.msra.mxu0 %v316
    %1341 = vmatpush.msra.mxu0 %v312
    %1342 = vmatpush.msra.mxu0 %v308
    %1343 = vmatpush.msra.mxu0 %v304
    %1344 = vmatpush.msra.mxu0 %v300
    %1345 = vmatpush.msra.mxu0 %v296
    %1346 = vmatpush.msra.mxu0 %v292
    %1347 = vmatpush.msra.mxu0 %v288
    %1348 = vmatpush.msra.mxu0 %v284
    %1349 = vmatpush.msra.mxu0 %v280
    %1350 = vmatpush.msra.mxu0 %v276
    %1351 = vmatmul.f32.gmra.mxu0 %v1293
    %v1352 = vpop.f32.mrf.mxu0
    %v1353 = vadd.f32 0.0, %v1352
    %1354 = vdwg.mxu0
    %1355 = vmatpush.msra.mxu0 %v337
    %1356 = vmatpush.msra.mxu0 %v333
    %1357 = vmatpush.msra.mxu0 %v329
    %1358 = vmatpush.msra.mxu0 %v325
    %1359 = vmatpush.msra.mxu0 %v321
    %1360 = vmatpush.msra.mxu0 %v317
    %1361 = vmatpush.msra.mxu0 %v313
    %1362 = vmatpush.msra.mxu0 %v309
    %1363 = vmatpush.msra.mxu0 %v305
    %1364 = vmatpush.msra.mxu0 %v301
    %1365 = vmatpush.msra.mxu0 %v297
    %1366 = vmatpush.msra.mxu0 %v293
    %1367 = vmatpush.msra.mxu0 %v289
    %1368 = vmatpush.msra.mxu0 %v285
    %1369 = vmatpush.msra.mxu0 %v281
    %1370 = vmatpush.msra.mxu0 %v277
    %1371 = vmatmul.f32.gmra.mxu0 %v1293
    %v1372 = vpop.f32.mrf.mxu0
    %v1373 = vadd.f32 0.0, %v1372
    %1374 = vdwg.mxu0
    %v1379 = vrot.slane %v1313, 4
    %v1380 = vrot.slane %v1333, 4
    %v1381 = vrot.slane %v1353, 4
    %v1382 = vrot.slane %v1373, 4
    %v1387 = vadd.f32 %v203, %v1379
    %v1388 = vadd.f32 %v226, %v1380
    %v1389 = vadd.f32 %v249, %v1381
    %v1390 = vadd.f32 %v272, %v1382
    %v1391 = vxor.u32 %v1387, 2147483648
    %v1392 = vmul.f32 %v1391, 1.442695
    %v1393 = vpow.pop %v1392
    %v1394 = vadd.f32 %v1393, 1.0
    %v1395 = vrcp.pop %v1394
    %v1396 = vmul.f32 %v1394, %v1395
    %v1397 = vsub.f32 1.0, %v1396
    %v1398 = vmul.f32 %v1395, %v1397
    %v1399 = vadd.f32 %v1395, %v1398
    %vm1400 = vweird.f32 %v1394
    %vm1401 = vweird.f32 %v1395
    %vm1402 = vmor %vm1400, %vm1401
    %v1403 = vsel %vm1402, %v1395, %v1399
    %v1404 = vand.u32 2147483647, %v1394
    %vm1405 = vcmp.eq.f32.partialorder %v1404, 8.507059e+37
    %v1406 = vand.u32 %v1394, 2147483648
    %v1407 = vor.u32 1.1754944e-38, %v1406
    %v1408 = vsel %vm1405, %v1407, %v1403
    %v1409 = vmul.f32 1.0, %v1408
    %v1410 = vxor.u32 %v1388, 2147483648
    %v1411 = vmul.f32 %v1410, 1.442695
    %v1412 = vpow.pop %v1411
    %v1413 = vadd.f32 %v1412, 1.0
    %v1414 = vrcp.pop %v1413
    %v1415 = vmul.f32 %v1413, %v1414
    %v1416 = vsub.f32 1.0, %v1415
    %v1417 = vmul.f32 %v1414, %v1416
    %v1418 = vadd.f32 %v1414, %v1417
    %vm1419 = vweird.f32 %v1413
    %vm1420 = vweird.f32 %v1414
    %vm1421 = vmor %vm1419, %vm1420
    %v1422 = vsel %vm1421, %v1414, %v1418
    %v1423 = vand.u32 2147483647, %v1413
    %vm1424 = vcmp.eq.f32.partialorder %v1423, 8.507059e+37
    %v1425 = vand.u32 %v1413, 2147483648
    %v1426 = vor.u32 1.1754944e-38, %v1425
    %v1427 = vsel %vm1424, %v1426, %v1422
    %v1428 = vmul.f32 1.0, %v1427
    %v1429 = vtanh.pop %v1389
    %v1430 = vxor.u32 %v1390, 2147483648
    %v1431 = vmul.f32 %v1430, 1.442695
    %v1432 = vpow.pop %v1431
    %v1433 = vadd.f32 %v1432, 1.0
    %v1434 = vrcp.pop %v1433
    %v1435 = vmul.f32 %v1433, %v1434
    %v1436 = vsub.f32 1.0, %v1435
    %v1437 = vmul.f32 %v1434, %v1436
    %v1438 = vadd.f32 %v1434, %v1437
    %vm1439 = vweird.f32 %v1433
    %vm1440 = vweird.f32 %v1434
    %vm1441 = vmor %vm1439, %vm1440
    %v1442 = vsel %vm1441, %v1434, %v1438
    %v1443 = vand.u32 2147483647, %v1433
    %vm1444 = vcmp.eq.f32.partialorder %v1443, 8.507059e+37
    %v1445 = vand.u32 %v1433, 2147483648
    %v1446 = vor.u32 1.1754944e-38, %v1445
    %v1447 = vsel %vm1444, %v1446, %v1442
    %v1448 = vmul.f32 1.0, %v1447
    %v1450 = vrot.slane %v1289, 6
    %v1452 = vmul.f32 %v1428, %v1450
    %v1453 = vmul.f32 %v1409, %v1429
    %v1454 = vadd.f32 %v1452, %v1453
    %v1455 = vtanh.pop %v1454
    %v1456 = vmul.f32 %v1448, %v1455
    %v1458 = vrot.slane %v1456, 4
    %1460 = vmatpush.msra.mxu0 %v334
    %1461 = vmatpush.msra.mxu0 %v330
    %1462 = vmatpush.msra.mxu0 %v326
    %1463 = vmatpush.msra.mxu0 %v322
    %1464 = vmatpush.msra.mxu0 %v318
    %1465 = vmatpush.msra.mxu0 %v314
    %1466 = vmatpush.msra.mxu0 %v310
    %1467 = vmatpush.msra.mxu0 %v306
    %1468 = vmatpush.msra.mxu0 %v302
    %1469 = vmatpush.msra.mxu0 %v298
    %1470 = vmatpush.msra.mxu0 %v294
    %1471 = vmatpush.msra.mxu0 %v290
    %1472 = vmatpush.msra.mxu0 %v286
    %1473 = vmatpush.msra.mxu0 %v282
    %1474 = vmatpush.msra.mxu0 %v278
    %1475 = vmatpush.msra.mxu0 %v274
    %1476 = vmatmul.f32.gmra.mxu0 %v1458
    %v1477 = vpop.f32.mrf.mxu0
    %v1478 = vadd.f32 0.0, %v1477
    %1479 = vdwg.mxu0
    %1480 = vmatpush.msra.mxu0 %v335
    %1481 = vmatpush.msra.mxu0 %v331
    %1482 = vmatpush.msra.mxu0 %v327
    %1483 = vmatpush.msra.mxu0 %v323
    %1484 = vmatpush.msra.mxu0 %v319
    %1485 = vmatpush.msra.mxu0 %v315
    %1486 = vmatpush.msra.mxu0 %v311
    %1487 = vmatpush.msra.mxu0 %v307
    %1488 = vmatpush.msra.mxu0 %v303
    %1489 = vmatpush.msra.mxu0 %v299
    %1490 = vmatpush.msra.mxu0 %v295
    %1491 = vmatpush.msra.mxu0 %v291
    %1492 = vmatpush.msra.mxu0 %v287
    %1493 = vmatpush.msra.mxu0 %v283
    %1494 = vmatpush.msra.mxu0 %v279
    %1495 = vmatpush.msra.mxu0 %v275
    %1496 = vmatmul.f32.gmra.mxu0 %v1458
    %v1497 = vpop.f32.mrf.mxu0
    %v1498 = vadd.f32 0.0, %v1497
    %1499 = vdwg.mxu0
    %1500 = vmatpush.msra.mxu0 %v336
    %1501 = vmatpush.msra.mxu0 %v332
    %1502 = vmatpush.msra.mxu0 %v328
    %1503 = vmatpush.msra.mxu0 %v324
    %1504 = vmatpush.msra.mxu0 %v320
    %1505 = vmatpush.msra.mxu0 %v316
    %1506 = vmatpush.msra.mxu0 %v312
    %1507 = vmatpush.msra.mxu0 %v308
    %1508 = vmatpush.msra.mxu0 %v304
    %1509 = vmatpush.msra.mxu0 %v300
    %1510 = vmatpush.msra.mxu0 %v296
    %1511 = vmatpush.msra.mxu0 %v292
    %1512 = vmatpush.msra.mxu0 %v288
    %1513 = vmatpush.msra.mxu0 %v284
    %1514 = vmatpush.msra.mxu0 %v280
    %1515 = vmatpush.msra.mxu0 %v276
    %1516 = vmatmul.f32.gmra.mxu0 %v1458
    %v1517 = vpop.f32.mrf.mxu0
    %v1518 = vadd.f32 0.0, %v1517
    %1519 = vdwg.mxu0
    %1520 = vmatpush.msra.mxu0 %v337
    %1521 = vmatpush.msra.mxu0 %v333
    %1522 = vmatpush.msra.mxu0 %v329
    %1523 = vmatpush.msra.mxu0 %v325
    %1524 = vmatpush.msra.mxu0 %v321
    %1525 = vmatpush.msra.mxu0 %v317
    %1526 = vmatpush.msra.mxu0 %v313
    %1527 = vmatpush.msra.mxu0 %v309
    %1528 = vmatpush.msra.mxu0 %v305
    %1529 = vmatpush.msra.mxu0 %v301
    %1530 = vmatpush.msra.mxu0 %v297
    %1531 = vmatpush.msra.mxu0 %v293
    %1532 = vmatpush.msra.mxu0 %v289
    %1533 = vmatpush.msra.mxu0 %v285
    %1534 = vmatpush.msra.mxu0 %v281
    %1535 = vmatpush.msra.mxu0 %v277
    %1536 = vmatmul.f32.gmra.mxu0 %v1458
    %v1537 = vpop.f32.mrf.mxu0
    %v1538 = vadd.f32 0.0, %v1537
    %1539 = vdwg.mxu0
    %v1544 = vrot.slane %v1478, 2
    %v1545 = vrot.slane %v1498, 2
    %v1546 = vrot.slane %v1518, 2
    %v1547 = vrot.slane %v1538, 2
    %v1552 = vadd.f32 %v203, %v1544
    %v1553 = vadd.f32 %v226, %v1545
    %v1554 = vadd.f32 %v249, %v1546
    %v1555 = vadd.f32 %v272, %v1547
    %v1556 = vxor.u32 %v1552, 2147483648
    %v1557 = vmul.f32 %v1556, 1.442695
    %v1558 = vpow.pop %v1557
    %v1559 = vadd.f32 %v1558, 1.0
    %v1560 = vrcp.pop %v1559
    %v1561 = vmul.f32 %v1559, %v1560
    %v1562 = vsub.f32 1.0, %v1561
    %v1563 = vmul.f32 %v1560, %v1562
    %v1564 = vadd.f32 %v1560, %v1563
    %vm1565 = vweird.f32 %v1559
    %vm1566 = vweird.f32 %v1560
    %vm1567 = vmor %vm1565, %vm1566
    %v1568 = vsel %vm1567, %v1560, %v1564
    %v1569 = vand.u32 2147483647, %v1559
    %vm1570 = vcmp.eq.f32.partialorder %v1569, 8.507059e+37
    %v1571 = vand.u32 %v1559, 2147483648
    %v1572 = vor.u32 1.1754944e-38, %v1571
    %v1573 = vsel %vm1570, %v1572, %v1568
    %v1574 = vmul.f32 1.0, %v1573
    %v1575 = vxor.u32 %v1553, 2147483648
    %v1576 = vmul.f32 %v1575, 1.442695
    %v1577 = vpow.pop %v1576
    %v1578 = vadd.f32 %v1577, 1.0
    %v1579 = vrcp.pop %v1578
    %v1580 = vmul.f32 %v1578, %v1579
    %v1581 = vsub.f32 1.0, %v1580
    %v1582 = vmul.f32 %v1579, %v1581
    %v1583 = vadd.f32 %v1579, %v1582
    %vm1584 = vweird.f32 %v1578
    %vm1585 = vweird.f32 %v1579
    %vm1586 = vmor %vm1584, %vm1585
    %v1587 = vsel %vm1586, %v1579, %v1583
    %v1588 = vand.u32 2147483647, %v1578
    %vm1589 = vcmp.eq.f32.partialorder %v1588, 8.507059e+37
    %v1590 = vand.u32 %v1578, 2147483648
    %v1591 = vor.u32 1.1754944e-38, %v1590
    %v1592 = vsel %vm1589, %v1591, %v1587
    %v1593 = vmul.f32 1.0, %v1592
    %v1594 = vtanh.pop %v1554
    %v1595 = vxor.u32 %v1555, 2147483648
    %v1596 = vmul.f32 %v1595, 1.442695
    %v1597 = vpow.pop %v1596
    %v1598 = vadd.f32 %v1597, 1.0
    %v1599 = vrcp.pop %v1598
    %v1600 = vmul.f32 %v1598, %v1599
    %v1601 = vsub.f32 1.0, %v1600
    %v1602 = vmul.f32 %v1599, %v1601
    %v1603 = vadd.f32 %v1599, %v1602
    %vm1604 = vweird.f32 %v1598
    %vm1605 = vweird.f32 %v1599
    %vm1606 = vmor %vm1604, %vm1605
    %v1607 = vsel %vm1606, %v1599, %v1603
    %v1608 = vand.u32 2147483647, %v1598
    %vm1609 = vcmp.eq.f32.partialorder %v1608, 8.507059e+37
    %v1610 = vand.u32 %v1598, 2147483648
    %v1611 = vor.u32 1.1754944e-38, %v1610
    %v1612 = vsel %vm1609, %v1611, %v1607
    %v1613 = vmul.f32 1.0, %v1612
    %v1615 = vrot.slane %v1454, 6
    %v1617 = vmul.f32 %v1593, %v1615
    %v1618 = vmul.f32 %v1574, %v1594
    %v1619 = vadd.f32 %v1617, %v1618
    %v1620 = vtanh.pop %v1619
    %v1621 = vmul.f32 %v1613, %v1620
    %vm1622 = vcmask 1041408
    %v1623 = vsel %vm1622, %v484, %v646
    %vm1624 = vcmask 1043456
    %v1625 = vsel %vm1624, %v1623, %v811
    %vm1626 = vcmask 1045504
    %v1627 = vsel %vm1626, %v1625, %v976
    %v1628 = vsel %vm1622, %v1129, %v1291
    %v1629 = vsel %vm1624, %v1628, %v1456
    %v1630 = vsel %vm1626, %v1629, %v1621
    %s1631 = scalar_lea.vmem %s10, 2
    %v1632 = vld [vmem:[%s1631] sm:$0x3]
    %s1633 = scalar_lea.vmem %s11, 2
    %v1634 = vld [vmem:[%s1633] sm:$0x3]
    %v1635 = vld [vmem:[#allocation5] sm:$0xff]
    %v1636 = vld [vmem:[#allocation5 + $0x8] sm:$0xff]
    %v1637 = vld [vmem:[#allocation5 + $0x10] sm:$0xff]
    %v1638 = vld [vmem:[#allocation5 + $0x18] sm:$0xff]
    %v1639 = vld [vmem:[#allocation5 + $0x20] sm:$0xff]
    %v1640 = vld [vmem:[#allocation5 + $0x28] sm:$0xff]
    %v1641 = vld [vmem:[#allocation5 + $0x30] sm:$0xff]
    %v1642 = vld [vmem:[#allocation5 + $0x38] sm:$0xff]
    %v1643 = vld [vmem:[#allocation5 + $0x40] sm:$0xff]
    %v1644 = vld [vmem:[#allocation5 + $0x48] sm:$0xff]
    %v1645 = vld [vmem:[#allocation5 + $0x50] sm:$0xff]
    %v1646 = vld [vmem:[#allocation5 + $0x58] sm:$0xff]
    %v1647 = vld [vmem:[#allocation5 + $0x60] sm:$0xff]
    %v1648 = vld [vmem:[#allocation5 + $0x68] sm:$0xff]
    %v1649 = vld [vmem:[#allocation5 + $0x70] sm:$0xff]
    %v1650 = vld [vmem:[#allocation5 + $0x78] sm:$0xff]
    %v1651 = vld [vmem:[#allocation5 + $0x80] sm:$0xff]
    %v1652 = vld [vmem:[#allocation5 + $0x88] sm:$0xff]
    %v1653 = vld [vmem:[#allocation5 + $0x90] sm:$0xff]
    %v1654 = vld [vmem:[#allocation5 + $0x98] sm:$0xff]
    %v1655 = vld [vmem:[#allocation5 + $0xa0] sm:$0xff]
    %v1656 = vld [vmem:[#allocation5 + $0xa8] sm:$0xff]
    %v1657 = vld [vmem:[#allocation5 + $0xb0] sm:$0xff]
    %v1658 = vld [vmem:[#allocation5 + $0xb8] sm:$0xff]
    %v1659 = vld [vmem:[#allocation5 + $0xc0] sm:$0xff]
    %v1660 = vld [vmem:[#allocation5 + $0xc8] sm:$0xff]
    %v1661 = vld [vmem:[#allocation5 + $0xd0] sm:$0xff]
    %v1662 = vld [vmem:[#allocation5 + $0xd8] sm:$0xff]
    %v1663 = vld [vmem:[#allocation5 + $0xe0] sm:$0xff]
    %v1664 = vld [vmem:[#allocation5 + $0xe8] sm:$0xff]
    %v1665 = vld [vmem:[#allocation5 + $0xf0] sm:$0xff]
    %v1666 = vld [vmem:[#allocation5 + $0xf8] sm:$0xff]
    %v1667 = vld [vmem:[#allocation5 + $0x100] sm:$0xff]
    %v1668 = vld [vmem:[#allocation5 + $0x108] sm:$0xff]
    %v1669 = vld [vmem:[#allocation5 + $0x110] sm:$0xff]
    %v1670 = vld [vmem:[#allocation5 + $0x118] sm:$0xff]
    %v1671 = vld [vmem:[#allocation5 + $0x120] sm:$0xff]
    %v1672 = vld [vmem:[#allocation5 + $0x128] sm:$0xff]
    %v1673 = vld [vmem:[#allocation5 + $0x130] sm:$0xff]
    %v1674 = vld [vmem:[#allocation5 + $0x138] sm:$0xff]
    %v1675 = vld [vmem:[#allocation5 + $0x140] sm:$0xff]
    %v1676 = vld [vmem:[#allocation5 + $0x148] sm:$0xff]
    %v1677 = vld [vmem:[#allocation5 + $0x150] sm:$0xff]
    %v1678 = vld [vmem:[#allocation5 + $0x158] sm:$0xff]
    %v1679 = vld [vmem:[#allocation5 + $0x160] sm:$0xff]
    %v1680 = vld [vmem:[#allocation5 + $0x168] sm:$0xff]
    %v1681 = vld [vmem:[#allocation5 + $0x170] sm:$0xff]
    %v1682 = vld [vmem:[#allocation5 + $0x178] sm:$0xff]
    %v1683 = vld [vmem:[#allocation5 + $0x180] sm:$0xff]
    %v1684 = vld [vmem:[#allocation5 + $0x188] sm:$0xff]
    %v1685 = vld [vmem:[#allocation5 + $0x190] sm:$0xff]
    %v1686 = vld [vmem:[#allocation5 + $0x198] sm:$0xff]
    %v1687 = vld [vmem:[#allocation5 + $0x1a0] sm:$0xff]
    %v1688 = vld [vmem:[#allocation5 + $0x1a8] sm:$0xff]
    %v1689 = vld [vmem:[#allocation5 + $0x1b0] sm:$0xff]
    %v1690 = vld [vmem:[#allocation5 + $0x1b8] sm:$0xff]
    %v1691 = vld [vmem:[#allocation5 + $0x1c0] sm:$0xff]
    %v1692 = vld [vmem:[#allocation5 + $0x1c8] sm:$0xff]
    %v1693 = vld [vmem:[#allocation5 + $0x1d0] sm:$0xff]
    %v1694 = vld [vmem:[#allocation5 + $0x1d8] sm:$0xff]
    %v1695 = vld [vmem:[#allocation5 + $0x1e0] sm:$0xff]
    %v1696 = vld [vmem:[#allocation5 + $0x1e8] sm:$0xff]
    %v1697 = vld [vmem:[#allocation5 + $0x1f0] sm:$0xff]
    %v1698 = vld [vmem:[#allocation5 + $0x1f8] sm:$0xff]
    %v1699 = vld [vmem:[%s7] sm:$0xf]
    %v1701 = vperm.slane %v1699, 0
    %v1702 = vperm.slane %v1699, 1
    %v1703 = vperm.slane %v1699, 2
    %v1704 = vperm.slane %v1699, 3
    %1709 = vmatpush.msra.mxu0 %v1695
    %1710 = vmatpush.msra.mxu0 %v1691
    %1711 = vmatpush.msra.mxu0 %v1687
    %1712 = vmatpush.msra.mxu0 %v1683
    %1713 = vmatpush.msra.mxu0 %v1679
    %1714 = vmatpush.msra.mxu0 %v1675
    %1715 = vmatpush.msra.mxu0 %v1671
    %1716 = vmatpush.msra.mxu0 %v1667
    %1717 = vmatpush.msra.mxu0 %v1663
    %1718 = vmatpush.msra.mxu0 %v1659
    %1719 = vmatpush.msra.mxu0 %v1655
    %1720 = vmatpush.msra.mxu0 %v1651
    %1721 = vmatpush.msra.mxu0 %v1647
    %1722 = vmatpush.msra.mxu0 %v1643
    %1723 = vmatpush.msra.mxu0 %v1639
    %1724 = vmatpush.msra.mxu0 %v1635
    %1725 = vmatmul.f32.gmra.mxu0 %v1627
    %v1726 = vpop.f32.mrf.mxu0
    %v1727 = vadd.f32 %v1701, %v1726
    %1728 = vmatmul.f32.gmra.mxu0 %v1630
    %v1729 = vpop.f32.mrf.mxu0
    %v1730 = vadd.f32 %v1701, %v1729
    %1731 = vdwg.mxu0
    %1732 = vmatpush.msra.mxu0 %v1696
    %1733 = vmatpush.msra.mxu0 %v1692
    %1734 = vmatpush.msra.mxu0 %v1688
    %1735 = vmatpush.msra.mxu0 %v1684
    %1736 = vmatpush.msra.mxu0 %v1680
    %1737 = vmatpush.msra.mxu0 %v1676
    %1738 = vmatpush.msra.mxu0 %v1672
    %1739 = vmatpush.msra.mxu0 %v1668
    %1740 = vmatpush.msra.mxu0 %v1664
    %1741 = vmatpush.msra.mxu0 %v1660
    %1742 = vmatpush.msra.mxu0 %v1656
    %1743 = vmatpush.msra.mxu0 %v1652
    %1744 = vmatpush.msra.mxu0 %v1648
    %1745 = vmatpush.msra.mxu0 %v1644
    %1746 = vmatpush.msra.mxu0 %v1640
    %1747 = vmatpush.msra.mxu0 %v1636
    %1748 = vmatmul.f32.gmra.mxu0 %v1627
    %v1749 = vpop.f32.mrf.mxu0
    %v1750 = vadd.f32 %v1702, %v1749
    %1751 = vmatmul.f32.gmra.mxu0 %v1630
    %v1752 = vpop.f32.mrf.mxu0
    %v1753 = vadd.f32 %v1702, %v1752
    %1754 = vdwg.mxu0
    %1755 = vmatpush.msra.mxu0 %v1697
    %1756 = vmatpush.msra.mxu0 %v1693
    %1757 = vmatpush.msra.mxu0 %v1689
    %1758 = vmatpush.msra.mxu0 %v1685
    %1759 = vmatpush.msra.mxu0 %v1681
    %1760 = vmatpush.msra.mxu0 %v1677
    %1761 = vmatpush.msra.mxu0 %v1673
    %1762 = vmatpush.msra.mxu0 %v1669
    %1763 = vmatpush.msra.mxu0 %v1665
    %1764 = vmatpush.msra.mxu0 %v1661
    %1765 = vmatpush.msra.mxu0 %v1657
    %1766 = vmatpush.msra.mxu0 %v1653
    %1767 = vmatpush.msra.mxu0 %v1649
    %1768 = vmatpush.msra.mxu0 %v1645
    %1769 = vmatpush.msra.mxu0 %v1641
    %1770 = vmatpush.msra.mxu0 %v1637
    %1771 = vmatmul.f32.gmra.mxu0 %v1627
    %v1772 = vpop.f32.mrf.mxu0
    %v1773 = vadd.f32 %v1703, %v1772
    %1774 = vmatmul.f32.gmra.mxu0 %v1630
    %v1775 = vpop.f32.mrf.mxu0
    %v1776 = vadd.f32 %v1703, %v1775
    %1777 = vdwg.mxu0
    %1778 = vmatpush.msra.mxu0 %v1698
    %1779 = vmatpush.msra.mxu0 %v1694
    %1780 = vmatpush.msra.mxu0 %v1690
    %1781 = vmatpush.msra.mxu0 %v1686
    %1782 = vmatpush.msra.mxu0 %v1682
    %1783 = vmatpush.msra.mxu0 %v1678
    %1784 = vmatpush.msra.mxu0 %v1674
    %1785 = vmatpush.msra.mxu0 %v1670
    %1786 = vmatpush.msra.mxu0 %v1666
    %1787 = vmatpush.msra.mxu0 %v1662
    %1788 = vmatpush.msra.mxu0 %v1658
    %1789 = vmatpush.msra.mxu0 %v1654
    %1790 = vmatpush.msra.mxu0 %v1650
    %1791 = vmatpush.msra.mxu0 %v1646
    %1792 = vmatpush.msra.mxu0 %v1642
    %1793 = vmatpush.msra.mxu0 %v1638
    %1794 = vmatmul.f32.gmra.mxu0 %v1627
    %v1795 = vpop.f32.mrf.mxu0
    %v1796 = vadd.f32 %v1704, %v1795
    %1797 = vmatmul.f32.gmra.mxu0 %v1630
    %v1798 = vpop.f32.mrf.mxu0
    %v1799 = vadd.f32 %v1704, %v1798
    %1800 = vdwg.mxu0
    %v1801 = vld [vmem:[#allocation7] sm:$0xff]
    %v1802 = vld [vmem:[#allocation7 + $0x8] sm:$0xff]
    %v1803 = vld [vmem:[#allocation7 + $0x10] sm:$0xff]
    %v1804 = vld [vmem:[#allocation7 + $0x18] sm:$0xff]
    %v1805 = vld [vmem:[#allocation7 + $0x20] sm:$0xff]
    %v1806 = vld [vmem:[#allocation7 + $0x28] sm:$0xff]
    %v1807 = vld [vmem:[#allocation7 + $0x30] sm:$0xff]
    %v1808 = vld [vmem:[#allocation7 + $0x38] sm:$0xff]
    %v1809 = vld [vmem:[#allocation7 + $0x40] sm:$0xff]
    %v1810 = vld [vmem:[#allocation7 + $0x48] sm:$0xff]
    %v1811 = vld [vmem:[#allocation7 + $0x50] sm:$0xff]
    %v1812 = vld [vmem:[#allocation7 + $0x58] sm:$0xff]
    %v1813 = vld [vmem:[#allocation7 + $0x60] sm:$0xff]
    %v1814 = vld [vmem:[#allocation7 + $0x68] sm:$0xff]
    %v1815 = vld [vmem:[#allocation7 + $0x70] sm:$0xff]
    %v1816 = vld [vmem:[#allocation7 + $0x78] sm:$0xff]
    %v1817 = vld [vmem:[#allocation7 + $0x80] sm:$0xff]
    %v1818 = vld [vmem:[#allocation7 + $0x88] sm:$0xff]
    %v1819 = vld [vmem:[#allocation7 + $0x90] sm:$0xff]
    %v1820 = vld [vmem:[#allocation7 + $0x98] sm:$0xff]
    %v1821 = vld [vmem:[#allocation7 + $0xa0] sm:$0xff]
    %v1822 = vld [vmem:[#allocation7 + $0xa8] sm:$0xff]
    %v1823 = vld [vmem:[#allocation7 + $0xb0] sm:$0xff]
    %v1824 = vld [vmem:[#allocation7 + $0xb8] sm:$0xff]
    %v1825 = vld [vmem:[#allocation7 + $0xc0] sm:$0xff]
    %v1826 = vld [vmem:[#allocation7 + $0xc8] sm:$0xff]
    %v1827 = vld [vmem:[#allocation7 + $0xd0] sm:$0xff]
    %v1828 = vld [vmem:[#allocation7 + $0xd8] sm:$0xff]
    %v1829 = vld [vmem:[#allocation7 + $0xe0] sm:$0xff]
    %v1830 = vld [vmem:[#allocation7 + $0xe8] sm:$0xff]
    %v1831 = vld [vmem:[#allocation7 + $0xf0] sm:$0xff]
    %v1832 = vld [vmem:[#allocation7 + $0xf8] sm:$0xff]
    %v1833 = vld [vmem:[#allocation7 + $0x100] sm:$0xff]
    %v1834 = vld [vmem:[#allocation7 + $0x108] sm:$0xff]
    %v1835 = vld [vmem:[#allocation7 + $0x110] sm:$0xff]
    %v1836 = vld [vmem:[#allocation7 + $0x118] sm:$0xff]
    %v1837 = vld [vmem:[#allocation7 + $0x120] sm:$0xff]
    %v1838 = vld [vmem:[#allocation7 + $0x128] sm:$0xff]
    %v1839 = vld [vmem:[#allocation7 + $0x130] sm:$0xff]
    %v1840 = vld [vmem:[#allocation7 + $0x138] sm:$0xff]
    %v1841 = vld [vmem:[#allocation7 + $0x140] sm:$0xff]
    %v1842 = vld [vmem:[#allocation7 + $0x148] sm:$0xff]
    %v1843 = vld [vmem:[#allocation7 + $0x150] sm:$0xff]
    %v1844 = vld [vmem:[#allocation7 + $0x158] sm:$0xff]
    %v1845 = vld [vmem:[#allocation7 + $0x160] sm:$0xff]
    %v1846 = vld [vmem:[#allocation7 + $0x168] sm:$0xff]
    %v1847 = vld [vmem:[#allocation7 + $0x170] sm:$0xff]
    %v1848 = vld [vmem:[#allocation7 + $0x178] sm:$0xff]
    %v1849 = vld [vmem:[#allocation7 + $0x180] sm:$0xff]
    %v1850 = vld [vmem:[#allocation7 + $0x188] sm:$0xff]
    %v1851 = vld [vmem:[#allocation7 + $0x190] sm:$0xff]
    %v1852 = vld [vmem:[#allocation7 + $0x198] sm:$0xff]
    %v1853 = vld [vmem:[#allocation7 + $0x1a0] sm:$0xff]
    %v1854 = vld [vmem:[#allocation7 + $0x1a8] sm:$0xff]
    %v1855 = vld [vmem:[#allocation7 + $0x1b0] sm:$0xff]
    %v1856 = vld [vmem:[#allocation7 + $0x1b8] sm:$0xff]
    %v1857 = vld [vmem:[#allocation7 + $0x1c0] sm:$0xff]
    %v1858 = vld [vmem:[#allocation7 + $0x1c8] sm:$0xff]
    %v1859 = vld [vmem:[#allocation7 + $0x1d0] sm:$0xff]
    %v1860 = vld [vmem:[#allocation7 + $0x1d8] sm:$0xff]
    %v1861 = vld [vmem:[#allocation7 + $0x1e0] sm:$0xff]
    %v1862 = vld [vmem:[#allocation7 + $0x1e8] sm:$0xff]
    %v1863 = vld [vmem:[#allocation7 + $0x1f0] sm:$0xff]
    %v1864 = vld [vmem:[#allocation7 + $0x1f8] sm:$0xff]
    %1865 = vmatpush.msra.mxu0 %v1861
    %1866 = vmatpush.msra.mxu0 %v1857
    %1867 = vmatpush.msra.mxu0 %v1853
    %1868 = vmatpush.msra.mxu0 %v1849
    %1869 = vmatpush.msra.mxu0 %v1845
    %1870 = vmatpush.msra.mxu0 %v1841
    %1871 = vmatpush.msra.mxu0 %v1837
    %1872 = vmatpush.msra.mxu0 %v1833
    %1873 = vmatpush.msra.mxu0 %v1829
    %1874 = vmatpush.msra.mxu0 %v1825
    %1875 = vmatpush.msra.mxu0 %v1821
    %1876 = vmatpush.msra.mxu0 %v1817
    %1877 = vmatpush.msra.mxu0 %v1813
    %1878 = vmatpush.msra.mxu0 %v1809
    %1879 = vmatpush.msra.mxu0 %v1805
    %1880 = vmatpush.msra.mxu0 %v1801
    %1881 = vmatmul.f32.gmra.mxu0 %v1632
    %v1882 = vpop.f32.mrf.mxu0
    %v1883 = vadd.f32 0.0, %v1882
    %1884 = vdwg.mxu0
    %1885 = vmatpush.msra.mxu0 %v1862
    %1886 = vmatpush.msra.mxu0 %v1858
    %1887 = vmatpush.msra.mxu0 %v1854
    %1888 = vmatpush.msra.mxu0 %v1850
    %1889 = vmatpush.msra.mxu0 %v1846
    %1890 = vmatpush.msra.mxu0 %v1842
    %1891 = vmatpush.msra.mxu0 %v1838
    %1892 = vmatpush.msra.mxu0 %v1834
    %1893 = vmatpush.msra.mxu0 %v1830
    %1894 = vmatpush.msra.mxu0 %v1826
    %1895 = vmatpush.msra.mxu0 %v1822
    %1896 = vmatpush.msra.mxu0 %v1818
    %1897 = vmatpush.msra.mxu0 %v1814
    %1898 = vmatpush.msra.mxu0 %v1810
    %1899 = vmatpush.msra.mxu0 %v1806
    %1900 = vmatpush.msra.mxu0 %v1802
    %1901 = vmatmul.f32.gmra.mxu0 %v1632
    %v1902 = vpop.f32.mrf.mxu0
    %v1903 = vadd.f32 0.0, %v1902
    %1904 = vdwg.mxu0
    %1905 = vmatpush.msra.mxu0 %v1863
    %1906 = vmatpush.msra.mxu0 %v1859
    %1907 = vmatpush.msra.mxu0 %v1855
    %1908 = vmatpush.msra.mxu0 %v1851
    %1909 = vmatpush.msra.mxu0 %v1847
    %1910 = vmatpush.msra.mxu0 %v1843
    %1911 = vmatpush.msra.mxu0 %v1839
    %1912 = vmatpush.msra.mxu0 %v1835
    %1913 = vmatpush.msra.mxu0 %v1831
    %1914 = vmatpush.msra.mxu0 %v1827
    %1915 = vmatpush.msra.mxu0 %v1823
    %1916 = vmatpush.msra.mxu0 %v1819
    %1917 = vmatpush.msra.mxu0 %v1815
    %1918 = vmatpush.msra.mxu0 %v1811
    %1919 = vmatpush.msra.mxu0 %v1807
    %1920 = vmatpush.msra.mxu0 %v1803
    %1921 = vmatmul.f32.gmra.mxu0 %v1632
    %v1922 = vpop.f32.mrf.mxu0
    %v1923 = vadd.f32 0.0, %v1922
    %1924 = vdwg.mxu0
    %1925 = vmatpush.msra.mxu0 %v1864
    %1926 = vmatpush.msra.mxu0 %v1860
    %1927 = vmatpush.msra.mxu0 %v1856
    %1928 = vmatpush.msra.mxu0 %v1852
    %1929 = vmatpush.msra.mxu0 %v1848
    %1930 = vmatpush.msra.mxu0 %v1844
    %1931 = vmatpush.msra.mxu0 %v1840
    %1932 = vmatpush.msra.mxu0 %v1836
    %1933 = vmatpush.msra.mxu0 %v1832
    %1934 = vmatpush.msra.mxu0 %v1828
    %1935 = vmatpush.msra.mxu0 %v1824
    %1936 = vmatpush.msra.mxu0 %v1820
    %1937 = vmatpush.msra.mxu0 %v1816
    %1938 = vmatpush.msra.mxu0 %v1812
    %1939 = vmatpush.msra.mxu0 %v1808
    %1940 = vmatpush.msra.mxu0 %v1804
    %1941 = vmatmul.f32.gmra.mxu0 %v1632
    %v1942 = vpop.f32.mrf.mxu0
    %v1943 = vadd.f32 0.0, %v1942
    %1944 = vdwg.mxu0
    %v1945 = vadd.f32 %v1727, %v1883
    %v1946 = vadd.f32 %v1750, %v1903
    %v1947 = vadd.f32 %v1773, %v1923
    %v1948 = vadd.f32 %v1796, %v1943
    %v1949 = vxor.u32 %v1945, 2147483648
    %v1950 = vmul.f32 %v1949, 1.442695
    %v1951 = vpow.pop %v1950
    %v1952 = vadd.f32 %v1951, 1.0
    %v1953 = vrcp.pop %v1952
    %v1954 = vmul.f32 %v1952, %v1953
    %v1955 = vsub.f32 1.0, %v1954
    %v1956 = vmul.f32 %v1953, %v1955
    %v1957 = vadd.f32 %v1953, %v1956
    %vm1958 = vweird.f32 %v1952
    %vm1959 = vweird.f32 %v1953
    %vm1960 = vmor %vm1958, %vm1959
    %v1961 = vsel %vm1960, %v1953, %v1957
    %v1962 = vand.u32 2147483647, %v1952
    %vm1963 = vcmp.eq.f32.partialorder %v1962, 8.507059e+37
    %v1964 = vand.u32 %v1952, 2147483648
    %v1965 = vor.u32 1.1754944e-38, %v1964
    %v1966 = vsel %vm1963, %v1965, %v1961
    %v1967 = vmul.f32 1.0, %v1966
    %v1968 = vxor.u32 %v1946, 2147483648
    %v1969 = vmul.f32 %v1968, 1.442695
    %v1970 = vpow.pop %v1969
    %v1971 = vadd.f32 %v1970, 1.0
    %v1972 = vrcp.pop %v1971
    %v1973 = vmul.f32 %v1971, %v1972
    %v1974 = vsub.f32 1.0, %v1973
    %v1975 = vmul.f32 %v1972, %v1974
    %v1976 = vadd.f32 %v1972, %v1975
    %vm1977 = vweird.f32 %v1971
    %vm1978 = vweird.f32 %v1972
    %vm1979 = vmor %vm1977, %vm1978
    %v1980 = vsel %vm1979, %v1972, %v1976
    %v1981 = vand.u32 2147483647, %v1971
    %vm1982 = vcmp.eq.f32.partialorder %v1981, 8.507059e+37
    %v1983 = vand.u32 %v1971, 2147483648
    %v1984 = vor.u32 1.1754944e-38, %v1983
    %v1985 = vsel %vm1982, %v1984, %v1980
    %v1986 = vmul.f32 1.0, %v1985
    %v1987 = vtanh.pop %v1947
    %v1988 = vxor.u32 %v1948, 2147483648
    %v1989 = vmul.f32 %v1988, 1.442695
    %v1990 = vpow.pop %v1989
    %v1991 = vadd.f32 %v1990, 1.0
    %v1992 = vrcp.pop %v1991
    %v1993 = vmul.f32 %v1991, %v1992
    %v1994 = vsub.f32 1.0, %v1993
    %v1995 = vmul.f32 %v1992, %v1994
    %v1996 = vadd.f32 %v1992, %v1995
    %vm1997 = vweird.f32 %v1991
    %vm1998 = vweird.f32 %v1992
    %vm1999 = vmor %vm1997, %vm1998
    %v2000 = vsel %vm1999, %v1992, %v1996
    %v2001 = vand.u32 2147483647, %v1991
    %vm2002 = vcmp.eq.f32.partialorder %v2001, 8.507059e+37
    %v2003 = vand.u32 %v1991, 2147483648
    %v2004 = vor.u32 1.1754944e-38, %v2003
    %v2005 = vsel %vm2002, %v2004, %v2000
    %v2006 = vmul.f32 1.0, %v2005
    %v2007 = vmul.f32 %v1986, %v1634
    %v2008 = vmul.f32 %v1967, %v1987
    %v2009 = vadd.f32 %v2007, %v2008
    %v2010 = vtanh.pop %v2009
    %v2011 = vmul.f32 %v2006, %v2010
    %2012 = vmatpush.msra.mxu0 %v1861
    %2013 = vmatpush.msra.mxu0 %v1857
    %2014 = vmatpush.msra.mxu0 %v1853
    %2015 = vmatpush.msra.mxu0 %v1849
    %2016 = vmatpush.msra.mxu0 %v1845
    %2017 = vmatpush.msra.mxu0 %v1841
    %2018 = vmatpush.msra.mxu0 %v1837
    %2019 = vmatpush.msra.mxu0 %v1833
    %2020 = vmatpush.msra.mxu0 %v1829
    %2021 = vmatpush.msra.mxu0 %v1825
    %2022 = vmatpush.msra.mxu0 %v1821
    %2023 = vmatpush.msra.mxu0 %v1817
    %2024 = vmatpush.msra.mxu0 %v1813
    %2025 = vmatpush.msra.mxu0 %v1809
    %2026 = vmatpush.msra.mxu0 %v1805
    %2027 = vmatpush.msra.mxu0 %v1801
    %2028 = vmatmul.f32.gmra.mxu0 %v2011
    %v2029 = vpop.f32.mrf.mxu0
    %v2030 = vadd.f32 0.0, %v2029
    %2031 = vdwg.mxu0
    %2032 = vmatpush.msra.mxu0 %v1862
    %2033 = vmatpush.msra.mxu0 %v1858
    %2034 = vmatpush.msra.mxu0 %v1854
    %2035 = vmatpush.msra.mxu0 %v1850
    %2036 = vmatpush.msra.mxu0 %v1846
    %2037 = vmatpush.msra.mxu0 %v1842
    %2038 = vmatpush.msra.mxu0 %v1838
    %2039 = vmatpush.msra.mxu0 %v1834
    %2040 = vmatpush.msra.mxu0 %v1830
    %2041 = vmatpush.msra.mxu0 %v1826
    %2042 = vmatpush.msra.mxu0 %v1822
    %2043 = vmatpush.msra.mxu0 %v1818
    %2044 = vmatpush.msra.mxu0 %v1814
    %2045 = vmatpush.msra.mxu0 %v1810
    %2046 = vmatpush.msra.mxu0 %v1806
    %2047 = vmatpush.msra.mxu0 %v1802
    %2048 = vmatmul.f32.gmra.mxu0 %v2011
    %v2049 = vpop.f32.mrf.mxu0
    %v2050 = vadd.f32 0.0, %v2049
    %2051 = vdwg.mxu0
    %2052 = vmatpush.msra.mxu0 %v1863
    %2053 = vmatpush.msra.mxu0 %v1859
    %2054 = vmatpush.msra.mxu0 %v1855
    %2055 = vmatpush.msra.mxu0 %v1851
    %2056 = vmatpush.msra.mxu0 %v1847
    %2057 = vmatpush.msra.mxu0 %v1843
    %2058 = vmatpush.msra.mxu0 %v1839
    %2059 = vmatpush.msra.mxu0 %v1835
    %2060 = vmatpush.msra.mxu0 %v1831
    %2061 = vmatpush.msra.mxu0 %v1827
    %2062 = vmatpush.msra.mxu0 %v1823
    %2063 = vmatpush.msra.mxu0 %v1819
    %2064 = vmatpush.msra.mxu0 %v1815
    %2065 = vmatpush.msra.mxu0 %v1811
    %2066 = vmatpush.msra.mxu0 %v1807
    %2067 = vmatpush.msra.mxu0 %v1803
    %2068 = vmatmul.f32.gmra.mxu0 %v2011
    %v2069 = vpop.f32.mrf.mxu0
    %v2070 = vadd.f32 0.0, %v2069
    %2071 = vdwg.mxu0
    %2072 = vmatpush.msra.mxu0 %v1864
    %2073 = vmatpush.msra.mxu0 %v1860
    %2074 = vmatpush.msra.mxu0 %v1856
    %2075 = vmatpush.msra.mxu0 %v1852
    %2076 = vmatpush.msra.mxu0 %v1848
    %2077 = vmatpush.msra.mxu0 %v1844
    %2078 = vmatpush.msra.mxu0 %v1840
    %2079 = vmatpush.msra.mxu0 %v1836
    %2080 = vmatpush.msra.mxu0 %v1832
    %2081 = vmatpush.msra.mxu0 %v1828
    %2082 = vmatpush.msra.mxu0 %v1824
    %2083 = vmatpush.msra.mxu0 %v1820
    %2084 = vmatpush.msra.mxu0 %v1816
    %2085 = vmatpush.msra.mxu0 %v1812
    %2086 = vmatpush.msra.mxu0 %v1808
    %2087 = vmatpush.msra.mxu0 %v1804
    %2088 = vmatmul.f32.gmra.mxu0 %v2011
    %v2089 = vpop.f32.mrf.mxu0
    %v2090 = vadd.f32 0.0, %v2089
    %2091 = vdwg.mxu0
    %v2096 = vrot.slane %v2030, 6
    %v2097 = vrot.slane %v2050, 6
    %v2098 = vrot.slane %v2070, 6
    %v2099 = vrot.slane %v2090, 6
    %v2104 = vadd.f32 %v1727, %v2096
    %v2105 = vadd.f32 %v1750, %v2097
    %v2106 = vadd.f32 %v1773, %v2098
    %v2107 = vadd.f32 %v1796, %v2099
    %v2108 = vxor.u32 %v2104, 2147483648
    %v2109 = vmul.f32 %v2108, 1.442695
    %v2110 = vpow.pop %v2109
    %v2111 = vadd.f32 %v2110, 1.0
    %v2112 = vrcp.pop %v2111
    %v2113 = vmul.f32 %v2111, %v2112
    %v2114 = vsub.f32 1.0, %v2113
    %v2115 = vmul.f32 %v2112, %v2114
    %v2116 = vadd.f32 %v2112, %v2115
    %vm2117 = vweird.f32 %v2111
    %vm2118 = vweird.f32 %v2112
    %vm2119 = vmor %vm2117, %vm2118
    %v2120 = vsel %vm2119, %v2112, %v2116
    %v2121 = vand.u32 2147483647, %v2111
    %vm2122 = vcmp.eq.f32.partialorder %v2121, 8.507059e+37
    %v2123 = vand.u32 %v2111, 2147483648
    %v2124 = vor.u32 1.1754944e-38, %v2123
    %v2125 = vsel %vm2122, %v2124, %v2120
    %v2126 = vmul.f32 1.0, %v2125
    %v2127 = vxor.u32 %v2105, 2147483648
    %v2128 = vmul.f32 %v2127, 1.442695
    %v2129 = vpow.pop %v2128
    %v2130 = vadd.f32 %v2129, 1.0
    %v2131 = vrcp.pop %v2130
    %v2132 = vmul.f32 %v2130, %v2131
    %v2133 = vsub.f32 1.0, %v2132
    %v2134 = vmul.f32 %v2131, %v2133
    %v2135 = vadd.f32 %v2131, %v2134
    %vm2136 = vweird.f32 %v2130
    %vm2137 = vweird.f32 %v2131
    %vm2138 = vmor %vm2136, %vm2137
    %v2139 = vsel %vm2138, %v2131, %v2135
    %v2140 = vand.u32 2147483647, %v2130
    %vm2141 = vcmp.eq.f32.partialorder %v2140, 8.507059e+37
    %v2142 = vand.u32 %v2130, 2147483648
    %v2143 = vor.u32 1.1754944e-38, %v2142
    %v2144 = vsel %vm2141, %v2143, %v2139
    %v2145 = vmul.f32 1.0, %v2144
    %v2146 = vtanh.pop %v2106
    %v2147 = vxor.u32 %v2107, 2147483648
    %v2148 = vmul.f32 %v2147, 1.442695
    %v2149 = vpow.pop %v2148
    %v2150 = vadd.f32 %v2149, 1.0
    %v2151 = vrcp.pop %v2150
    %v2152 = vmul.f32 %v2150, %v2151
    %v2153 = vsub.f32 1.0, %v2152
    %v2154 = vmul.f32 %v2151, %v2153
    %v2155 = vadd.f32 %v2151, %v2154
    %vm2156 = vweird.f32 %v2150
    %vm2157 = vweird.f32 %v2151
    %vm2158 = vmor %vm2156, %vm2157
    %v2159 = vsel %vm2158, %v2151, %v2155
    %v2160 = vand.u32 2147483647, %v2150
    %vm2161 = vcmp.eq.f32.partialorder %v2160, 8.507059e+37
    %v2162 = vand.u32 %v2150, 2147483648
    %v2163 = vor.u32 1.1754944e-38, %v2162
    %v2164 = vsel %vm2161, %v2163, %v2159
    %v2165 = vmul.f32 1.0, %v2164
    %v2167 = vrot.slane %v2009, 6
    %v2169 = vmul.f32 %v2145, %v2167
    %v2170 = vmul.f32 %v2126, %v2146
    %v2171 = vadd.f32 %v2169, %v2170
    %v2172 = vtanh.pop %v2171
    %v2173 = vmul.f32 %v2165, %v2172
    %v2175 = vrot.slane %v2173, 2
    %2177 = vmatpush.msra.mxu0 %v1861
    %2178 = vmatpush.msra.mxu0 %v1857
    %2179 = vmatpush.msra.mxu0 %v1853
    %2180 = vmatpush.msra.mxu0 %v1849
    %2181 = vmatpush.msra.mxu0 %v1845
    %2182 = vmatpush.msra.mxu0 %v1841
    %2183 = vmatpush.msra.mxu0 %v1837
    %2184 = vmatpush.msra.mxu0 %v1833
    %2185 = vmatpush.msra.mxu0 %v1829
    %2186 = vmatpush.msra.mxu0 %v1825
    %2187 = vmatpush.msra.mxu0 %v1821
    %2188 = vmatpush.msra.mxu0 %v1817
    %2189 = vmatpush.msra.mxu0 %v1813
    %2190 = vmatpush.msra.mxu0 %v1809
    %2191 = vmatpush.msra.mxu0 %v1805
    %2192 = vmatpush.msra.mxu0 %v1801
    %2193 = vmatmul.f32.gmra.mxu0 %v2175
    %v2194 = vpop.f32.mrf.mxu0
    %v2195 = vadd.f32 0.0, %v2194
    %2196 = vdwg.mxu0
    %2197 = vmatpush.msra.mxu0 %v1862
    %2198 = vmatpush.msra.mxu0 %v1858
    %2199 = vmatpush.msra.mxu0 %v1854
    %2200 = vmatpush.msra.mxu0 %v1850
    %2201 = vmatpush.msra.mxu0 %v1846
    %2202 = vmatpush.msra.mxu0 %v1842
    %2203 = vmatpush.msra.mxu0 %v1838
    %2204 = vmatpush.msra.mxu0 %v1834
    %2205 = vmatpush.msra.mxu0 %v1830
    %2206 = vmatpush.msra.mxu0 %v1826
    %2207 = vmatpush.msra.mxu0 %v1822
    %2208 = vmatpush.msra.mxu0 %v1818
    %2209 = vmatpush.msra.mxu0 %v1814
    %2210 = vmatpush.msra.mxu0 %v1810
    %2211 = vmatpush.msra.mxu0 %v1806
    %2212 = vmatpush.msra.mxu0 %v1802
    %2213 = vmatmul.f32.gmra.mxu0 %v2175
    %v2214 = vpop.f32.mrf.mxu0
    %v2215 = vadd.f32 0.0, %v2214
    %2216 = vdwg.mxu0
    %2217 = vmatpush.msra.mxu0 %v1863
    %2218 = vmatpush.msra.mxu0 %v1859
    %2219 = vmatpush.msra.mxu0 %v1855
    %2220 = vmatpush.msra.mxu0 %v1851
    %2221 = vmatpush.msra.mxu0 %v1847
    %2222 = vmatpush.msra.mxu0 %v1843
    %2223 = vmatpush.msra.mxu0 %v1839
    %2224 = vmatpush.msra.mxu0 %v1835
    %2225 = vmatpush.msra.mxu0 %v1831
    %2226 = vmatpush.msra.mxu0 %v1827
    %2227 = vmatpush.msra.mxu0 %v1823
    %2228 = vmatpush.msra.mxu0 %v1819
    %2229 = vmatpush.msra.mxu0 %v1815
    %2230 = vmatpush.msra.mxu0 %v1811
    %2231 = vmatpush.msra.mxu0 %v1807
    %2232 = vmatpush.msra.mxu0 %v1803
    %2233 = vmatmul.f32.gmra.mxu0 %v2175
    %v2234 = vpop.f32.mrf.mxu0
    %v2235 = vadd.f32 0.0, %v2234
    %2236 = vdwg.mxu0
    %2237 = vmatpush.msra.mxu0 %v1864
    %2238 = vmatpush.msra.mxu0 %v1860
    %2239 = vmatpush.msra.mxu0 %v1856
    %2240 = vmatpush.msra.mxu0 %v1852
    %2241 = vmatpush.msra.mxu0 %v1848
    %2242 = vmatpush.msra.mxu0 %v1844
    %2243 = vmatpush.msra.mxu0 %v1840
    %2244 = vmatpush.msra.mxu0 %v1836
    %2245 = vmatpush.msra.mxu0 %v1832
    %2246 = vmatpush.msra.mxu0 %v1828
    %2247 = vmatpush.msra.mxu0 %v1824
    %2248 = vmatpush.msra.mxu0 %v1820
    %2249 = vmatpush.msra.mxu0 %v1816
    %2250 = vmatpush.msra.mxu0 %v1812
    %2251 = vmatpush.msra.mxu0 %v1808
    %2252 = vmatpush.msra.mxu0 %v1804
    %2253 = vmatmul.f32.gmra.mxu0 %v2175
    %v2254 = vpop.f32.mrf.mxu0
    %v2255 = vadd.f32 0.0, %v2254
    %2256 = vdwg.mxu0
    %v2261 = vrot.slane %v2195, 4
    %v2262 = vrot.slane %v2215, 4
    %v2263 = vrot.slane %v2235, 4
    %v2264 = vrot.slane %v2255, 4
    %v2269 = vadd.f32 %v1727, %v2261
    %v2270 = vadd.f32 %v1750, %v2262
    %v2271 = vadd.f32 %v1773, %v2263
    %v2272 = vadd.f32 %v1796, %v2264
    %v2273 = vxor.u32 %v2269, 2147483648
    %v2274 = vmul.f32 %v2273, 1.442695
    %v2275 = vpow.pop %v2274
    %v2276 = vadd.f32 %v2275, 1.0
    %v2277 = vrcp.pop %v2276
    %v2278 = vmul.f32 %v2276, %v2277
    %v2279 = vsub.f32 1.0, %v2278
    %v2280 = vmul.f32 %v2277, %v2279
    %v2281 = vadd.f32 %v2277, %v2280
    %vm2282 = vweird.f32 %v2276
    %vm2283 = vweird.f32 %v2277
    %vm2284 = vmor %vm2282, %vm2283
    %v2285 = vsel %vm2284, %v2277, %v2281
    %v2286 = vand.u32 2147483647, %v2276
    %vm2287 = vcmp.eq.f32.partialorder %v2286, 8.507059e+37
    %v2288 = vand.u32 %v2276, 2147483648
    %v2289 = vor.u32 1.1754944e-38, %v2288
    %v2290 = vsel %vm2287, %v2289, %v2285
    %v2291 = vmul.f32 1.0, %v2290
    %v2292 = vxor.u32 %v2270, 2147483648
    %v2293 = vmul.f32 %v2292, 1.442695
    %v2294 = vpow.pop %v2293
    %v2295 = vadd.f32 %v2294, 1.0
    %v2296 = vrcp.pop %v2295
    %v2297 = vmul.f32 %v2295, %v2296
    %v2298 = vsub.f32 1.0, %v2297
    %v2299 = vmul.f32 %v2296, %v2298
    %v2300 = vadd.f32 %v2296, %v2299
    %vm2301 = vweird.f32 %v2295
    %vm2302 = vweird.f32 %v2296
    %vm2303 = vmor %vm2301, %vm2302
    %v2304 = vsel %vm2303, %v2296, %v2300
    %v2305 = vand.u32 2147483647, %v2295
    %vm2306 = vcmp.eq.f32.partialorder %v2305, 8.507059e+37
    %v2307 = vand.u32 %v2295, 2147483648
    %v2308 = vor.u32 1.1754944e-38, %v2307
    %v2309 = vsel %vm2306, %v2308, %v2304
    %v2310 = vmul.f32 1.0, %v2309
    %v2311 = vtanh.pop %v2271
    %v2312 = vxor.u32 %v2272, 2147483648
    %v2313 = vmul.f32 %v2312, 1.442695
    %v2314 = vpow.pop %v2313
    %v2315 = vadd.f32 %v2314, 1.0
    %v2316 = vrcp.pop %v2315
    %v2317 = vmul.f32 %v2315, %v2316
    %v2318 = vsub.f32 1.0, %v2317
    %v2319 = vmul.f32 %v2316, %v2318
    %v2320 = vadd.f32 %v2316, %v2319
    %vm2321 = vweird.f32 %v2315
    %vm2322 = vweird.f32 %v2316
    %vm2323 = vmor %vm2321, %vm2322
    %v2324 = vsel %vm2323, %v2316, %v2320
    %v2325 = vand.u32 2147483647, %v2315
    %vm2326 = vcmp.eq.f32.partialorder %v2325, 8.507059e+37
    %v2327 = vand.u32 %v2315, 2147483648
    %v2328 = vor.u32 1.1754944e-38, %v2327
    %v2329 = vsel %vm2326, %v2328, %v2324
    %v2330 = vmul.f32 1.0, %v2329
    %v2332 = vrot.slane %v2171, 6
    %v2334 = vmul.f32 %v2310, %v2332
    %v2335 = vmul.f32 %v2291, %v2311
    %v2336 = vadd.f32 %v2334, %v2335
    %v2337 = vtanh.pop %v2336
    %v2338 = vmul.f32 %v2330, %v2337
    %v2340 = vrot.slane %v2338, 4
    %2342 = vmatpush.msra.mxu0 %v1861
    %2343 = vmatpush.msra.mxu0 %v1857
    %2344 = vmatpush.msra.mxu0 %v1853
    %2345 = vmatpush.msra.mxu0 %v1849
    %2346 = vmatpush.msra.mxu0 %v1845
    %2347 = vmatpush.msra.mxu0 %v1841
    %2348 = vmatpush.msra.mxu0 %v1837
    %2349 = vmatpush.msra.mxu0 %v1833
    %2350 = vmatpush.msra.mxu0 %v1829
    %2351 = vmatpush.msra.mxu0 %v1825
    %2352 = vmatpush.msra.mxu0 %v1821
    %2353 = vmatpush.msra.mxu0 %v1817
    %2354 = vmatpush.msra.mxu0 %v1813
    %2355 = vmatpush.msra.mxu0 %v1809
    %2356 = vmatpush.msra.mxu0 %v1805
    %2357 = vmatpush.msra.mxu0 %v1801
    %2358 = vmatmul.f32.gmra.mxu0 %v2340
    %v2359 = vpop.f32.mrf.mxu0
    %v2360 = vadd.f32 0.0, %v2359
    %2361 = vdwg.mxu0
    %2362 = vmatpush.msra.mxu0 %v1862
    %2363 = vmatpush.msra.mxu0 %v1858
    %2364 = vmatpush.msra.mxu0 %v1854
    %2365 = vmatpush.msra.mxu0 %v1850
    %2366 = vmatpush.msra.mxu0 %v1846
    %2367 = vmatpush.msra.mxu0 %v1842
    %2368 = vmatpush.msra.mxu0 %v1838
    %2369 = vmatpush.msra.mxu0 %v1834
    %2370 = vmatpush.msra.mxu0 %v1830
    %2371 = vmatpush.msra.mxu0 %v1826
    %2372 = vmatpush.msra.mxu0 %v1822
    %2373 = vmatpush.msra.mxu0 %v1818
    %2374 = vmatpush.msra.mxu0 %v1814
    %2375 = vmatpush.msra.mxu0 %v1810
    %2376 = vmatpush.msra.mxu0 %v1806
    %2377 = vmatpush.msra.mxu0 %v1802
    %2378 = vmatmul.f32.gmra.mxu0 %v2340
    %v2379 = vpop.f32.mrf.mxu0
    %v2380 = vadd.f32 0.0, %v2379
    %2381 = vdwg.mxu0
    %2382 = vmatpush.msra.mxu0 %v1863
    %2383 = vmatpush.msra.mxu0 %v1859
    %2384 = vmatpush.msra.mxu0 %v1855
    %2385 = vmatpush.msra.mxu0 %v1851
    %2386 = vmatpush.msra.mxu0 %v1847
    %2387 = vmatpush.msra.mxu0 %v1843
    %2388 = vmatpush.msra.mxu0 %v1839
    %2389 = vmatpush.msra.mxu0 %v1835
    %2390 = vmatpush.msra.mxu0 %v1831
    %2391 = vmatpush.msra.mxu0 %v1827
    %2392 = vmatpush.msra.mxu0 %v1823
    %2393 = vmatpush.msra.mxu0 %v1819
    %2394 = vmatpush.msra.mxu0 %v1815
    %2395 = vmatpush.msra.mxu0 %v1811
    %2396 = vmatpush.msra.mxu0 %v1807
    %2397 = vmatpush.msra.mxu0 %v1803
    %2398 = vmatmul.f32.gmra.mxu0 %v2340
    %v2399 = vpop.f32.mrf.mxu0
    %v2400 = vadd.f32 0.0, %v2399
    %2401 = vdwg.mxu0
    %2402 = vmatpush.msra.mxu0 %v1864
    %2403 = vmatpush.msra.mxu0 %v1860
    %2404 = vmatpush.msra.mxu0 %v1856
    %2405 = vmatpush.msra.mxu0 %v1852
    %2406 = vmatpush.msra.mxu0 %v1848
    %2407 = vmatpush.msra.mxu0 %v1844
    %2408 = vmatpush.msra.mxu0 %v1840
    %2409 = vmatpush.msra.mxu0 %v1836
    %2410 = vmatpush.msra.mxu0 %v1832
    %2411 = vmatpush.msra.mxu0 %v1828
    %2412 = vmatpush.msra.mxu0 %v1824
    %2413 = vmatpush.msra.mxu0 %v1820
    %2414 = vmatpush.msra.mxu0 %v1816
    %2415 = vmatpush.msra.mxu0 %v1812
    %2416 = vmatpush.msra.mxu0 %v1808
    %2417 = vmatpush.msra.mxu0 %v1804
    %2418 = vmatmul.f32.gmra.mxu0 %v2340
    %v2419 = vpop.f32.mrf.mxu0
    %v2420 = vadd.f32 0.0, %v2419
    %2421 = vdwg.mxu0
    %v2426 = vrot.slane %v2360, 2
    %v2427 = vrot.slane %v2380, 2
    %v2428 = vrot.slane %v2400, 2
    %v2429 = vrot.slane %v2420, 2
    %v2434 = vadd.f32 %v1727, %v2426
    %v2435 = vadd.f32 %v1750, %v2427
    %v2436 = vadd.f32 %v1773, %v2428
    %v2437 = vadd.f32 %v1796, %v2429
    %v2438 = vxor.u32 %v2434, 2147483648
    %v2439 = vmul.f32 %v2438, 1.442695
    %v2440 = vpow.pop %v2439
    %v2441 = vadd.f32 %v2440, 1.0
    %v2442 = vrcp.pop %v2441
    %v2443 = vmul.f32 %v2441, %v2442
    %v2444 = vsub.f32 1.0, %v2443
    %v2445 = vmul.f32 %v2442, %v2444
    %v2446 = vadd.f32 %v2442, %v2445
    %vm2447 = vweird.f32 %v2441
    %vm2448 = vweird.f32 %v2442
    %vm2449 = vmor %vm2447, %vm2448
    %v2450 = vsel %vm2449, %v2442, %v2446
    %v2451 = vand.u32 2147483647, %v2441
    %vm2452 = vcmp.eq.f32.partialorder %v2451, 8.507059e+37
    %v2453 = vand.u32 %v2441, 2147483648
    %v2454 = vor.u32 1.1754944e-38, %v2453
    %v2455 = vsel %vm2452, %v2454, %v2450
    %v2456 = vmul.f32 1.0, %v2455
    %v2457 = vxor.u32 %v2435, 2147483648
    %v2458 = vmul.f32 %v2457, 1.442695
    %v2459 = vpow.pop %v2458
    %v2460 = vadd.f32 %v2459, 1.0
    %v2461 = vrcp.pop %v2460
    %v2462 = vmul.f32 %v2460, %v2461
    %v2463 = vsub.f32 1.0, %v2462
    %v2464 = vmul.f32 %v2461, %v2463
    %v2465 = vadd.f32 %v2461, %v2464
    %vm2466 = vweird.f32 %v2460
    %vm2467 = vweird.f32 %v2461
    %vm2468 = vmor %vm2466, %vm2467
    %v2469 = vsel %vm2468, %v2461, %v2465
    %v2470 = vand.u32 2147483647, %v2460
    %vm2471 = vcmp.eq.f32.partialorder %v2470, 8.507059e+37
    %v2472 = vand.u32 %v2460, 2147483648
    %v2473 = vor.u32 1.1754944e-38, %v2472
    %v2474 = vsel %vm2471, %v2473, %v2469
    %v2475 = vmul.f32 1.0, %v2474
    %v2476 = vtanh.pop %v2436
    %v2477 = vxor.u32 %v2437, 2147483648
    %v2478 = vmul.f32 %v2477, 1.442695
    %v2479 = vpow.pop %v2478
    %v2480 = vadd.f32 %v2479, 1.0
    %v2481 = vrcp.pop %v2480
    %v2482 = vmul.f32 %v2480, %v2481
    %v2483 = vsub.f32 1.0, %v2482
    %v2484 = vmul.f32 %v2481, %v2483
    %v2485 = vadd.f32 %v2481, %v2484
    %vm2486 = vweird.f32 %v2480
    %vm2487 = vweird.f32 %v2481
    %vm2488 = vmor %vm2486, %vm2487
    %v2489 = vsel %vm2488, %v2481, %v2485
    %v2490 = vand.u32 2147483647, %v2480
    %vm2491 = vcmp.eq.f32.partialorder %v2490, 8.507059e+37
    %v2492 = vand.u32 %v2480, 2147483648
    %v2493 = vor.u32 1.1754944e-38, %v2492
    %v2494 = vsel %vm2491, %v2493, %v2489
    %v2495 = vmul.f32 1.0, %v2494
    %v2497 = vrot.slane %v2336, 6
    %v2499 = vmul.f32 %v2475, %v2497
    %v2500 = vmul.f32 %v2456, %v2476
    %v2501 = vadd.f32 %v2499, %v2500
    %v2502 = vtanh.pop %v2501
    %v2503 = vmul.f32 %v2495, %v2502
    %v2505 = vrot.slane %v2503, 6
    %2507 = vmatpush.msra.mxu0 %v1861
    %2508 = vmatpush.msra.mxu0 %v1857
    %2509 = vmatpush.msra.mxu0 %v1853
    %2510 = vmatpush.msra.mxu0 %v1849
    %2511 = vmatpush.msra.mxu0 %v1845
    %2512 = vmatpush.msra.mxu0 %v1841
    %2513 = vmatpush.msra.mxu0 %v1837
    %2514 = vmatpush.msra.mxu0 %v1833
    %2515 = vmatpush.msra.mxu0 %v1829
    %2516 = vmatpush.msra.mxu0 %v1825
    %2517 = vmatpush.msra.mxu0 %v1821
    %2518 = vmatpush.msra.mxu0 %v1817
    %2519 = vmatpush.msra.mxu0 %v1813
    %2520 = vmatpush.msra.mxu0 %v1809
    %2521 = vmatpush.msra.mxu0 %v1805
    %2522 = vmatpush.msra.mxu0 %v1801
    %2523 = vmatmul.f32.gmra.mxu0 %v2505
    %v2524 = vpop.f32.mrf.mxu0
    %v2525 = vadd.f32 0.0, %v2524
    %2526 = vdwg.mxu0
    %2527 = vmatpush.msra.mxu0 %v1862
    %2528 = vmatpush.msra.mxu0 %v1858
    %2529 = vmatpush.msra.mxu0 %v1854
    %2530 = vmatpush.msra.mxu0 %v1850
    %2531 = vmatpush.msra.mxu0 %v1846
    %2532 = vmatpush.msra.mxu0 %v1842
    %2533 = vmatpush.msra.mxu0 %v1838
    %2534 = vmatpush.msra.mxu0 %v1834
    %2535 = vmatpush.msra.mxu0 %v1830
    %2536 = vmatpush.msra.mxu0 %v1826
    %2537 = vmatpush.msra.mxu0 %v1822
    %2538 = vmatpush.msra.mxu0 %v1818
    %2539 = vmatpush.msra.mxu0 %v1814
    %2540 = vmatpush.msra.mxu0 %v1810
    %2541 = vmatpush.msra.mxu0 %v1806
    %2542 = vmatpush.msra.mxu0 %v1802
    %2543 = vmatmul.f32.gmra.mxu0 %v2505
    %v2544 = vpop.f32.mrf.mxu0
    %v2545 = vadd.f32 0.0, %v2544
    %2546 = vdwg.mxu0
    %2547 = vmatpush.msra.mxu0 %v1863
    %2548 = vmatpush.msra.mxu0 %v1859
    %2549 = vmatpush.msra.mxu0 %v1855
    %2550 = vmatpush.msra.mxu0 %v1851
    %2551 = vmatpush.msra.mxu0 %v1847
    %2552 = vmatpush.msra.mxu0 %v1843
    %2553 = vmatpush.msra.mxu0 %v1839
    %2554 = vmatpush.msra.mxu0 %v1835
    %2555 = vmatpush.msra.mxu0 %v1831
    %2556 = vmatpush.msra.mxu0 %v1827
    %2557 = vmatpush.msra.mxu0 %v1823
    %2558 = vmatpush.msra.mxu0 %v1819
    %2559 = vmatpush.msra.mxu0 %v1815
    %2560 = vmatpush.msra.mxu0 %v1811
    %2561 = vmatpush.msra.mxu0 %v1807
    %2562 = vmatpush.msra.mxu0 %v1803
    %2563 = vmatmul.f32.gmra.mxu0 %v2505
    %v2564 = vpop.f32.mrf.mxu0
    %v2565 = vadd.f32 0.0, %v2564
    %2566 = vdwg.mxu0
    %2567 = vmatpush.msra.mxu0 %v1864
    %2568 = vmatpush.msra.mxu0 %v1860
    %2569 = vmatpush.msra.mxu0 %v1856
    %2570 = vmatpush.msra.mxu0 %v1852
    %2571 = vmatpush.msra.mxu0 %v1848
    %2572 = vmatpush.msra.mxu0 %v1844
    %2573 = vmatpush.msra.mxu0 %v1840
    %2574 = vmatpush.msra.mxu0 %v1836
    %2575 = vmatpush.msra.mxu0 %v1832
    %2576 = vmatpush.msra.mxu0 %v1828
    %2577 = vmatpush.msra.mxu0 %v1824
    %2578 = vmatpush.msra.mxu0 %v1820
    %2579 = vmatpush.msra.mxu0 %v1816
    %2580 = vmatpush.msra.mxu0 %v1812
    %2581 = vmatpush.msra.mxu0 %v1808
    %2582 = vmatpush.msra.mxu0 %v1804
    %2583 = vmatmul.f32.gmra.mxu0 %v2505
    %v2584 = vpop.f32.mrf.mxu0
    %v2585 = vadd.f32 0.0, %v2584
    %2586 = vdwg.mxu0
    %v2587 = vadd.f32 %v1730, %v2525
    %v2588 = vadd.f32 %v1753, %v2545
    %v2589 = vadd.f32 %v1776, %v2565
    %v2590 = vadd.f32 %v1799, %v2585
    %v2591 = vxor.u32 %v2587, 2147483648
    %v2592 = vmul.f32 %v2591, 1.442695
    %v2593 = vpow.pop %v2592
    %v2594 = vadd.f32 %v2593, 1.0
    %v2595 = vrcp.pop %v2594
    %v2596 = vmul.f32 %v2594, %v2595
    %v2597 = vsub.f32 1.0, %v2596
    %v2598 = vmul.f32 %v2595, %v2597
    %v2599 = vadd.f32 %v2595, %v2598
    %vm2600 = vweird.f32 %v2594
    %vm2601 = vweird.f32 %v2595
    %vm2602 = vmor %vm2600, %vm2601
    %v2603 = vsel %vm2602, %v2595, %v2599
    %v2604 = vand.u32 2147483647, %v2594
    %vm2605 = vcmp.eq.f32.partialorder %v2604, 8.507059e+37
    %v2606 = vand.u32 %v2594, 2147483648
    %v2607 = vor.u32 1.1754944e-38, %v2606
    %v2608 = vsel %vm2605, %v2607, %v2603
    %v2609 = vmul.f32 1.0, %v2608
    %v2610 = vxor.u32 %v2588, 2147483648
    %v2611 = vmul.f32 %v2610, 1.442695
    %v2612 = vpow.pop %v2611
    %v2613 = vadd.f32 %v2612, 1.0
    %v2614 = vrcp.pop %v2613
    %v2615 = vmul.f32 %v2613, %v2614
    %v2616 = vsub.f32 1.0, %v2615
    %v2617 = vmul.f32 %v2614, %v2616
    %v2618 = vadd.f32 %v2614, %v2617
    %vm2619 = vweird.f32 %v2613
    %vm2620 = vweird.f32 %v2614
    %vm2621 = vmor %vm2619, %vm2620
    %v2622 = vsel %vm2621, %v2614, %v2618
    %v2623 = vand.u32 2147483647, %v2613
    %vm2624 = vcmp.eq.f32.partialorder %v2623, 8.507059e+37
    %v2625 = vand.u32 %v2613, 2147483648
    %v2626 = vor.u32 1.1754944e-38, %v2625
    %v2627 = vsel %vm2624, %v2626, %v2622
    %v2628 = vmul.f32 1.0, %v2627
    %v2629 = vtanh.pop %v2589
    %v2630 = vxor.u32 %v2590, 2147483648
    %v2631 = vmul.f32 %v2630, 1.442695
    %v2632 = vpow.pop %v2631
    %v2633 = vadd.f32 %v2632, 1.0
    %v2634 = vrcp.pop %v2633
    %v2635 = vmul.f32 %v2633, %v2634
    %v2636 = vsub.f32 1.0, %v2635
    %v2637 = vmul.f32 %v2634, %v2636
    %v2638 = vadd.f32 %v2634, %v2637
    %vm2639 = vweird.f32 %v2633
    %vm2640 = vweird.f32 %v2634
    %vm2641 = vmor %vm2639, %vm2640
    %v2642 = vsel %vm2641, %v2634, %v2638
    %v2643 = vand.u32 2147483647, %v2633
    %vm2644 = vcmp.eq.f32.partialorder %v2643, 8.507059e+37
    %v2645 = vand.u32 %v2633, 2147483648
    %v2646 = vor.u32 1.1754944e-38, %v2645
    %v2647 = vsel %vm2644, %v2646, %v2642
    %v2648 = vmul.f32 1.0, %v2647
    %v2650 = vrot.slane %v2501, 6
    %v2652 = vmul.f32 %v2628, %v2650
    %v2653 = vmul.f32 %v2609, %v2629
    %v2654 = vadd.f32 %v2652, %v2653
    %v2655 = vtanh.pop %v2654
    %v2656 = vmul.f32 %v2648, %v2655
    %2657 = vmatpush.msra.mxu0 %v1861
    %2658 = vmatpush.msra.mxu0 %v1857
    %2659 = vmatpush.msra.mxu0 %v1853
    %2660 = vmatpush.msra.mxu0 %v1849
    %2661 = vmatpush.msra.mxu0 %v1845
    %2662 = vmatpush.msra.mxu0 %v1841
    %2663 = vmatpush.msra.mxu0 %v1837
    %2664 = vmatpush.msra.mxu0 %v1833
    %2665 = vmatpush.msra.mxu0 %v1829
    %2666 = vmatpush.msra.mxu0 %v1825
    %2667 = vmatpush.msra.mxu0 %v1821
    %2668 = vmatpush.msra.mxu0 %v1817
    %2669 = vmatpush.msra.mxu0 %v1813
    %2670 = vmatpush.msra.mxu0 %v1809
    %2671 = vmatpush.msra.mxu0 %v1805
    %2672 = vmatpush.msra.mxu0 %v1801
    %2673 = vmatmul.f32.gmra.mxu0 %v2656
    %v2674 = vpop.f32.mrf.mxu0
    %v2675 = vadd.f32 0.0, %v2674
    %2676 = vdwg.mxu0
    %2677 = vmatpush.msra.mxu0 %v1862
    %2678 = vmatpush.msra.mxu0 %v1858
    %2679 = vmatpush.msra.mxu0 %v1854
    %2680 = vmatpush.msra.mxu0 %v1850
    %2681 = vmatpush.msra.mxu0 %v1846
    %2682 = vmatpush.msra.mxu0 %v1842
    %2683 = vmatpush.msra.mxu0 %v1838
    %2684 = vmatpush.msra.mxu0 %v1834
    %2685 = vmatpush.msra.mxu0 %v1830
    %2686 = vmatpush.msra.mxu0 %v1826
    %2687 = vmatpush.msra.mxu0 %v1822
    %2688 = vmatpush.msra.mxu0 %v1818
    %2689 = vmatpush.msra.mxu0 %v1814
    %2690 = vmatpush.msra.mxu0 %v1810
    %2691 = vmatpush.msra.mxu0 %v1806
    %2692 = vmatpush.msra.mxu0 %v1802
    %2693 = vmatmul.f32.gmra.mxu0 %v2656
    %v2694 = vpop.f32.mrf.mxu0
    %v2695 = vadd.f32 0.0, %v2694
    %2696 = vdwg.mxu0
    %2697 = vmatpush.msra.mxu0 %v1863
    %2698 = vmatpush.msra.mxu0 %v1859
    %2699 = vmatpush.msra.mxu0 %v1855
    %2700 = vmatpush.msra.mxu0 %v1851
    %2701 = vmatpush.msra.mxu0 %v1847
    %2702 = vmatpush.msra.mxu0 %v1843
    %2703 = vmatpush.msra.mxu0 %v1839
    %2704 = vmatpush.msra.mxu0 %v1835
    %2705 = vmatpush.msra.mxu0 %v1831
    %2706 = vmatpush.msra.mxu0 %v1827
    %2707 = vmatpush.msra.mxu0 %v1823
    %2708 = vmatpush.msra.mxu0 %v1819
    %2709 = vmatpush.msra.mxu0 %v1815
    %2710 = vmatpush.msra.mxu0 %v1811
    %2711 = vmatpush.msra.mxu0 %v1807
    %2712 = vmatpush.msra.mxu0 %v1803
    %2713 = vmatmul.f32.gmra.mxu0 %v2656
    %v2714 = vpop.f32.mrf.mxu0
    %v2715 = vadd.f32 0.0, %v2714
    %2716 = vdwg.mxu0
    %2717 = vmatpush.msra.mxu0 %v1864
    %2718 = vmatpush.msra.mxu0 %v1860
    %2719 = vmatpush.msra.mxu0 %v1856
    %2720 = vmatpush.msra.mxu0 %v1852
    %2721 = vmatpush.msra.mxu0 %v1848
    %2722 = vmatpush.msra.mxu0 %v1844
    %2723 = vmatpush.msra.mxu0 %v1840
    %2724 = vmatpush.msra.mxu0 %v1836
    %2725 = vmatpush.msra.mxu0 %v1832
    %2726 = vmatpush.msra.mxu0 %v1828
    %2727 = vmatpush.msra.mxu0 %v1824
    %2728 = vmatpush.msra.mxu0 %v1820
    %2729 = vmatpush.msra.mxu0 %v1816
    %2730 = vmatpush.msra.mxu0 %v1812
    %2731 = vmatpush.msra.mxu0 %v1808
    %2732 = vmatpush.msra.mxu0 %v1804
    %2733 = vmatmul.f32.gmra.mxu0 %v2656
    %v2734 = vpop.f32.mrf.mxu0
    %v2735 = vadd.f32 0.0, %v2734
    %2736 = vdwg.mxu0
    %v2741 = vrot.slane %v2675, 6
    %v2742 = vrot.slane %v2695, 6
    %v2743 = vrot.slane %v2715, 6
    %v2744 = vrot.slane %v2735, 6
    %v2749 = vadd.f32 %v1730, %v2741
    %v2750 = vadd.f32 %v1753, %v2742
    %v2751 = vadd.f32 %v1776, %v2743
    %v2752 = vadd.f32 %v1799, %v2744
    %v2753 = vxor.u32 %v2749, 2147483648
    %v2754 = vmul.f32 %v2753, 1.442695
    %v2755 = vpow.pop %v2754
    %v2756 = vadd.f32 %v2755, 1.0
    %v2757 = vrcp.pop %v2756
    %v2758 = vmul.f32 %v2756, %v2757
    %v2759 = vsub.f32 1.0, %v2758
    %v2760 = vmul.f32 %v2757, %v2759
    %v2761 = vadd.f32 %v2757, %v2760
    %vm2762 = vweird.f32 %v2756
    %vm2763 = vweird.f32 %v2757
    %vm2764 = vmor %vm2762, %vm2763
    %v2765 = vsel %vm2764, %v2757, %v2761
    %v2766 = vand.u32 2147483647, %v2756
    %vm2767 = vcmp.eq.f32.partialorder %v2766, 8.507059e+37
    %v2768 = vand.u32 %v2756, 2147483648
    %v2769 = vor.u32 1.1754944e-38, %v2768
    %v2770 = vsel %vm2767, %v2769, %v2765
    %v2771 = vmul.f32 1.0, %v2770
    %v2772 = vxor.u32 %v2750, 2147483648
    %v2773 = vmul.f32 %v2772, 1.442695
    %v2774 = vpow.pop %v2773
    %v2775 = vadd.f32 %v2774, 1.0
    %v2776 = vrcp.pop %v2775
    %v2777 = vmul.f32 %v2775, %v2776
    %v2778 = vsub.f32 1.0, %v2777
    %v2779 = vmul.f32 %v2776, %v2778
    %v2780 = vadd.f32 %v2776, %v2779
    %vm2781 = vweird.f32 %v2775
    %vm2782 = vweird.f32 %v2776
    %vm2783 = vmor %vm2781, %vm2782
    %v2784 = vsel %vm2783, %v2776, %v2780
    %v2785 = vand.u32 2147483647, %v2775
    %vm2786 = vcmp.eq.f32.partialorder %v2785, 8.507059e+37
    %v2787 = vand.u32 %v2775, 2147483648
    %v2788 = vor.u32 1.1754944e-38, %v2787
    %v2789 = vsel %vm2786, %v2788, %v2784
    %v2790 = vmul.f32 1.0, %v2789
    %v2791 = vtanh.pop %v2751
    %v2792 = vxor.u32 %v2752, 2147483648
    %v2793 = vmul.f32 %v2792, 1.442695
    %v2794 = vpow.pop %v2793
    %v2795 = vadd.f32 %v2794, 1.0
    %v2796 = vrcp.pop %v2795
    %v2797 = vmul.f32 %v2795, %v2796
    %v2798 = vsub.f32 1.0, %v2797
    %v2799 = vmul.f32 %v2796, %v2798
    %v2800 = vadd.f32 %v2796, %v2799
    %vm2801 = vweird.f32 %v2795
    %vm2802 = vweird.f32 %v2796
    %vm2803 = vmor %vm2801, %vm2802
    %v2804 = vsel %vm2803, %v2796, %v2800
    %v2805 = vand.u32 2147483647, %v2795
    %vm2806 = vcmp.eq.f32.partialorder %v2805, 8.507059e+37
    %v2807 = vand.u32 %v2795, 2147483648
    %v2808 = vor.u32 1.1754944e-38, %v2807
    %v2809 = vsel %vm2806, %v2808, %v2804
    %v2810 = vmul.f32 1.0, %v2809
    %v2812 = vrot.slane %v2654, 6
    %v2814 = vmul.f32 %v2790, %v2812
    %v2815 = vmul.f32 %v2771, %v2791
    %v2816 = vadd.f32 %v2814, %v2815
    %v2817 = vtanh.pop %v2816
    %v2818 = vmul.f32 %v2810, %v2817
    %v2820 = vrot.slane %v2818, 2
    %2822 = vmatpush.msra.mxu0 %v1861
    %2823 = vmatpush.msra.mxu0 %v1857
    %2824 = vmatpush.msra.mxu0 %v1853
    %2825 = vmatpush.msra.mxu0 %v1849
    %2826 = vmatpush.msra.mxu0 %v1845
    %2827 = vmatpush.msra.mxu0 %v1841
    %2828 = vmatpush.msra.mxu0 %v1837
    %2829 = vmatpush.msra.mxu0 %v1833
    %2830 = vmatpush.msra.mxu0 %v1829
    %2831 = vmatpush.msra.mxu0 %v1825
    %2832 = vmatpush.msra.mxu0 %v1821
    %2833 = vmatpush.msra.mxu0 %v1817
    %2834 = vmatpush.msra.mxu0 %v1813
    %2835 = vmatpush.msra.mxu0 %v1809
    %2836 = vmatpush.msra.mxu0 %v1805
    %2837 = vmatpush.msra.mxu0 %v1801
    %2838 = vmatmul.f32.gmra.mxu0 %v2820
    %v2839 = vpop.f32.mrf.mxu0
    %v2840 = vadd.f32 0.0, %v2839
    %2841 = vdwg.mxu0
    %2842 = vmatpush.msra.mxu0 %v1862
    %2843 = vmatpush.msra.mxu0 %v1858
    %2844 = vmatpush.msra.mxu0 %v1854
    %2845 = vmatpush.msra.mxu0 %v1850
    %2846 = vmatpush.msra.mxu0 %v1846
    %2847 = vmatpush.msra.mxu0 %v1842
    %2848 = vmatpush.msra.mxu0 %v1838
    %2849 = vmatpush.msra.mxu0 %v1834
    %2850 = vmatpush.msra.mxu0 %v1830
    %2851 = vmatpush.msra.mxu0 %v1826
    %2852 = vmatpush.msra.mxu0 %v1822
    %2853 = vmatpush.msra.mxu0 %v1818
    %2854 = vmatpush.msra.mxu0 %v1814
    %2855 = vmatpush.msra.mxu0 %v1810
    %2856 = vmatpush.msra.mxu0 %v1806
    %2857 = vmatpush.msra.mxu0 %v1802
    %2858 = vmatmul.f32.gmra.mxu0 %v2820
    %v2859 = vpop.f32.mrf.mxu0
    %v2860 = vadd.f32 0.0, %v2859
    %2861 = vdwg.mxu0
    %2862 = vmatpush.msra.mxu0 %v1863
    %2863 = vmatpush.msra.mxu0 %v1859
    %2864 = vmatpush.msra.mxu0 %v1855
    %2865 = vmatpush.msra.mxu0 %v1851
    %2866 = vmatpush.msra.mxu0 %v1847
    %2867 = vmatpush.msra.mxu0 %v1843
    %2868 = vmatpush.msra.mxu0 %v1839
    %2869 = vmatpush.msra.mxu0 %v1835
    %2870 = vmatpush.msra.mxu0 %v1831
    %2871 = vmatpush.msra.mxu0 %v1827
    %2872 = vmatpush.msra.mxu0 %v1823
    %2873 = vmatpush.msra.mxu0 %v1819
    %2874 = vmatpush.msra.mxu0 %v1815
    %2875 = vmatpush.msra.mxu0 %v1811
    %2876 = vmatpush.msra.mxu0 %v1807
    %2877 = vmatpush.msra.mxu0 %v1803
    %2878 = vmatmul.f32.gmra.mxu0 %v2820
    %v2879 = vpop.f32.mrf.mxu0
    %v2880 = vadd.f32 0.0, %v2879
    %2881 = vdwg.mxu0
    %2882 = vmatpush.msra.mxu0 %v1864
    %2883 = vmatpush.msra.mxu0 %v1860
    %2884 = vmatpush.msra.mxu0 %v1856
    %2885 = vmatpush.msra.mxu0 %v1852
    %2886 = vmatpush.msra.mxu0 %v1848
    %2887 = vmatpush.msra.mxu0 %v1844
    %2888 = vmatpush.msra.mxu0 %v1840
    %2889 = vmatpush.msra.mxu0 %v1836
    %2890 = vmatpush.msra.mxu0 %v1832
    %2891 = vmatpush.msra.mxu0 %v1828
    %2892 = vmatpush.msra.mxu0 %v1824
    %2893 = vmatpush.msra.mxu0 %v1820
    %2894 = vmatpush.msra.mxu0 %v1816
    %2895 = vmatpush.msra.mxu0 %v1812
    %2896 = vmatpush.msra.mxu0 %v1808
    %2897 = vmatpush.msra.mxu0 %v1804
    %2898 = vmatmul.f32.gmra.mxu0 %v2820
    %v2899 = vpop.f32.mrf.mxu0
    %v2900 = vadd.f32 0.0, %v2899
    %2901 = vdwg.mxu0
    %v2906 = vrot.slane %v2840, 4
    %v2907 = vrot.slane %v2860, 4
    %v2908 = vrot.slane %v2880, 4
    %v2909 = vrot.slane %v2900, 4
    %v2914 = vadd.f32 %v1730, %v2906
    %v2915 = vadd.f32 %v1753, %v2907
    %v2916 = vadd.f32 %v1776, %v2908
    %v2917 = vadd.f32 %v1799, %v2909
    %v2918 = vxor.u32 %v2914, 2147483648
    %v2919 = vmul.f32 %v2918, 1.442695
    %v2920 = vpow.pop %v2919
    %v2921 = vadd.f32 %v2920, 1.0
    %v2922 = vrcp.pop %v2921
    %v2923 = vmul.f32 %v2921, %v2922
    %v2924 = vsub.f32 1.0, %v2923
    %v2925 = vmul.f32 %v2922, %v2924
    %v2926 = vadd.f32 %v2922, %v2925
    %vm2927 = vweird.f32 %v2921
    %vm2928 = vweird.f32 %v2922
    %vm2929 = vmor %vm2927, %vm2928
    %v2930 = vsel %vm2929, %v2922, %v2926
    %v2931 = vand.u32 2147483647, %v2921
    %vm2932 = vcmp.eq.f32.partialorder %v2931, 8.507059e+37
    %v2933 = vand.u32 %v2921, 2147483648
    %v2934 = vor.u32 1.1754944e-38, %v2933
    %v2935 = vsel %vm2932, %v2934, %v2930
    %v2936 = vmul.f32 1.0, %v2935
    %v2937 = vxor.u32 %v2915, 2147483648
    %v2938 = vmul.f32 %v2937, 1.442695
    %v2939 = vpow.pop %v2938
    %v2940 = vadd.f32 %v2939, 1.0
    %v2941 = vrcp.pop %v2940
    %v2942 = vmul.f32 %v2940, %v2941
    %v2943 = vsub.f32 1.0, %v2942
    %v2944 = vmul.f32 %v2941, %v2943
    %v2945 = vadd.f32 %v2941, %v2944
    %vm2946 = vweird.f32 %v2940
    %vm2947 = vweird.f32 %v2941
    %vm2948 = vmor %vm2946, %vm2947
    %v2949 = vsel %vm2948, %v2941, %v2945
    %v2950 = vand.u32 2147483647, %v2940
    %vm2951 = vcmp.eq.f32.partialorder %v2950, 8.507059e+37
    %v2952 = vand.u32 %v2940, 2147483648
    %v2953 = vor.u32 1.1754944e-38, %v2952
    %v2954 = vsel %vm2951, %v2953, %v2949
    %v2955 = vmul.f32 1.0, %v2954
    %v2956 = vtanh.pop %v2916
    %v2957 = vxor.u32 %v2917, 2147483648
    %v2958 = vmul.f32 %v2957, 1.442695
    %v2959 = vpow.pop %v2958
    %v2960 = vadd.f32 %v2959, 1.0
    %v2961 = vrcp.pop %v2960
    %v2962 = vmul.f32 %v2960, %v2961
    %v2963 = vsub.f32 1.0, %v2962
    %v2964 = vmul.f32 %v2961, %v2963
    %v2965 = vadd.f32 %v2961, %v2964
    %vm2966 = vweird.f32 %v2960
    %vm2967 = vweird.f32 %v2961
    %vm2968 = vmor %vm2966, %vm2967
    %v2969 = vsel %vm2968, %v2961, %v2965
    %v2970 = vand.u32 2147483647, %v2960
    %vm2971 = vcmp.eq.f32.partialorder %v2970, 8.507059e+37
    %v2972 = vand.u32 %v2960, 2147483648
    %v2973 = vor.u32 1.1754944e-38, %v2972
    %v2974 = vsel %vm2971, %v2973, %v2969
    %v2975 = vmul.f32 1.0, %v2974
    %v2977 = vrot.slane %v2816, 6
    %v2979 = vmul.f32 %v2955, %v2977
    %v2980 = vmul.f32 %v2936, %v2956
    %v2981 = vadd.f32 %v2979, %v2980
    %v2982 = vtanh.pop %v2981
    %v2983 = vmul.f32 %v2975, %v2982
    %v2985 = vrot.slane %v2983, 4
    %2987 = vmatpush.msra.mxu0 %v1861
    %2988 = vmatpush.msra.mxu0 %v1857
    %2989 = vmatpush.msra.mxu0 %v1853
    %2990 = vmatpush.msra.mxu0 %v1849
    %2991 = vmatpush.msra.mxu0 %v1845
    %2992 = vmatpush.msra.mxu0 %v1841
    %2993 = vmatpush.msra.mxu0 %v1837
    %2994 = vmatpush.msra.mxu0 %v1833
    %2995 = vmatpush.msra.mxu0 %v1829
    %2996 = vmatpush.msra.mxu0 %v1825
    %2997 = vmatpush.msra.mxu0 %v1821
    %2998 = vmatpush.msra.mxu0 %v1817
    %2999 = vmatpush.msra.mxu0 %v1813
    %3000 = vmatpush.msra.mxu0 %v1809
    %3001 = vmatpush.msra.mxu0 %v1805
    %3002 = vmatpush.msra.mxu0 %v1801
    %3003 = vmatmul.f32.gmra.mxu0 %v2985
    %v3004 = vpop.f32.mrf.mxu0
    %v3005 = vadd.f32 0.0, %v3004
    %3006 = vdwg.mxu0
    %3007 = vmatpush.msra.mxu0 %v1862
    %3008 = vmatpush.msra.mxu0 %v1858
    %3009 = vmatpush.msra.mxu0 %v1854
    %3010 = vmatpush.msra.mxu0 %v1850
    %3011 = vmatpush.msra.mxu0 %v1846
    %3012 = vmatpush.msra.mxu0 %v1842
    %3013 = vmatpush.msra.mxu0 %v1838
    %3014 = vmatpush.msra.mxu0 %v1834
    %3015 = vmatpush.msra.mxu0 %v1830
    %3016 = vmatpush.msra.mxu0 %v1826
    %3017 = vmatpush.msra.mxu0 %v1822
    %3018 = vmatpush.msra.mxu0 %v1818
    %3019 = vmatpush.msra.mxu0 %v1814
    %3020 = vmatpush.msra.mxu0 %v1810
    %3021 = vmatpush.msra.mxu0 %v1806
    %3022 = vmatpush.msra.mxu0 %v1802
    %3023 = vmatmul.f32.gmra.mxu0 %v2985
    %v3024 = vpop.f32.mrf.mxu0
    %v3025 = vadd.f32 0.0, %v3024
    %3026 = vdwg.mxu0
    %3027 = vmatpush.msra.mxu0 %v1863
    %3028 = vmatpush.msra.mxu0 %v1859
    %3029 = vmatpush.msra.mxu0 %v1855
    %3030 = vmatpush.msra.mxu0 %v1851
    %3031 = vmatpush.msra.mxu0 %v1847
    %3032 = vmatpush.msra.mxu0 %v1843
    %3033 = vmatpush.msra.mxu0 %v1839
    %3034 = vmatpush.msra.mxu0 %v1835
    %3035 = vmatpush.msra.mxu0 %v1831
    %3036 = vmatpush.msra.mxu0 %v1827
    %3037 = vmatpush.msra.mxu0 %v1823
    %3038 = vmatpush.msra.mxu0 %v1819
    %3039 = vmatpush.msra.mxu0 %v1815
    %3040 = vmatpush.msra.mxu0 %v1811
    %3041 = vmatpush.msra.mxu0 %v1807
    %3042 = vmatpush.msra.mxu0 %v1803
    %3043 = vmatmul.f32.gmra.mxu0 %v2985
    %v3044 = vpop.f32.mrf.mxu0
    %v3045 = vadd.f32 0.0, %v3044
    %3046 = vdwg.mxu0
    %3047 = vmatpush.msra.mxu0 %v1864
    %3048 = vmatpush.msra.mxu0 %v1860
    %3049 = vmatpush.msra.mxu0 %v1856
    %3050 = vmatpush.msra.mxu0 %v1852
    %3051 = vmatpush.msra.mxu0 %v1848
    %3052 = vmatpush.msra.mxu0 %v1844
    %3053 = vmatpush.msra.mxu0 %v1840
    %3054 = vmatpush.msra.mxu0 %v1836
    %3055 = vmatpush.msra.mxu0 %v1832
    %3056 = vmatpush.msra.mxu0 %v1828
    %3057 = vmatpush.msra.mxu0 %v1824
    %3058 = vmatpush.msra.mxu0 %v1820
    %3059 = vmatpush.msra.mxu0 %v1816
    %3060 = vmatpush.msra.mxu0 %v1812
    %3061 = vmatpush.msra.mxu0 %v1808
    %3062 = vmatpush.msra.mxu0 %v1804
    %3063 = vmatmul.f32.gmra.mxu0 %v2985
    %v3064 = vpop.f32.mrf.mxu0
    %v3065 = vadd.f32 0.0, %v3064
    %3066 = vdwg.mxu0
    %v3071 = vrot.slane %v3005, 2
    %v3072 = vrot.slane %v3025, 2
    %v3073 = vrot.slane %v3045, 2
    %v3074 = vrot.slane %v3065, 2
    %v3079 = vadd.f32 %v1730, %v3071
    %v3080 = vadd.f32 %v1753, %v3072
    %v3081 = vadd.f32 %v1776, %v3073
    %v3082 = vadd.f32 %v1799, %v3074
    %v3083 = vxor.u32 %v3079, 2147483648
    %v3084 = vmul.f32 %v3083, 1.442695
    %v3085 = vpow.pop %v3084
    %v3086 = vadd.f32 %v3085, 1.0
    %v3087 = vrcp.pop %v3086
    %v3088 = vmul.f32 %v3086, %v3087
    %v3089 = vsub.f32 1.0, %v3088
    %v3090 = vmul.f32 %v3087, %v3089
    %v3091 = vadd.f32 %v3087, %v3090
    %vm3092 = vweird.f32 %v3086
    %vm3093 = vweird.f32 %v3087
    %vm3094 = vmor %vm3092, %vm3093
    %v3095 = vsel %vm3094, %v3087, %v3091
    %v3096 = vand.u32 2147483647, %v3086
    %vm3097 = vcmp.eq.f32.partialorder %v3096, 8.507059e+37
    %v3098 = vand.u32 %v3086, 2147483648
    %v3099 = vor.u32 1.1754944e-38, %v3098
    %v3100 = vsel %vm3097, %v3099, %v3095
    %v3101 = vmul.f32 1.0, %v3100
    %v3102 = vxor.u32 %v3080, 2147483648
    %v3103 = vmul.f32 %v3102, 1.442695
    %v3104 = vpow.pop %v3103
    %v3105 = vadd.f32 %v3104, 1.0
    %v3106 = vrcp.pop %v3105
    %v3107 = vmul.f32 %v3105, %v3106
    %v3108 = vsub.f32 1.0, %v3107
    %v3109 = vmul.f32 %v3106, %v3108
    %v3110 = vadd.f32 %v3106, %v3109
    %vm3111 = vweird.f32 %v3105
    %vm3112 = vweird.f32 %v3106
    %vm3113 = vmor %vm3111, %vm3112
    %v3114 = vsel %vm3113, %v3106, %v3110
    %v3115 = vand.u32 2147483647, %v3105
    %vm3116 = vcmp.eq.f32.partialorder %v3115, 8.507059e+37
    %v3117 = vand.u32 %v3105, 2147483648
    %v3118 = vor.u32 1.1754944e-38, %v3117
    %v3119 = vsel %vm3116, %v3118, %v3114
    %v3120 = vmul.f32 1.0, %v3119
    %v3121 = vtanh.pop %v3081
    %v3122 = vxor.u32 %v3082, 2147483648
    %v3123 = vmul.f32 %v3122, 1.442695
    %v3124 = vpow.pop %v3123
    %v3125 = vadd.f32 %v3124, 1.0
    %v3126 = vrcp.pop %v3125
    %v3127 = vmul.f32 %v3125, %v3126
    %v3128 = vsub.f32 1.0, %v3127
    %v3129 = vmul.f32 %v3126, %v3128
    %v3130 = vadd.f32 %v3126, %v3129
    %vm3131 = vweird.f32 %v3125
    %vm3132 = vweird.f32 %v3126
    %vm3133 = vmor %vm3131, %vm3132
    %v3134 = vsel %vm3133, %v3126, %v3130
    %v3135 = vand.u32 2147483647, %v3125
    %vm3136 = vcmp.eq.f32.partialorder %v3135, 8.507059e+37
    %v3137 = vand.u32 %v3125, 2147483648
    %v3138 = vor.u32 1.1754944e-38, %v3137
    %v3139 = vsel %vm3136, %v3138, %v3134
    %v3140 = vmul.f32 1.0, %v3139
    %v3142 = vrot.slane %v2981, 6
    %v3144 = vmul.f32 %v3120, %v3142
    %v3145 = vmul.f32 %v3101, %v3121
    %v3146 = vadd.f32 %v3144, %v3145
    %v3147 = vtanh.pop %v3146
    %v3148 = vmul.f32 %v3140, %v3147
    %v3149 = vsel %vm1622, %v2011, %v2173
    %v3150 = vsel %vm1624, %v3149, %v2338
    %v3151 = vsel %vm1626, %v3150, %v2503
    %v3152 = vsel %vm1622, %v2656, %v2818
    %v3153 = vsel %vm1624, %v3152, %v2983
    %v3154 = vsel %vm1626, %v3153, %v3148
    %v3155 = vld [vmem:[%s8] sm:$0xff]
    %v3156 = vld [vmem:[%s8 + $0x8] sm:$0xff]
    %v3157 = vld [vmem:[%s8 + $0x10] sm:$0xff]
    %v3158 = vld [vmem:[%s8 + $0x18] sm:$0xff]
    %v3159 = vld [vmem:[%s8 + $0x20] sm:$0xff]
    %v3160 = vld [vmem:[%s8 + $0x28] sm:$0xff]
    %v3161 = vld [vmem:[%s8 + $0x30] sm:$0xff]
    %v3162 = vld [vmem:[%s8 + $0x38] sm:$0xff]
    %v3163 = vld [vmem:[%s8 + $0x40] sm:$0xff]
    %v3164 = vld [vmem:[%s8 + $0x48] sm:$0xff]
    %v3165 = vld [vmem:[%s8 + $0x50] sm:$0xff]
    %v3166 = vld [vmem:[%s8 + $0x58] sm:$0xff]
    %v3167 = vld [vmem:[%s8 + $0x60] sm:$0xff]
    %v3168 = vld [vmem:[%s8 + $0x68] sm:$0xff]
    %v3169 = vld [vmem:[%s8 + $0x70] sm:$0xff]
    %v3170 = vld [vmem:[%s8 + $0x78] sm:$0xff]
    %v3171 = vld [vmem:[%s9] sm:$0x1]
    %v3173 = vperm.slane %v3171, 0
    %3175 = vmatpush.msra.mxu0 %v3170
    %3176 = vmatpush.msra.mxu0 %v3169
    %3177 = vmatpush.msra.mxu0 %v3168
    %3178 = vmatpush.msra.mxu0 %v3167
    %3179 = vmatpush.msra.mxu0 %v3166
    %3180 = vmatpush.msra.mxu0 %v3165
    %3181 = vmatpush.msra.mxu0 %v3164
    %3182 = vmatpush.msra.mxu0 %v3163
    %3183 = vmatpush.msra.mxu0 %v3162
    %3184 = vmatpush.msra.mxu0 %v3161
    %3185 = vmatpush.msra.mxu0 %v3160
    %3186 = vmatpush.msra.mxu0 %v3159
    %3187 = vmatpush.msra.mxu0 %v3158
    %3188 = vmatpush.msra.mxu0 %v3157
    %3189 = vmatpush.msra.mxu0 %v3156
    %3190 = vmatpush.msra.mxu0 %v3155
    %3191 = vmatmul.f32.gmra.mxu0 %v3151
    %v3192 = vpop.f32.mrf.mxu0
    %v3193 = vadd.f32 %v3173, %v3192
    %3194 = vmatmul.f32.gmra.mxu0 %v3154
    %v3195 = vpop.f32.mrf.mxu0
    %v3196 = vadd.f32 %v3173, %v3195
    %3197 = vdwg.mxu0
    %3198 = vst.msk [vmem:[#allocation8] sm:$0xff] %vm117, %v3193
    %3199 = vst.msk [vmem:[#allocation8 + $0x8] sm:$0xff] %vm117, %v3196
    %3200 = vst [vmem:[#allocation9 - $0x6] sm:$0xc0] %v1621
    %3201 = vst [vmem:[#allocation9 - $0x4] sm:$0xc0] %v3148
    %3202 = vst [vmem:[#allocation11 - $0x6] sm:$0xc0] %v1619
    %3203 = vst [vmem:[#allocation11 - $0x4] sm:$0xc0] %v3146
    // Predicated region
    $region62: #{fused_forward.1} parent=1 // pred_check
      _
    $region63: #{fused_forward.1} parent=1 // pred_check_branch
      %3205 = sbr.rel (0) target = $region65
    $region64: #{fused_forward.1} parent=1 // pred_region
      %3207 = vsyncadd [#allocation4], 0
      %s3208 = sshll.u32 [#allocation8], 4
      %s3209 = int_to_ptr.vmem [resolvable:$true] %s3208
      %s3210 = sshll.u32 %s12, 4
      %s3211 = int_to_ptr.hbm [resolvable:$true] %s3210
      %3216 = dma.vmem_to_hbm [thread:$0]  %s3209, 256, %s3211, [#allocation4], 128, 128, 8
    $region65: #{fused_forward.1} parent=1 // pred_fallthru
      _
    // Predicated region
    $region66: #{fused_forward.1} parent=1 // pred_check
      _
    $region67: #{fused_forward.1} parent=1 // pred_check_branch
      %3218 = sbr.rel (0) target = $region69
    $region68: #{fused_forward.1} parent=1 // pred_region
      %3220 = vsyncadd [#allocation10], 0
      %s3221 = sshll.u32 [#allocation9], 4
      %s3222 = int_to_ptr.vmem [resolvable:$true] %s3221
      %s3223 = sshll.u32 %s13, 4
      %s3224 = int_to_ptr.hbm [resolvable:$true] %s3223
      %3229 = dma.vmem_to_hbm [thread:$0]  %s3222, 64, %s3224, [#allocation10], 32, 32, 2
    $region69: #{fused_forward.1} parent=1 // pred_fallthru
      _
    // Predicated region
    $region70: #{fused_forward.1} parent=1 // pred_check
      _
    $region71: #{fused_forward.1} parent=1 // pred_check_branch
      %3231 = sbr.rel (0) target = $region73
    $region72: #{fused_forward.1} parent=1 // pred_region
      %3233 = vsyncadd [#allocation10], 0
      %s3234 = sshll.u32 [#allocation11], 4
      %s3235 = int_to_ptr.vmem [resolvable:$true] %s3234
      %s3236 = sshll.u32 %s14, 4
      %s3237 = int_to_ptr.hbm [resolvable:$true] %s3236
      %3242 = dma.vmem_to_hbm [thread:$0]  %s3235, 64, %s3237, [#allocation10], 32, 32, 2
    $region73: #{fused_forward.1} parent=1 // pred_fallthru
      _
    // Predicated region
    $region74: #{fused_forward.1} parent=1 // pred_check
      _
    $region75: #{fused_forward.1} parent=1 // pred_check_branch
      %3244 = sbr.rel (0) target = $region77
    $region76: #{fused_forward.1} parent=1 // pred_region
      %3246 = dma.done [#allocation4], 256
    $region77: #{fused_forward.1} parent=1 // pred_fallthru
      _
    // Predicated region
    $region78: #{fused_forward.1} parent=1 // pred_check
      _
    $region79: #{fused_forward.1} parent=1 // pred_check_branch
      %3248 = sbr.rel (0) target = $region81
    $region80: #{fused_forward.1} parent=1 // pred_region
      %3250 = dma.done [#allocation10], 64
    $region81: #{fused_forward.1} parent=1 // pred_fallthru
      _
    // Predicated region
    $region82: #{fused_forward.1} parent=1 // pred_check
      _
    $region83: #{fused_forward.1} parent=1 // pred_check_branch
      %3252 = sbr.rel (0) target = $region85
    $region84: #{fused_forward.1} parent=1 // pred_region
      %3254 = dma.done [#allocation10], 64
    $region85: #{fused_forward.1} parent=1 // pred_fallthru
      _
    %3255 = vsyncpa [#allocation3], 1
    %3256 = vsyncpa [#allocation6], 1
    %3257 = vsyncpa [#allocation4], 1
    %3258 = vsyncpa [#allocation10], 1

</llo_original>
